<compile_context>
chip_gen: v7x
topology: tpu7x:2x2x1
jax: 0.10.0
libtpu: 0.0.40
codegen_flags: <defaults>
</compile_context>

<pallas_src>
import jax
import jax.numpy as jnp
from jax import lax
from jax.experimental import pallas as pl
from jax.experimental.pallas import tpu as pltpu


def _round_up(a, m):
    return (a + m - 1) // m * m


def _lerp_coeffs(out_size, in_size):
    """Static (i0, frac) pairs for PyTorch bilinear align_corners=True."""
    coeffs = []
    for i in range(out_size):
        if in_size == 1 or out_size == 1:
            coeffs.append((0, 0.0))
            continue
        src = i * (in_size - 1) / (out_size - 1)
        i0 = min(int(src), in_size - 2)
        coeffs.append((i0, float(src - i0)))
    return coeffs


# ----------------------------------------------------------------------------
# Fused kernel (grid=(1,)):
#   x_ref     : (N*C, HW)        input features, rows ordered (n, c), f32
#   noise_ref : (N*C, HW)        noise pre-broadcast over batch (wrapper), f32
#   ns_ref    : (N*C, 1)         per-channel noise scale, pre-broadcast, f32
#   w_ref     : (2C, Kp)         [to_mean; to_scale] conv weights, bf16
#   b_ref     : (2C, 1)          [to_mean; to_scale] conv biases, f32
#   p_ref     : (N*Hc, Kp, Wc)   im2col patches of z, batched over (n, hc), bf16
#   lxT_ref   : (Wc, W)          width bilinear upsample matrix (transposed), bf16
#   o_ref     : (N*C, HW)        output, f32
#   mean_s    : (N*C, HW)        VMEM scratch for upsampled mean
#   scale_s   : (N*C, HW)        VMEM scratch for upsampled scale
# ----------------------------------------------------------------------------
def noisy_adain_fused_kernel(x_ref, noise_ref, ns_ref, w_ref, b_ref,
                             p_ref, lxT_ref, o_ref, mean_s, scale_s):
    NC, HW = x_ref.shape
    C2, Kp = w_ref.shape
    C = C2 // 2
    N = NC // C
    B1 = p_ref.shape[0]              # N * Hc
    Hc = B1 // N
    Wc, W = lxT_ref.shape
    H = HW // W

    # --- noise injection + InstanceNorm2d (affine=False, eps=1e-5), f32 ------
    xn = x_ref[...] + ns_ref[...] * noise_ref[...]          # (N*C, HW)
    mu = jnp.mean(xn, axis=1, keepdims=True)
    xc = xn - mu
    var = jnp.mean(xc * xc, axis=1, keepdims=True)
    xhat = xc * lax.rsqrt(var + 1e-5)

    # --- conv (mean & scale stacked), one batched bf16 MXU matmul ------------
    # lat[(n,hc), c2, wc] = sum_k w2[c2, k] * patches[(n,hc), k, wc]
    w_b = jnp.broadcast_to(w_ref[...][None, :, :], (B1, C2, Kp))
    lat = jnp.einsum('bck,bkw->bcw', w_b, p_ref[...],
                     preferred_element_type=jnp.float32)     # (B1, C2, Wc) f32
    lat = lat + b_ref[...][None, :, :]                       # bias in f32

    # --- separable bilinear upsample: width pass on the MXU (bf16 x bf16) ----
    lx_b = jnp.broadcast_to(lxT_ref[...][None, :, :], (B1, Wc, W))
    x1 = jnp.einsum('bcw,bwW->bcW', lat.astype(jnp.bfloat16), lx_b,
                    preferred_element_type=jnp.float32)      # (B1, C2, W) f32

    # --- height pass: exact static two-tap lerp, scattered into VMEM scratch -
    # Coefficients are trace-time Python constants (H, Hc static); stores are
    # aligned static slices -> no in-kernel concatenates.
    hcoef = _lerp_coeffs(H, Hc)
    for h in range(H):
        i0, f = hcoef[h]
        lane = slice(h * W, (h + 1) * W)
        for n in range(N):
            a = x1[n * Hc + i0]                              # (2C, W)
            if f == 0.0:
                r = a
            else:
                r = (1.0 - f) * a + f * x1[n * Hc + i0 + 1]
            rows = slice(n * C, (n + 1) * C)
            mean_s[rows, lane] = r[:C]
            scale_s[rows, lane] = r[C:]

    # --- x = tanh(mean + scale * x_hat), single lane-dense store -------------
    o_ref[...] = jnp.tanh(mean_s[...] + scale_s[...] * xhat).astype(o_ref.dtype)


# ----------------------------------------------------------------------------
# Glue: interpolation matrix, im2col, wrapper.
# ----------------------------------------------------------------------------
def interp_matrix(out_size, in_size, dtype=jnp.float32):
    """Row-stochastic bilinear interp matrix, PyTorch align_corners=True."""
    if in_size == 1:
        return jnp.ones((out_size, 1), dtype)
    i = jnp.arange(out_size, dtype=jnp.float32)
    src = i * (in_size - 1) / (out_size - 1)
    i0 = jnp.clip(jnp.floor(src).astype(jnp.int32), 0, in_size - 2)
    frac = src - i0.astype(jnp.float32)
    rows = jnp.arange(out_size)
    m = jnp.zeros((out_size, in_size), dtype)
    m = m.at[rows, i0].add(1.0 - frac)
    m = m.at[rows, i0 + 1].add(frac)
    return m


def im2col_patches(z, ksz, pad):
    """z: (N, Cl, Hz, Wz) -> (N, Cl*ksz*ksz, Hc, Wc), taps ordered (c, p, q)."""
    N, Cl, Hz, Wz = z.shape
    Hc = Hz + 2 * pad - ksz + 1
    Wc = Wz + 2 * pad - ksz + 1
    z_pad = jnp.pad(z, ((0, 0), (0, 0), (pad, pad), (pad, pad)))
    cols = [
        z_pad[:, :, p : p + Hc, q : q + Wc]
        for p in range(ksz)
        for q in range(ksz)
    ]
    patches = jnp.stack(cols, axis=2)                 # (N, Cl, k*k, Hc, Wc)
    return patches.reshape(N, Cl * ksz * ksz, Hc, Wc)


def noisy_adain_pallas(x, z, params, noise, *, kernel_size=5):
    """x: (N, C, H, W), z: (N, Cl, Hz, Wz).  Returns (out, z) like the module."""
    w_mean, b_mean, w_scale, b_scale, noise_scale = params
    N, C, H, W = x.shape
    _, Cl, Hz, Wz = z.shape
    HW = H * W
    pad = kernel_size // 2           # "same" padding (module hard-codes 2 for k=5)
    Hc = Hz + 2 * pad - kernel_size + 1
    Wc = Wz + 2 * pad - kernel_size + 1
    K = Cl * kernel_size * kernel_size
    Kp = _round_up(K, 8)             # sublane-aligned contraction dim
    C2 = 2 * C

    # Stacked conv weights/biases [to_mean; to_scale]; weights in bf16 for MXU.
    w2 = jnp.concatenate(
        [w_mean.reshape(C, K), w_scale.reshape(C, K)], axis=0).astype(jnp.float32)
    w2 = jnp.pad(w2, ((0, 0), (0, Kp - K))).astype(jnp.bfloat16)       # (2C, Kp)
    b2 = jnp.concatenate([b_mean, b_scale]).reshape(C2, 1).astype(jnp.float32)

    # im2col patches, batched over (n, hc): (N*Hc, Kp, Wc), bf16.
    patches = im2col_patches(z.astype(jnp.float32), kernel_size, pad)   # (N, K, Hc, Wc)
    patches = jnp.pad(patches, ((0, 0), (0, Kp - K), (0, 0), (0, 0)))
    patches = jnp.transpose(patches, (0, 2, 1, 3)).reshape(N * Hc, Kp, Wc)
    patches = patches.astype(jnp.bfloat16)

    # Width bilinear upsample matrix (transposed), bf16. Height handled in-kernel.
    LxT = interp_matrix(W, Wc).T.astype(jnp.bfloat16)                   # (Wc, W)

    # x / noise / noise_scale in (n, c)-row 2D layout; noise is shared across
    # the batch in the module, so broadcast it here (pure layout plumbing).
    x_f = x.reshape(N * C, HW).astype(jnp.float32)
    noise_f = jnp.broadcast_to(noise.reshape(1, C, HW),
                               (N, C, HW)).reshape(N * C, HW).astype(jnp.float32)
    ns_f = jnp.broadcast_to(noise_scale.reshape(1, C, 1),
                            (N, C, 1)).reshape(N * C, 1).astype(jnp.float32)

    out = pl.pallas_call(
        noisy_adain_fused_kernel,
        out_shape=jax.ShapeDtypeStruct((N * C, HW), jnp.float32),
        grid=(1,),
        in_specs=[
            pl.BlockSpec((N * C, HW), lambda i: (0, 0)),
            pl.BlockSpec((N * C, HW), lambda i: (0, 0)),
            pl.BlockSpec((N * C, 1), lambda i: (0, 0)),
            pl.BlockSpec((C2, Kp), lambda i: (0, 0)),
            pl.BlockSpec((C2, 1), lambda i: (0, 0)),
            pl.BlockSpec((N * Hc, Kp, Wc), lambda i: (0, 0, 0)),
            pl.BlockSpec((Wc, W), lambda i: (0, 0)),
        ],
        out_specs=pl.BlockSpec((N * C, HW), lambda i: (0, 0)),
        scratch_shapes=[
            pltpu.VMEM((N * C, HW), jnp.float32),   # mean_s
            pltpu.VMEM((N * C, HW), jnp.float32),   # scale_s
        ],
        compiler_params=pltpu.CompilerParams(
            dimension_semantics=("arbitrary",)),
    )(x_f, noise_f, ns_f, w2, b2, patches, LxT)

    return out.reshape(N, C, H, W), z


# ----------------------------------------------------------------------------
# Pure-JAX f32 reference (same math, independent conv path) for verification.
# ----------------------------------------------------------------------------
def noisy_adain_reference(x, z, params, noise, *, kernel_size=5):
    w_mean, b_mean, w_scale, b_scale, noise_scale = params
    N, C, H, W = x.shape
    pad = kernel_size // 2
    dn = ("NCHW", "OIHW", "NCHW")
    conv_m = lax.conv_general_dilated(
        z, w_mean, (1, 1), ((pad, pad), (pad, pad)), dimension_numbers=dn
    ) + b_mean[None, :, None, None]
    conv_s = lax.conv_general_dilated(
        z, w_scale, (1, 1), ((pad, pad), (pad, pad)), dimension_numbers=dn
    ) + b_scale[None, :, None, None]
    Hc, Wc = conv_m.shape[2], conv_m.shape[3]
    Ly = interp_matrix(H, Hc)
    Lx = interp_matrix(W, Wc)
    up_m = jnp.einsum("hj,ncjk,wk->nchw", Ly, conv_m, Lx)
    up_s = jnp.einsum("hj,ncjk,wk->nchw", Ly, conv_s, Lx)
    xn = x + noise_scale * noise
    mu = jnp.mean(xn, axis=(2, 3), keepdims=True)
    var = jnp.mean((xn - mu) ** 2, axis=(2, 3), keepdims=True)
    xhat = (xn - mu) / jnp.sqrt(var + 1e-5)
    return jnp.tanh(up_m + up_s * xhat), z


if __name__ == "__main__":
    # Small shapes consistent with the module:
    #   input_shape=(16,16), channels=4, latent_channels=4, kernel_size=5
    N, C, Cl = 2, 4, 4
    H, W = 16, 16          # input_shape
    Hz, Wz = 8, 8          # latent spatial resolution

    key = jax.random.PRNGKey(0)
    k = jax.random.split(key, 8)
    x = jax.random.normal(k[0], (N, C, H, W), jnp.float32)
    z = jax.random.normal(k[1], (N, Cl, Hz, Wz), jnp.float32)

    # Deterministic "parameters" (module __init__ shapes, id_init=False).
    noise_scale = jax.random.normal(k[2], (1, C, 1, 1), jnp.float32)
    w_mean = jax.random.normal(k[3], (C, Cl, 5, 5), jnp.float32) * 0.1
    b_mean = jax.random.normal(k[4], (C,), jnp.float32) * 0.1
    w_scale = jax.random.normal(k[5], (C, Cl, 5, 5), jnp.float32) * 0.1
    b_scale = jax.random.normal(k[6], (C,), jnp.float32) * 0.1
    params = (w_mean, b_mean, w_scale, b_scale, noise_scale)

    # The forward's torch.randn(1, C, *input_shape) noise (shared over batch).
    noise = jax.random.normal(k[7], (1, C, H, W), jnp.float32)

    out, z_out = noisy_adain_pallas(x, z, params, noise)
    out = jax.block_until_ready(out)

    ref, _ = noisy_adain_reference(x, z, params, noise)
    # bf16 MXU operands with f32 accumulation (per performance review) => the
    # tight 1e-4 f32 tolerance no longer applies; 5e-2 abs covers the bf16
    # rounding of the K=100 conv contraction plus the width-upsample matmul.
    err = float(jnp.max(jnp.abs(out - ref)))
    assert err < 5e-2, f"mismatch vs reference: max abs err = {err}"
    assert out.shape == (N, C, H, W) and z_out.shape == z.shape

    print("KERNEL_OK")
</pallas_src>

<mosaic_0001>
module attributes {stable_mosaic.version = 11 : i64} {
  func.func @noisy_adain_fused_kernel(%arg0: i32, %arg1: memref<8x256xf32, #tpu.memory_space<vmem>>, %arg2: memref<8x256xf32, #tpu.memory_space<vmem>>, %arg3: memref<8x1xf32, #tpu.memory_space<vmem>>, %arg4: memref<8x104xbf16, #tpu.memory_space<vmem>>, %arg5: memref<8x1xf32, #tpu.memory_space<vmem>>, %arg6: memref<16x104x8xbf16, #tpu.memory_space<vmem>>, %arg7: memref<8x16xbf16, #tpu.memory_space<vmem>>, %arg8: memref<8x256xf32, #tpu.memory_space<vmem>>, %arg9: memref<8x256xf32, #tpu.memory_space<vmem>>, %arg10: memref<8x256xf32, #tpu.memory_space<vmem>>) attributes {dimension_semantics = [#tpu.dimension_semantics<arbitrary>], iteration_bounds = array<i64: 1>, scalar_prefetch = 0 : i64, scratch_operands = 2 : i64, tpu.core_type = #tpu.core_type<tc>, window_params = [{pipeline_mode = #tpu.pipeline_mode<synchronous>, transform_indices = @transform_0, window_bounds = array<i64: 8, 256>}, {pipeline_mode = #tpu.pipeline_mode<synchronous>, transform_indices = @transform_1, window_bounds = array<i64: 8, 256>}, {pipeline_mode = #tpu.pipeline_mode<synchronous>, transform_indices = @transform_2, window_bounds = array<i64: 8, 1>}, {pipeline_mode = #tpu.pipeline_mode<synchronous>, transform_indices = @transform_3, window_bounds = array<i64: 8, 104>}, {pipeline_mode = #tpu.pipeline_mode<synchronous>, transform_indices = @transform_4, window_bounds = array<i64: 8, 1>}, {pipeline_mode = #tpu.pipeline_mode<synchronous>, transform_indices = @transform_5, window_bounds = array<i64: 16, 104, 8>}, {pipeline_mode = #tpu.pipeline_mode<synchronous>, transform_indices = @transform_6, window_bounds = array<i64: 8, 16>}, {pipeline_mode = #tpu.pipeline_mode<synchronous>, transform_indices = @transform_7, window_bounds = array<i64: 8, 256>}]} {
    %c0 = arith.constant 0 : index
    %c0_0 = arith.constant 0 : index
    %0 = vector.load %arg1[%c0, %c0_0] : memref<8x256xf32, #tpu.memory_space<vmem>>, vector<8x256xf32>
    %c0_1 = arith.constant 0 : index
    %c0_2 = arith.constant 0 : index
    %1 = vector.load %arg3[%c0_1, %c0_2] : memref<8x1xf32, #tpu.memory_space<vmem>>, vector<8x1xf32>
    %c0_3 = arith.constant 0 : index
    %c0_4 = arith.constant 0 : index
    %2 = vector.load %arg2[%c0_3, %c0_4] : memref<8x256xf32, #tpu.memory_space<vmem>>, vector<8x256xf32>
    %3 = vector.broadcast %1 : vector<8x1xf32> to vector<8x256xf32>
    %4 = arith.mulf %3, %2 : vector<8x256xf32>
    %5 = arith.addf %0, %4 : vector<8x256xf32>
    %cst = arith.constant dense<0.000000e+00> : vector<8xf32>
    %6 = vector.multi_reduction <add>, %5, %cst [1] : vector<8x256xf32> to vector<8xf32>
    %7 = vector.shape_cast %6 : vector<8xf32> to vector<8x1xf32>
    %cst_5 = arith.constant 2.560000e+02 : f32
    %8 = vector.broadcast %cst_5 : f32 to vector<8x1xf32>
    %9 = arith.divf %7, %8 : vector<8x1xf32>
    %10 = vector.broadcast %9 : vector<8x1xf32> to vector<8x256xf32>
    %11 = arith.subf %5, %10 : vector<8x256xf32>
    %12 = arith.mulf %11, %11 : vector<8x256xf32>
    %cst_6 = arith.constant dense<0.000000e+00> : vector<8xf32>
    %13 = vector.multi_reduction <add>, %12, %cst_6 [1] : vector<8x256xf32> to vector<8xf32>
    %14 = vector.shape_cast %13 : vector<8xf32> to vector<8x1xf32>
    %cst_7 = arith.constant 2.560000e+02 : f32
    %15 = vector.broadcast %cst_7 : f32 to vector<8x1xf32>
    %16 = arith.divf %14, %15 : vector<8x1xf32>
    %cst_8 = arith.constant 9.99999974E-6 : f32
    %17 = vector.broadcast %cst_8 : f32 to vector<8x1xf32>
    %18 = arith.addf %16, %17 : vector<8x1xf32>
    %19 = math.rsqrt %18 : vector<8x1xf32>
    %20 = vector.broadcast %19 : vector<8x1xf32> to vector<8x256xf32>
    %21 = arith.mulf %11, %20 : vector<8x256xf32>
    %c0_9 = arith.constant 0 : index
    %c0_10 = arith.constant 0 : index
    %22 = vector.load %arg4[%c0_9, %c0_10] : memref<8x104xbf16, #tpu.memory_space<vmem>>, vector<8x104xbf16>
    %23 = vector.shape_cast %22 : vector<8x104xbf16> to vector<1x8x104xbf16>
    %24 = vector.shape_cast %23 : vector<1x8x104xbf16> to vector<1x8x104xbf16>
    %25 = vector.broadcast %24 : vector<1x8x104xbf16> to vector<16x8x104xbf16>
    %c0_11 = arith.constant 0 : index
    %c0_12 = arith.constant 0 : index
    %c0_13 = arith.constant 0 : index
    %26 = vector.load %arg6[%c0_11, %c0_12, %c0_13] : memref<16x104x8xbf16, #tpu.memory_space<vmem>>, vector<16x104x8xbf16>
    "tpu.trace_start"() <{level = 10 : i32, message = "bck,bkw->bcw"}> : () -> ()
    %cst_14 = arith.constant dense<0.000000e+00> : vector<16x8x8xf32>
    %27 = tpu.matmul %25, %26, %cst_14 {dimension_numbers = #tpu.dot_dimension_numbers<[2], [1], [1], [2], [0, 0, 0, 1, 1, 2], [0], [0]>} : vector<16x8x104xbf16>, vector<16x104x8xbf16>, vector<16x8x8xf32> -> vector<16x8x8xf32>
    "tpu.trace_stop"() : () -> ()
    %c0_15 = arith.constant 0 : index
    %c0_16 = arith.constant 0 : index
    %28 = vector.load %arg5[%c0_15, %c0_16] : memref<8x1xf32, #tpu.memory_space<vmem>>, vector<8x1xf32>
    %29 = vector.shape_cast %28 : vector<8x1xf32> to vector<1x8x1xf32>
    %30 = vector.broadcast %29 : vector<1x8x1xf32> to vector<16x8x8xf32>
    %31 = arith.addf %27, %30 : vector<16x8x8xf32>
    %c0_17 = arith.constant 0 : index
    %c0_18 = arith.constant 0 : index
    %32 = vector.load %arg7[%c0_17, %c0_18] : memref<8x16xbf16, #tpu.memory_space<vmem>>, vector<8x16xbf16>
    %33 = vector.shape_cast %32 : vector<8x16xbf16> to vector<1x8x16xbf16>
    %34 = vector.shape_cast %33 : vector<1x8x16xbf16> to vector<1x8x16xbf16>
    %35 = vector.broadcast %34 : vector<1x8x16xbf16> to vector<16x8x16xbf16>
    %36 = arith.truncf %31 : vector<16x8x8xf32> to vector<16x8x8xbf16>
    "tpu.trace_start"() <{level = 10 : i32, message = "bcw,bwW->bcW"}> : () -> ()
    %cst_19 = arith.constant dense<0.000000e+00> : vector<16x8x16xf32>
    %37 = tpu.matmul %36, %35, %cst_19 {dimension_numbers = #tpu.dot_dimension_numbers<[2], [1], [1], [2], [0, 0, 0, 1, 1, 2], [0], [0]>} : vector<16x8x8xbf16>, vector<16x8x16xbf16>, vector<16x8x16xf32> -> vector<16x8x16xf32>
    "tpu.trace_stop"() : () -> ()
    %38 = vector.extract_strided_slice %37 {offsets = [0, 0, 0], sizes = [1, 8, 16], strides = [1, 1, 1]} : vector<16x8x16xf32> to vector<1x8x16xf32>
    %39 = vector.shape_cast %38 : vector<1x8x16xf32> to vector<8x16xf32>
    %40 = vector.extract_strided_slice %39 {offsets = [0, 0], sizes = [4, 16], strides = [1, 1]} : vector<8x16xf32> to vector<4x16xf32>
    %c0_20 = arith.constant 0 : index
    %c0_21 = arith.constant 0 : index
    %41 = vector.load %arg9[%c0_20, %c0_21] : memref<8x256xf32, #tpu.memory_space<vmem>>, vector<4x16xf32>
    tpu.vector_store %arg9[%c0_20, %c0_21], %40 {strides = array<i32>} : memref<8x256xf32, #tpu.memory_space<vmem>>, vector<4x16xf32>,
    %42 = vector.extract_strided_slice %39 {offsets = [4, 0], sizes = [4, 16], strides = [1, 1]} : vector<8x16xf32> to vector<4x16xf32>
    %c0_22 = arith.constant 0 : index
    %c0_23 = arith.constant 0 : index
    %43 = vector.load %arg10[%c0_22, %c0_23] : memref<8x256xf32, #tpu.memory_space<vmem>>, vector<4x16xf32>
    tpu.vector_store %arg10[%c0_22, %c0_23], %42 {strides = array<i32>} : memref<8x256xf32, #tpu.memory_space<vmem>>, vector<4x16xf32>,
    %44 = vector.extract_strided_slice %37 {offsets = [8, 0, 0], sizes = [1, 8, 16], strides = [1, 1, 1]} : vector<16x8x16xf32> to vector<1x8x16xf32>
    %45 = vector.shape_cast %44 : vector<1x8x16xf32> to vector<8x16xf32>
    %46 = vector.extract_strided_slice %45 {offsets = [0, 0], sizes = [4, 16], strides = [1, 1]} : vector<8x16xf32> to vector<4x16xf32>
    %c4 = arith.constant 4 : index
    %c0_24 = arith.constant 0 : index
    %47 = vector.load %arg9[%c4, %c0_24] : memref<8x256xf32, #tpu.memory_space<vmem>>, vector<4x16xf32>
    tpu.vector_store %arg9[%c4, %c0_24], %46 {strides = array<i32>} : memref<8x256xf32, #tpu.memory_space<vmem>>, vector<4x16xf32>,
    %48 = vector.extract_strided_slice %45 {offsets = [4, 0], sizes = [4, 16], strides = [1, 1]} : vector<8x16xf32> to vector<4x16xf32>
    %c4_25 = arith.constant 4 : index
    %c0_26 = arith.constant 0 : index
    %49 = vector.load %arg10[%c4_25, %c0_26] : memref<8x256xf32, #tpu.memory_space<vmem>>, vector<4x16xf32>
    tpu.vector_store %arg10[%c4_25, %c0_26], %48 {strides = array<i32>} : memref<8x256xf32, #tpu.memory_space<vmem>>, vector<4x16xf32>,
    %50 = vector.extract_strided_slice %37 {offsets = [0, 0, 0], sizes = [1, 8, 16], strides = [1, 1, 1]} : vector<16x8x16xf32> to vector<1x8x16xf32>
    %51 = vector.shape_cast %50 : vector<1x8x16xf32> to vector<8x16xf32>
    %cst_27 = arith.constant 0.533333361 : f32
    %52 = vector.broadcast %cst_27 : f32 to vector<8x16xf32>
    %53 = arith.mulf %52, %51 : vector<8x16xf32>
    %54 = vector.extract_strided_slice %37 {offsets = [1, 0, 0], sizes = [1, 8, 16], strides = [1, 1, 1]} : vector<16x8x16xf32> to vector<1x8x16xf32>
    %55 = vector.shape_cast %54 : vector<1x8x16xf32> to vector<8x16xf32>
    %cst_28 = arith.constant 0.466666669 : f32
    %56 = vector.broadcast %cst_28 : f32 to vector<8x16xf32>
    %57 = arith.mulf %56, %55 : vector<8x16xf32>
    %58 = arith.addf %53, %57 : vector<8x16xf32>
    %59 = vector.extract_strided_slice %58 {offsets = [0, 0], sizes = [4, 16], strides = [1, 1]} : vector<8x16xf32> to vector<4x16xf32>
    %c0_29 = arith.constant 0 : index
    %c16 = arith.constant 16 : index
    %60 = vector.load %arg9[%c0_29, %c16] : memref<8x256xf32, #tpu.memory_space<vmem>>, vector<4x16xf32>
    tpu.vector_store %arg9[%c0_29, %c16], %59 {strides = array<i32>} : memref<8x256xf32, #tpu.memory_space<vmem>>, vector<4x16xf32>,
    %61 = vector.extract_strided_slice %58 {offsets = [4, 0], sizes = [4, 16], strides = [1, 1]} : vector<8x16xf32> to vector<4x16xf32>
    %c0_30 = arith.constant 0 : index
    %c16_31 = arith.constant 16 : index
    %62 = vector.load %arg10[%c0_30, %c16_31] : memref<8x256xf32, #tpu.memory_space<vmem>>, vector<4x16xf32>
    tpu.vector_store %arg10[%c0_30, %c16_31], %61 {strides = array<i32>} : memref<8x256xf32, #tpu.memory_space<vmem>>, vector<4x16xf32>,
    %63 = vector.extract_strided_slice %37 {offsets = [8, 0, 0], sizes = [1, 8, 16], strides = [1, 1, 1]} : vector<16x8x16xf32> to vector<1x8x16xf32>
    %64 = vector.shape_cast %63 : vector<1x8x16xf32> to vector<8x16xf32>
    %cst_32 = arith.constant 0.533333361 : f32
    %65 = vector.broadcast %cst_32 : f32 to vector<8x16xf32>
    %66 = arith.mulf %65, %64 : vector<8x16xf32>
    %67 = vector.extract_strided_slice %37 {offsets = [9, 0, 0], sizes = [1, 8, 16], strides = [1, 1, 1]} : vector<16x8x16xf32> to vector<1x8x16xf32>
    %68 = vector.shape_cast %67 : vector<1x8x16xf32> to vector<8x16xf32>
    %cst_33 = arith.constant 0.466666669 : f32
    %69 = vector.broadcast %cst_33 : f32 to vector<8x16xf32>
    %70 = arith.mulf %69, %68 : vector<8x16xf32>
    %71 = arith.addf %66, %70 : vector<8x16xf32>
    %72 = vector.extract_strided_slice %71 {offsets = [0, 0], sizes = [4, 16], strides = [1, 1]} : vector<8x16xf32> to vector<4x16xf32>
    %c4_34 = arith.constant 4 : index
    %c16_35 = arith.constant 16 : index
    %73 = vector.load %arg9[%c4_34, %c16_35] : memref<8x256xf32, #tpu.memory_space<vmem>>, vector<4x16xf32>
    tpu.vector_store %arg9[%c4_34, %c16_35], %72 {strides = array<i32>} : memref<8x256xf32, #tpu.memory_space<vmem>>, vector<4x16xf32>,
    %74 = vector.extract_strided_slice %71 {offsets = [4, 0], sizes = [4, 16], strides = [1, 1]} : vector<8x16xf32> to vector<4x16xf32>
    %c4_36 = arith.constant 4 : index
    %c16_37 = arith.constant 16 : index
    %75 = vector.load %arg10[%c4_36, %c16_37] : memref<8x256xf32, #tpu.memory_space<vmem>>, vector<4x16xf32>
    tpu.vector_store %arg10[%c4_36, %c16_37], %74 {strides = array<i32>} : memref<8x256xf32, #tpu.memory_space<vmem>>, vector<4x16xf32>,
    %76 = vector.extract_strided_slice %37 {offsets = [0, 0, 0], sizes = [1, 8, 16], strides = [1, 1, 1]} : vector<16x8x16xf32> to vector<1x8x16xf32>
    %77 = vector.shape_cast %76 : vector<1x8x16xf32> to vector<8x16xf32>
    %cst_38 = arith.constant 0.0666666701 : f32
    %78 = vector.broadcast %cst_38 : f32 to vector<8x16xf32>
    %79 = arith.mulf %78, %77 : vector<8x16xf32>
    %80 = vector.extract_strided_slice %37 {offsets = [1, 0, 0], sizes = [1, 8, 16], strides = [1, 1, 1]} : vector<16x8x16xf32> to vector<1x8x16xf32>
    %81 = vector.shape_cast %80 : vector<1x8x16xf32> to vector<8x16xf32>
    %cst_39 = arith.constant 0.933333337 : f32
    %82 = vector.broadcast %cst_39 : f32 to vector<8x16xf32>
    %83 = arith.mulf %82, %81 : vector<8x16xf32>
    %84 = arith.addf %79, %83 : vector<8x16xf32>
    %85 = vector.extract_strided_slice %84 {offsets = [0, 0], sizes = [4, 16], strides = [1, 1]} : vector<8x16xf32> to vector<4x16xf32>
    %c0_40 = arith.constant 0 : index
    %c32 = arith.constant 32 : index
    %86 = vector.load %arg9[%c0_40, %c32] : memref<8x256xf32, #tpu.memory_space<vmem>>, vector<4x16xf32>
    tpu.vector_store %arg9[%c0_40, %c32], %85 {strides = array<i32>} : memref<8x256xf32, #tpu.memory_space<vmem>>, vector<4x16xf32>,
    %87 = vector.extract_strided_slice %84 {offsets = [4, 0], sizes = [4, 16], strides = [1, 1]} : vector<8x16xf32> to vector<4x16xf32>
    %c0_41 = arith.constant 0 : index
    %c32_42 = arith.constant 32 : index
    %88 = vector.load %arg10[%c0_41, %c32_42] : memref<8x256xf32, #tpu.memory_space<vmem>>, vector<4x16xf32>
    tpu.vector_store %arg10[%c0_41, %c32_42], %87 {strides = array<i32>} : memref<8x256xf32, #tpu.memory_space<vmem>>, vector<4x16xf32>,
    %89 = vector.extract_strided_slice %37 {offsets = [8, 0, 0], sizes = [1, 8, 16], strides = [1, 1, 1]} : vector<16x8x16xf32> to vector<1x8x16xf32>
    %90 = vector.shape_cast %89 : vector<1x8x16xf32> to vector<8x16xf32>
    %cst_43 = arith.constant 0.0666666701 : f32
    %91 = vector.broadcast %cst_43 : f32 to vector<8x16xf32>
    %92 = arith.mulf %91, %90 : vector<8x16xf32>
    %93 = vector.extract_strided_slice %37 {offsets = [9, 0, 0], sizes = [1, 8, 16], strides = [1, 1, 1]} : vector<16x8x16xf32> to vector<1x8x16xf32>
    %94 = vector.shape_cast %93 : vector<1x8x16xf32> to vector<8x16xf32>
    %cst_44 = arith.constant 0.933333337 : f32
    %95 = vector.broadcast %cst_44 : f32 to vector<8x16xf32>
    %96 = arith.mulf %95, %94 : vector<8x16xf32>
    %97 = arith.addf %92, %96 : vector<8x16xf32>
    %98 = vector.extract_strided_slice %97 {offsets = [0, 0], sizes = [4, 16], strides = [1, 1]} : vector<8x16xf32> to vector<4x16xf32>
    %c4_45 = arith.constant 4 : index
    %c32_46 = arith.constant 32 : index
    %99 = vector.load %arg9[%c4_45, %c32_46] : memref<8x256xf32, #tpu.memory_space<vmem>>, vector<4x16xf32>
    tpu.vector_store %arg9[%c4_45, %c32_46], %98 {strides = array<i32>} : memref<8x256xf32, #tpu.memory_space<vmem>>, vector<4x16xf32>,
    %100 = vector.extract_strided_slice %97 {offsets = [4, 0], sizes = [4, 16], strides = [1, 1]} : vector<8x16xf32> to vector<4x16xf32>
    %c4_47 = arith.constant 4 : index
    %c32_48 = arith.constant 32 : index
    %101 = vector.load %arg10[%c4_47, %c32_48] : memref<8x256xf32, #tpu.memory_space<vmem>>, vector<4x16xf32>
    tpu.vector_store %arg10[%c4_47, %c32_48], %100 {strides = array<i32>} : memref<8x256xf32, #tpu.memory_space<vmem>>, vector<4x16xf32>,
    %102 = vector.extract_strided_slice %37 {offsets = [1, 0, 0], sizes = [1, 8, 16], strides = [1, 1, 1]} : vector<16x8x16xf32> to vector<1x8x16xf32>
    %103 = vector.shape_cast %102 : vector<1x8x16xf32> to vector<8x16xf32>
    %cst_49 = arith.constant 6.000000e-01 : f32
    %104 = vector.broadcast %cst_49 : f32 to vector<8x16xf32>
    %105 = arith.mulf %104, %103 : vector<8x16xf32>
    %106 = vector.extract_strided_slice %37 {offsets = [2, 0, 0], sizes = [1, 8, 16], strides = [1, 1, 1]} : vector<16x8x16xf32> to vector<1x8x16xf32>
    %107 = vector.shape_cast %106 : vector<1x8x16xf32> to vector<8x16xf32>
    %cst_50 = arith.constant 4.000000e-01 : f32
    %108 = vector.broadcast %cst_50 : f32 to vector<8x16xf32>
    %109 = arith.mulf %108, %107 : vector<8x16xf32>
    %110 = arith.addf %105, %109 : vector<8x16xf32>
    %111 = vector.extract_strided_slice %110 {offsets = [0, 0], sizes = [4, 16], strides = [1, 1]} : vector<8x16xf32> to vector<4x16xf32>
    %c0_51 = arith.constant 0 : index
    %c48 = arith.constant 48 : index
    %112 = vector.load %arg9[%c0_51, %c48] : memref<8x256xf32, #tpu.memory_space<vmem>>, vector<4x16xf32>
    tpu.vector_store %arg9[%c0_51, %c48], %111 {strides = array<i32>} : memref<8x256xf32, #tpu.memory_space<vmem>>, vector<4x16xf32>,
    %113 = vector.extract_strided_slice %110 {offsets = [4, 0], sizes = [4, 16], strides = [1, 1]} : vector<8x16xf32> to vector<4x16xf32>
    %c0_52 = arith.constant 0 : index
    %c48_53 = arith.constant 48 : index
    %114 = vector.load %arg10[%c0_52, %c48_53] : memref<8x256xf32, #tpu.memory_space<vmem>>, vector<4x16xf32>
    tpu.vector_store %arg10[%c0_52, %c48_53], %113 {strides = array<i32>} : memref<8x256xf32, #tpu.memory_space<vmem>>, vector<4x16xf32>,
    %115 = vector.extract_strided_slice %37 {offsets = [9, 0, 0], sizes = [1, 8, 16], strides = [1, 1, 1]} : vector<16x8x16xf32> to vector<1x8x16xf32>
    %116 = vector.shape_cast %115 : vector<1x8x16xf32> to vector<8x16xf32>
    %cst_54 = arith.constant 6.000000e-01 : f32
    %117 = vector.broadcast %cst_54 : f32 to vector<8x16xf32>
    %118 = arith.mulf %117, %116 : vector<8x16xf32>
    %119 = vector.extract_strided_slice %37 {offsets = [10, 0, 0], sizes = [1, 8, 16], strides = [1, 1, 1]} : vector<16x8x16xf32> to vector<1x8x16xf32>
    %120 = vector.shape_cast %119 : vector<1x8x16xf32> to vector<8x16xf32>
    %cst_55 = arith.constant 4.000000e-01 : f32
    %121 = vector.broadcast %cst_55 : f32 to vector<8x16xf32>
    %122 = arith.mulf %121, %120 : vector<8x16xf32>
    %123 = arith.addf %118, %122 : vector<8x16xf32>
    %124 = vector.extract_strided_slice %123 {offsets = [0, 0], sizes = [4, 16], strides = [1, 1]} : vector<8x16xf32> to vector<4x16xf32>
    %c4_56 = arith.constant 4 : index
    %c48_57 = arith.constant 48 : index
    %125 = vector.load %arg9[%c4_56, %c48_57] : memref<8x256xf32, #tpu.memory_space<vmem>>, vector<4x16xf32>
    tpu.vector_store %arg9[%c4_56, %c48_57], %124 {strides = array<i32>} : memref<8x256xf32, #tpu.memory_space<vmem>>, vector<4x16xf32>,
    %126 = vector.extract_strided_slice %123 {offsets = [4, 0], sizes = [4, 16], strides = [1, 1]} : vector<8x16xf32> to vector<4x16xf32>
    %c4_58 = arith.constant 4 : index
    %c48_59 = arith.constant 48 : index
    %127 = vector.load %arg10[%c4_58, %c48_59] : memref<8x256xf32, #tpu.memory_space<vmem>>, vector<4x16xf32>
    tpu.vector_store %arg10[%c4_58, %c48_59], %126 {strides = array<i32>} : memref<8x256xf32, #tpu.memory_space<vmem>>, vector<4x16xf32>,
    %128 = vector.extract_strided_slice %37 {offsets = [1, 0, 0], sizes = [1, 8, 16], strides = [1, 1, 1]} : vector<16x8x16xf32> to vector<1x8x16xf32>
    %129 = vector.shape_cast %128 : vector<1x8x16xf32> to vector<8x16xf32>
    %cst_60 = arith.constant 0.13333334 : f32
    %130 = vector.broadcast %cst_60 : f32 to vector<8x16xf32>
    %131 = arith.mulf %130, %129 : vector<8x16xf32>
    %132 = vector.extract_strided_slice %37 {offsets = [2, 0, 0], sizes = [1, 8, 16], strides = [1, 1, 1]} : vector<16x8x16xf32> to vector<1x8x16xf32>
    %133 = vector.shape_cast %132 : vector<1x8x16xf32> to vector<8x16xf32>
    %cst_61 = arith.constant 0.866666674 : f32
    %134 = vector.broadcast %cst_61 : f32 to vector<8x16xf32>
    %135 = arith.mulf %134, %133 : vector<8x16xf32>
    %136 = arith.addf %131, %135 : vector<8x16xf32>
    %137 = vector.extract_strided_slice %136 {offsets = [0, 0], sizes = [4, 16], strides = [1, 1]} : vector<8x16xf32> to vector<4x16xf32>
    %c0_62 = arith.constant 0 : index
    %c64 = arith.constant 64 : index
    %138 = vector.load %arg9[%c0_62, %c64] : memref<8x256xf32, #tpu.memory_space<vmem>>, vector<4x16xf32>
    tpu.vector_store %arg9[%c0_62, %c64], %137 {strides = array<i32>} : memref<8x256xf32, #tpu.memory_space<vmem>>, vector<4x16xf32>,
    %139 = vector.extract_strided_slice %136 {offsets = [4, 0], sizes = [4, 16], strides = [1, 1]} : vector<8x16xf32> to vector<4x16xf32>
    %c0_63 = arith.constant 0 : index
    %c64_64 = arith.constant 64 : index
    %140 = vector.load %arg10[%c0_63, %c64_64] : memref<8x256xf32, #tpu.memory_space<vmem>>, vector<4x16xf32>
    tpu.vector_store %arg10[%c0_63, %c64_64], %139 {strides = array<i32>} : memref<8x256xf32, #tpu.memory_space<vmem>>, vector<4x16xf32>,
    %141 = vector.extract_strided_slice %37 {offsets = [9, 0, 0], sizes = [1, 8, 16], strides = [1, 1, 1]} : vector<16x8x16xf32> to vector<1x8x16xf32>
    %142 = vector.shape_cast %141 : vector<1x8x16xf32> to vector<8x16xf32>
    %cst_65 = arith.constant 0.13333334 : f32
    %143 = vector.broadcast %cst_65 : f32 to vector<8x16xf32>
    %144 = arith.mulf %143, %142 : vector<8x16xf32>
    %145 = vector.extract_strided_slice %37 {offsets = [10, 0, 0], sizes = [1, 8, 16], strides = [1, 1, 1]} : vector<16x8x16xf32> to vector<1x8x16xf32>
    %146 = vector.shape_cast %145 : vector<1x8x16xf32> to vector<8x16xf32>
    %cst_66 = arith.constant 0.866666674 : f32
    %147 = vector.broadcast %cst_66 : f32 to vector<8x16xf32>
    %148 = arith.mulf %147, %146 : vector<8x16xf32>
    %149 = arith.addf %144, %148 : vector<8x16xf32>
    %150 = vector.extract_strided_slice %149 {offsets = [0, 0], sizes = [4, 16], strides = [1, 1]} : vector<8x16xf32> to vector<4x16xf32>
    %c4_67 = arith.constant 4 : index
    %c64_68 = arith.constant 64 : index
    %151 = vector.load %arg9[%c4_67, %c64_68] : memref<8x256xf32, #tpu.memory_space<vmem>>, vector<4x16xf32>
    tpu.vector_store %arg9[%c4_67, %c64_68], %150 {strides = array<i32>} : memref<8x256xf32, #tpu.memory_space<vmem>>, vector<4x16xf32>,
    %152 = vector.extract_strided_slice %149 {offsets = [4, 0], sizes = [4, 16], strides = [1, 1]} : vector<8x16xf32> to vector<4x16xf32>
    %c4_69 = arith.constant 4 : index
    %c64_70 = arith.constant 64 : index
    %153 = vector.load %arg10[%c4_69, %c64_70] : memref<8x256xf32, #tpu.memory_space<vmem>>, vector<4x16xf32>
    tpu.vector_store %arg10[%c4_69, %c64_70], %152 {strides = array<i32>} : memref<8x256xf32, #tpu.memory_space<vmem>>, vector<4x16xf32>,
    %154 = vector.extract_strided_slice %37 {offsets = [2, 0, 0], sizes = [1, 8, 16], strides = [1, 1, 1]} : vector<16x8x16xf32> to vector<1x8x16xf32>
    %155 = vector.shape_cast %154 : vector<1x8x16xf32> to vector<8x16xf32>
    %cst_71 = arith.constant 0.666666686 : f32
    %156 = vector.broadcast %cst_71 : f32 to vector<8x16xf32>
    %157 = arith.mulf %156, %155 : vector<8x16xf32>
    %158 = vector.extract_strided_slice %37 {offsets = [3, 0, 0], sizes = [1, 8, 16], strides = [1, 1, 1]} : vector<16x8x16xf32> to vector<1x8x16xf32>
    %159 = vector.shape_cast %158 : vector<1x8x16xf32> to vector<8x16xf32>
    %cst_72 = arith.constant 0.333333343 : f32
    %160 = vector.broadcast %cst_72 : f32 to vector<8x16xf32>
    %161 = arith.mulf %160, %159 : vector<8x16xf32>
    %162 = arith.addf %157, %161 : vector<8x16xf32>
    %163 = vector.extract_strided_slice %162 {offsets = [0, 0], sizes = [4, 16], strides = [1, 1]} : vector<8x16xf32> to vector<4x16xf32>
    %c0_73 = arith.constant 0 : index
    %c80 = arith.constant 80 : index
    %164 = vector.load %arg9[%c0_73, %c80] : memref<8x256xf32, #tpu.memory_space<vmem>>, vector<4x16xf32>
    tpu.vector_store %arg9[%c0_73, %c80], %163 {strides = array<i32>} : memref<8x256xf32, #tpu.memory_space<vmem>>, vector<4x16xf32>,
    %165 = vector.extract_strided_slice %162 {offsets = [4, 0], sizes = [4, 16], strides = [1, 1]} : vector<8x16xf32> to vector<4x16xf32>
    %c0_74 = arith.constant 0 : index
    %c80_75 = arith.constant 80 : index
    %166 = vector.load %arg10[%c0_74, %c80_75] : memref<8x256xf32, #tpu.memory_space<vmem>>, vector<4x16xf32>
    tpu.vector_store %arg10[%c0_74, %c80_75], %165 {strides = array<i32>} : memref<8x256xf32, #tpu.memory_space<vmem>>, vector<4x16xf32>,
    %167 = vector.extract_strided_slice %37 {offsets = [10, 0, 0], sizes = [1, 8, 16], strides = [1, 1, 1]} : vector<16x8x16xf32> to vector<1x8x16xf32>
    %168 = vector.shape_cast %167 : vector<1x8x16xf32> to vector<8x16xf32>
    %cst_76 = arith.constant 0.666666686 : f32
    %169 = vector.broadcast %cst_76 : f32 to vector<8x16xf32>
    %170 = arith.mulf %169, %168 : vector<8x16xf32>
    %171 = vector.extract_strided_slice %37 {offsets = [11, 0, 0], sizes = [1, 8, 16], strides = [1, 1, 1]} : vector<16x8x16xf32> to vector<1x8x16xf32>
    %172 = vector.shape_cast %171 : vector<1x8x16xf32> to vector<8x16xf32>
    %cst_77 = arith.constant 0.333333343 : f32
    %173 = vector.broadcast %cst_77 : f32 to vector<8x16xf32>
    %174 = arith.mulf %173, %172 : vector<8x16xf32>
    %175 = arith.addf %170, %174 : vector<8x16xf32>
    %176 = vector.extract_strided_slice %175 {offsets = [0, 0], sizes = [4, 16], strides = [1, 1]} : vector<8x16xf32> to vector<4x16xf32>
    %c4_78 = arith.constant 4 : index
    %c80_79 = arith.constant 80 : index
    %177 = vector.load %arg9[%c4_78, %c80_79] : memref<8x256xf32, #tpu.memory_space<vmem>>, vector<4x16xf32>
    tpu.vector_store %arg9[%c4_78, %c80_79], %176 {strides = array<i32>} : memref<8x256xf32, #tpu.memory_space<vmem>>, vector<4x16xf32>,
    %178 = vector.extract_strided_slice %175 {offsets = [4, 0], sizes = [4, 16], strides = [1, 1]} : vector<8x16xf32> to vector<4x16xf32>
    %c4_80 = arith.constant 4 : index
    %c80_81 = arith.constant 80 : index
    %179 = vector.load %arg10[%c4_80, %c80_81] : memref<8x256xf32, #tpu.memory_space<vmem>>, vector<4x16xf32>
    tpu.vector_store %arg10[%c4_80, %c80_81], %178 {strides = array<i32>} : memref<8x256xf32, #tpu.memory_space<vmem>>, vector<4x16xf32>,
    %180 = vector.extract_strided_slice %37 {offsets = [2, 0, 0], sizes = [1, 8, 16], strides = [1, 1, 1]} : vector<16x8x16xf32> to vector<1x8x16xf32>
    %181 = vector.shape_cast %180 : vector<1x8x16xf32> to vector<8x16xf32>
    %cst_82 = arith.constant 2.000000e-01 : f32
    %182 = vector.broadcast %cst_82 : f32 to vector<8x16xf32>
    %183 = arith.mulf %182, %181 : vector<8x16xf32>
    %184 = vector.extract_strided_slice %37 {offsets = [3, 0, 0], sizes = [1, 8, 16], strides = [1, 1, 1]} : vector<16x8x16xf32> to vector<1x8x16xf32>
    %185 = vector.shape_cast %184 : vector<1x8x16xf32> to vector<8x16xf32>
    %cst_83 = arith.constant 8.000000e-01 : f32
    %186 = vector.broadcast %cst_83 : f32 to vector<8x16xf32>
    %187 = arith.mulf %186, %185 : vector<8x16xf32>
    %188 = arith.addf %183, %187 : vector<8x16xf32>
    %189 = vector.extract_strided_slice %188 {offsets = [0, 0], sizes = [4, 16], strides = [1, 1]} : vector<8x16xf32> to vector<4x16xf32>
    %c0_84 = arith.constant 0 : index
    %c96 = arith.constant 96 : index
    %190 = vector.load %arg9[%c0_84, %c96] : memref<8x256xf32, #tpu.memory_space<vmem>>, vector<4x16xf32>
    tpu.vector_store %arg9[%c0_84, %c96], %189 {strides = array<i32>} : memref<8x256xf32, #tpu.memory_space<vmem>>, vector<4x16xf32>,
    %191 = vector.extract_strided_slice %188 {offsets = [4, 0], sizes = [4, 16], strides = [1, 1]} : vector<8x16xf32> to vector<4x16xf32>
    %c0_85 = arith.constant 0 : index
    %c96_86 = arith.constant 96 : index
    %192 = vector.load %arg10[%c0_85, %c96_86] : memref<8x256xf32, #tpu.memory_space<vmem>>, vector<4x16xf32>
    tpu.vector_store %arg10[%c0_85, %c96_86], %191 {strides = array<i32>} : memref<8x256xf32, #tpu.memory_space<vmem>>, vector<4x16xf32>,
    %193 = vector.extract_strided_slice %37 {offsets = [10, 0, 0], sizes = [1, 8, 16], strides = [1, 1, 1]} : vector<16x8x16xf32> to vector<1x8x16xf32>
    %194 = vector.shape_cast %193 : vector<1x8x16xf32> to vector<8x16xf32>
    %cst_87 = arith.constant 2.000000e-01 : f32
    %195 = vector.broadcast %cst_87 : f32 to vector<8x16xf32>
    %196 = arith.mulf %195, %194 : vector<8x16xf32>
    %197 = vector.extract_strided_slice %37 {offsets = [11, 0, 0], sizes = [1, 8, 16], strides = [1, 1, 1]} : vector<16x8x16xf32> to vector<1x8x16xf32>
    %198 = vector.shape_cast %197 : vector<1x8x16xf32> to vector<8x16xf32>
    %cst_88 = arith.constant 8.000000e-01 : f32
    %199 = vector.broadcast %cst_88 : f32 to vector<8x16xf32>
    %200 = arith.mulf %199, %198 : vector<8x16xf32>
    %201 = arith.addf %196, %200 : vector<8x16xf32>
    %202 = vector.extract_strided_slice %201 {offsets = [0, 0], sizes = [4, 16], strides = [1, 1]} : vector<8x16xf32> to vector<4x16xf32>
    %c4_89 = arith.constant 4 : index
    %c96_90 = arith.constant 96 : index
    %203 = vector.load %arg9[%c4_89, %c96_90] : memref<8x256xf32, #tpu.memory_space<vmem>>, vector<4x16xf32>
    tpu.vector_store %arg9[%c4_89, %c96_90], %202 {strides = array<i32>} : memref<8x256xf32, #tpu.memory_space<vmem>>, vector<4x16xf32>,
    %204 = vector.extract_strided_slice %201 {offsets = [4, 0], sizes = [4, 16], strides = [1, 1]} : vector<8x16xf32> to vector<4x16xf32>
    %c4_91 = arith.constant 4 : index
    %c96_92 = arith.constant 96 : index
    %205 = vector.load %arg10[%c4_91, %c96_92] : memref<8x256xf32, #tpu.memory_space<vmem>>, vector<4x16xf32>
    tpu.vector_store %arg10[%c4_91, %c96_92], %204 {strides = array<i32>} : memref<8x256xf32, #tpu.memory_space<vmem>>, vector<4x16xf32>,
    %206 = vector.extract_strided_slice %37 {offsets = [3, 0, 0], sizes = [1, 8, 16], strides = [1, 1, 1]} : vector<16x8x16xf32> to vector<1x8x16xf32>
    %207 = vector.shape_cast %206 : vector<1x8x16xf32> to vector<8x16xf32>
    %cst_93 = arith.constant 0.733333349 : f32
    %208 = vector.broadcast %cst_93 : f32 to vector<8x16xf32>
    %209 = arith.mulf %208, %207 : vector<8x16xf32>
    %210 = vector.extract_strided_slice %37 {offsets = [4, 0, 0], sizes = [1, 8, 16], strides = [1, 1, 1]} : vector<16x8x16xf32> to vector<1x8x16xf32>
    %211 = vector.shape_cast %210 : vector<1x8x16xf32> to vector<8x16xf32>
    %cst_94 = arith.constant 0.266666681 : f32
    %212 = vector.broadcast %cst_94 : f32 to vector<8x16xf32>
    %213 = arith.mulf %212, %211 : vector<8x16xf32>
    %214 = arith.addf %209, %213 : vector<8x16xf32>
    %215 = vector.extract_strided_slice %214 {offsets = [0, 0], sizes = [4, 16], strides = [1, 1]} : vector<8x16xf32> to vector<4x16xf32>
    %c0_95 = arith.constant 0 : index
    %c112 = arith.constant 112 : index
    %216 = vector.load %arg9[%c0_95, %c112] : memref<8x256xf32, #tpu.memory_space<vmem>>, vector<4x16xf32>
    tpu.vector_store %arg9[%c0_95, %c112], %215 {strides = array<i32>} : memref<8x256xf32, #tpu.memory_space<vmem>>, vector<4x16xf32>,
    %217 = vector.extract_strided_slice %214 {offsets = [4, 0], sizes = [4, 16], strides = [1, 1]} : vector<8x16xf32> to vector<4x16xf32>
    %c0_96 = arith.constant 0 : index
    %c112_97 = arith.constant 112 : index
    %218 = vector.load %arg10[%c0_96, %c112_97] : memref<8x256xf32, #tpu.memory_space<vmem>>, vector<4x16xf32>
    tpu.vector_store %arg10[%c0_96, %c112_97], %217 {strides = array<i32>} : memref<8x256xf32, #tpu.memory_space<vmem>>, vector<4x16xf32>,
    %219 = vector.extract_strided_slice %37 {offsets = [11, 0, 0], sizes = [1, 8, 16], strides = [1, 1, 1]} : vector<16x8x16xf32> to vector<1x8x16xf32>
    %220 = vector.shape_cast %219 : vector<1x8x16xf32> to vector<8x16xf32>
    %cst_98 = arith.constant 0.733333349 : f32
    %221 = vector.broadcast %cst_98 : f32 to vector<8x16xf32>
    %222 = arith.mulf %221, %220 : vector<8x16xf32>
    %223 = vector.extract_strided_slice %37 {offsets = [12, 0, 0], sizes = [1, 8, 16], strides = [1, 1, 1]} : vector<16x8x16xf32> to vector<1x8x16xf32>
    %224 = vector.shape_cast %223 : vector<1x8x16xf32> to vector<8x16xf32>
    %cst_99 = arith.constant 0.266666681 : f32
    %225 = vector.broadcast %cst_99 : f32 to vector<8x16xf32>
    %226 = arith.mulf %225, %224 : vector<8x16xf32>
    %227 = arith.addf %222, %226 : vector<8x16xf32>
    %228 = vector.extract_strided_slice %227 {offsets = [0, 0], sizes = [4, 16], strides = [1, 1]} : vector<8x16xf32> to vector<4x16xf32>
    %c4_100 = arith.constant 4 : index
    %c112_101 = arith.constant 112 : index
    %229 = vector.load %arg9[%c4_100, %c112_101] : memref<8x256xf32, #tpu.memory_space<vmem>>, vector<4x16xf32>
    tpu.vector_store %arg9[%c4_100, %c112_101], %228 {strides = array<i32>} : memref<8x256xf32, #tpu.memory_space<vmem>>, vector<4x16xf32>,
    %230 = vector.extract_strided_slice %227 {offsets = [4, 0], sizes = [4, 16], strides = [1, 1]} : vector<8x16xf32> to vector<4x16xf32>
    %c4_102 = arith.constant 4 : index
    %c112_103 = arith.constant 112 : index
    %231 = vector.load %arg10[%c4_102, %c112_103] : memref<8x256xf32, #tpu.memory_space<vmem>>, vector<4x16xf32>
    tpu.vector_store %arg10[%c4_102, %c112_103], %230 {strides = array<i32>} : memref<8x256xf32, #tpu.memory_space<vmem>>, vector<4x16xf32>,
    %232 = vector.extract_strided_slice %37 {offsets = [3, 0, 0], sizes = [1, 8, 16], strides = [1, 1, 1]} : vector<16x8x16xf32> to vector<1x8x16xf32>
    %233 = vector.shape_cast %232 : vector<1x8x16xf32> to vector<8x16xf32>
    %cst_104 = arith.constant 0.266666681 : f32
    %234 = vector.broadcast %cst_104 : f32 to vector<8x16xf32>
    %235 = arith.mulf %234, %233 : vector<8x16xf32>
    %236 = vector.extract_strided_slice %37 {offsets = [4, 0, 0], sizes = [1, 8, 16], strides = [1, 1, 1]} : vector<16x8x16xf32> to vector<1x8x16xf32>
    %237 = vector.shape_cast %236 : vector<1x8x16xf32> to vector<8x16xf32>
    %cst_105 = arith.constant 0.733333349 : f32
    %238 = vector.broadcast %cst_105 : f32 to vector<8x16xf32>
    %239 = arith.mulf %238, %237 : vector<8x16xf32>
    %240 = arith.addf %235, %239 : vector<8x16xf32>
    %241 = vector.extract_strided_slice %240 {offsets = [0, 0], sizes = [4, 16], strides = [1, 1]} : vector<8x16xf32> to vector<4x16xf32>
    %c0_106 = arith.constant 0 : index
    %c128 = arith.constant 128 : index
    %242 = vector.load %arg9[%c0_106, %c128] : memref<8x256xf32, #tpu.memory_space<vmem>>, vector<4x16xf32>
    tpu.vector_store %arg9[%c0_106, %c128], %241 {strides = array<i32>} : memref<8x256xf32, #tpu.memory_space<vmem>>, vector<4x16xf32>,
    %243 = vector.extract_strided_slice %240 {offsets = [4, 0], sizes = [4, 16], strides = [1, 1]} : vector<8x16xf32> to vector<4x16xf32>
    %c0_107 = arith.constant 0 : index
    %c128_108 = arith.constant 128 : index
    %244 = vector.load %arg10[%c0_107, %c128_108] : memref<8x256xf32, #tpu.memory_space<vmem>>, vector<4x16xf32>
    tpu.vector_store %arg10[%c0_107, %c128_108], %243 {strides = array<i32>} : memref<8x256xf32, #tpu.memory_space<vmem>>, vector<4x16xf32>,
    %245 = vector.extract_strided_slice %37 {offsets = [11, 0, 0], sizes = [1, 8, 16], strides = [1, 1, 1]} : vector<16x8x16xf32> to vector<1x8x16xf32>
    %246 = vector.shape_cast %245 : vector<1x8x16xf32> to vector<8x16xf32>
    %cst_109 = arith.constant 0.266666681 : f32
    %247 = vector.broadcast %cst_109 : f32 to vector<8x16xf32>
    %248 = arith.mulf %247, %246 : vector<8x16xf32>
    %249 = vector.extract_strided_slice %37 {offsets = [12, 0, 0], sizes = [1, 8, 16], strides = [1, 1, 1]} : vector<16x8x16xf32> to vector<1x8x16xf32>
    %250 = vector.shape_cast %249 : vector<1x8x16xf32> to vector<8x16xf32>
    %cst_110 = arith.constant 0.733333349 : f32
    %251 = vector.broadcast %cst_110 : f32 to vector<8x16xf32>
    %252 = arith.mulf %251, %250 : vector<8x16xf32>
    %253 = arith.addf %248, %252 : vector<8x16xf32>
    %254 = vector.extract_strided_slice %253 {offsets = [0, 0], sizes = [4, 16], strides = [1, 1]} : vector<8x16xf32> to vector<4x16xf32>
    %c4_111 = arith.constant 4 : index
    %c128_112 = arith.constant 128 : index
    %255 = vector.load %arg9[%c4_111, %c128_112] : memref<8x256xf32, #tpu.memory_space<vmem>>, vector<4x16xf32>
    tpu.vector_store %arg9[%c4_111, %c128_112], %254 {strides = array<i32>} : memref<8x256xf32, #tpu.memory_space<vmem>>, vector<4x16xf32>,
    %256 = vector.extract_strided_slice %253 {offsets = [4, 0], sizes = [4, 16], strides = [1, 1]} : vector<8x16xf32> to vector<4x16xf32>
    %c4_113 = arith.constant 4 : index
    %c128_114 = arith.constant 128 : index
    %257 = vector.load %arg10[%c4_113, %c128_114] : memref<8x256xf32, #tpu.memory_space<vmem>>, vector<4x16xf32>
    tpu.vector_store %arg10[%c4_113, %c128_114], %256 {strides = array<i32>} : memref<8x256xf32, #tpu.memory_space<vmem>>, vector<4x16xf32>,
    %258 = vector.extract_strided_slice %37 {offsets = [4, 0, 0], sizes = [1, 8, 16], strides = [1, 1, 1]} : vector<16x8x16xf32> to vector<1x8x16xf32>
    %259 = vector.shape_cast %258 : vector<1x8x16xf32> to vector<8x16xf32>
    %cst_115 = arith.constant 8.000000e-01 : f32
    %260 = vector.broadcast %cst_115 : f32 to vector<8x16xf32>
    %261 = arith.mulf %260, %259 : vector<8x16xf32>
    %262 = vector.extract_strided_slice %37 {offsets = [5, 0, 0], sizes = [1, 8, 16], strides = [1, 1, 1]} : vector<16x8x16xf32> to vector<1x8x16xf32>
    %263 = vector.shape_cast %262 : vector<1x8x16xf32> to vector<8x16xf32>
    %cst_116 = arith.constant 2.000000e-01 : f32
    %264 = vector.broadcast %cst_116 : f32 to vector<8x16xf32>
    %265 = arith.mulf %264, %263 : vector<8x16xf32>
    %266 = arith.addf %261, %265 : vector<8x16xf32>
    %267 = vector.extract_strided_slice %266 {offsets = [0, 0], sizes = [4, 16], strides = [1, 1]} : vector<8x16xf32> to vector<4x16xf32>
    %c0_117 = arith.constant 0 : index
    %c144 = arith.constant 144 : index
    %268 = vector.load %arg9[%c0_117, %c144] : memref<8x256xf32, #tpu.memory_space<vmem>>, vector<4x16xf32>
    tpu.vector_store %arg9[%c0_117, %c144], %267 {strides = array<i32>} : memref<8x256xf32, #tpu.memory_space<vmem>>, vector<4x16xf32>,
    %269 = vector.extract_strided_slice %266 {offsets = [4, 0], sizes = [4, 16], strides = [1, 1]} : vector<8x16xf32> to vector<4x16xf32>
    %c0_118 = arith.constant 0 : index
    %c144_119 = arith.constant 144 : index
    %270 = vector.load %arg10[%c0_118, %c144_119] : memref<8x256xf32, #tpu.memory_space<vmem>>, vector<4x16xf32>
    tpu.vector_store %arg10[%c0_118, %c144_119], %269 {strides = array<i32>} : memref<8x256xf32, #tpu.memory_space<vmem>>, vector<4x16xf32>,
    %271 = vector.extract_strided_slice %37 {offsets = [12, 0, 0], sizes = [1, 8, 16], strides = [1, 1, 1]} : vector<16x8x16xf32> to vector<1x8x16xf32>
    %272 = vector.shape_cast %271 : vector<1x8x16xf32> to vector<8x16xf32>
    %cst_120 = arith.constant 8.000000e-01 : f32
    %273 = vector.broadcast %cst_120 : f32 to vector<8x16xf32>
    %274 = arith.mulf %273, %272 : vector<8x16xf32>
    %275 = vector.extract_strided_slice %37 {offsets = [13, 0, 0], sizes = [1, 8, 16], strides = [1, 1, 1]} : vector<16x8x16xf32> to vector<1x8x16xf32>
    %276 = vector.shape_cast %275 : vector<1x8x16xf32> to vector<8x16xf32>
    %cst_121 = arith.constant 2.000000e-01 : f32
    %277 = vector.broadcast %cst_121 : f32 to vector<8x16xf32>
    %278 = arith.mulf %277, %276 : vector<8x16xf32>
    %279 = arith.addf %274, %278 : vector<8x16xf32>
    %280 = vector.extract_strided_slice %279 {offsets = [0, 0], sizes = [4, 16], strides = [1, 1]} : vector<8x16xf32> to vector<4x16xf32>
    %c4_122 = arith.constant 4 : index
    %c144_123 = arith.constant 144 : index
    %281 = vector.load %arg9[%c4_122, %c144_123] : memref<8x256xf32, #tpu.memory_space<vmem>>, vector<4x16xf32>
    tpu.vector_store %arg9[%c4_122, %c144_123], %280 {strides = array<i32>} : memref<8x256xf32, #tpu.memory_space<vmem>>, vector<4x16xf32>,
    %282 = vector.extract_strided_slice %279 {offsets = [4, 0], sizes = [4, 16], strides = [1, 1]} : vector<8x16xf32> to vector<4x16xf32>
    %c4_124 = arith.constant 4 : index
    %c144_125 = arith.constant 144 : index
    %283 = vector.load %arg10[%c4_124, %c144_125] : memref<8x256xf32, #tpu.memory_space<vmem>>, vector<4x16xf32>
    tpu.vector_store %arg10[%c4_124, %c144_125], %282 {strides = array<i32>} : memref<8x256xf32, #tpu.memory_space<vmem>>, vector<4x16xf32>,
    %284 = vector.extract_strided_slice %37 {offsets = [4, 0, 0], sizes = [1, 8, 16], strides = [1, 1, 1]} : vector<16x8x16xf32> to vector<1x8x16xf32>
    %285 = vector.shape_cast %284 : vector<1x8x16xf32> to vector<8x16xf32>
    %cst_126 = arith.constant 0.333333343 : f32
    %286 = vector.broadcast %cst_126 : f32 to vector<8x16xf32>
    %287 = arith.mulf %286, %285 : vector<8x16xf32>
    %288 = vector.extract_strided_slice %37 {offsets = [5, 0, 0], sizes = [1, 8, 16], strides = [1, 1, 1]} : vector<16x8x16xf32> to vector<1x8x16xf32>
    %289 = vector.shape_cast %288 : vector<1x8x16xf32> to vector<8x16xf32>
    %cst_127 = arith.constant 0.666666686 : f32
    %290 = vector.broadcast %cst_127 : f32 to vector<8x16xf32>
    %291 = arith.mulf %290, %289 : vector<8x16xf32>
    %292 = arith.addf %287, %291 : vector<8x16xf32>
    %293 = vector.extract_strided_slice %292 {offsets = [0, 0], sizes = [4, 16], strides = [1, 1]} : vector<8x16xf32> to vector<4x16xf32>
    %c0_128 = arith.constant 0 : index
    %c160 = arith.constant 160 : index
    %294 = vector.load %arg9[%c0_128, %c160] : memref<8x256xf32, #tpu.memory_space<vmem>>, vector<4x16xf32>
    tpu.vector_store %arg9[%c0_128, %c160], %293 {strides = array<i32>} : memref<8x256xf32, #tpu.memory_space<vmem>>, vector<4x16xf32>,
    %295 = vector.extract_strided_slice %292 {offsets = [4, 0], sizes = [4, 16], strides = [1, 1]} : vector<8x16xf32> to vector<4x16xf32>
    %c0_129 = arith.constant 0 : index
    %c160_130 = arith.constant 160 : index
    %296 = vector.load %arg10[%c0_129, %c160_130] : memref<8x256xf32, #tpu.memory_space<vmem>>, vector<4x16xf32>
    tpu.vector_store %arg10[%c0_129, %c160_130], %295 {strides = array<i32>} : memref<8x256xf32, #tpu.memory_space<vmem>>, vector<4x16xf32>,
    %297 = vector.extract_strided_slice %37 {offsets = [12, 0, 0], sizes = [1, 8, 16], strides = [1, 1, 1]} : vector<16x8x16xf32> to vector<1x8x16xf32>
    %298 = vector.shape_cast %297 : vector<1x8x16xf32> to vector<8x16xf32>
    %cst_131 = arith.constant 0.333333343 : f32
    %299 = vector.broadcast %cst_131 : f32 to vector<8x16xf32>
    %300 = arith.mulf %299, %298 : vector<8x16xf32>
    %301 = vector.extract_strided_slice %37 {offsets = [13, 0, 0], sizes = [1, 8, 16], strides = [1, 1, 1]} : vector<16x8x16xf32> to vector<1x8x16xf32>
    %302 = vector.shape_cast %301 : vector<1x8x16xf32> to vector<8x16xf32>
    %cst_132 = arith.constant 0.666666686 : f32
    %303 = vector.broadcast %cst_132 : f32 to vector<8x16xf32>
    %304 = arith.mulf %303, %302 : vector<8x16xf32>
    %305 = arith.addf %300, %304 : vector<8x16xf32>
    %306 = vector.extract_strided_slice %305 {offsets = [0, 0], sizes = [4, 16], strides = [1, 1]} : vector<8x16xf32> to vector<4x16xf32>
    %c4_133 = arith.constant 4 : index
    %c160_134 = arith.constant 160 : index
    %307 = vector.load %arg9[%c4_133, %c160_134] : memref<8x256xf32, #tpu.memory_space<vmem>>, vector<4x16xf32>
    tpu.vector_store %arg9[%c4_133, %c160_134], %306 {strides = array<i32>} : memref<8x256xf32, #tpu.memory_space<vmem>>, vector<4x16xf32>,
    %308 = vector.extract_strided_slice %305 {offsets = [4, 0], sizes = [4, 16], strides = [1, 1]} : vector<8x16xf32> to vector<4x16xf32>
    %c4_135 = arith.constant 4 : index
    %c160_136 = arith.constant 160 : index
    %309 = vector.load %arg10[%c4_135, %c160_136] : memref<8x256xf32, #tpu.memory_space<vmem>>, vector<4x16xf32>
    tpu.vector_store %arg10[%c4_135, %c160_136], %308 {strides = array<i32>} : memref<8x256xf32, #tpu.memory_space<vmem>>, vector<4x16xf32>,
    %310 = vector.extract_strided_slice %37 {offsets = [5, 0, 0], sizes = [1, 8, 16], strides = [1, 1, 1]} : vector<16x8x16xf32> to vector<1x8x16xf32>
    %311 = vector.shape_cast %310 : vector<1x8x16xf32> to vector<8x16xf32>
    %cst_137 = arith.constant 0.866666674 : f32
    %312 = vector.broadcast %cst_137 : f32 to vector<8x16xf32>
    %313 = arith.mulf %312, %311 : vector<8x16xf32>
    %314 = vector.extract_strided_slice %37 {offsets = [6, 0, 0], sizes = [1, 8, 16], strides = [1, 1, 1]} : vector<16x8x16xf32> to vector<1x8x16xf32>
    %315 = vector.shape_cast %314 : vector<1x8x16xf32> to vector<8x16xf32>
    %cst_138 = arith.constant 0.13333334 : f32
    %316 = vector.broadcast %cst_138 : f32 to vector<8x16xf32>
    %317 = arith.mulf %316, %315 : vector<8x16xf32>
    %318 = arith.addf %313, %317 : vector<8x16xf32>
    %319 = vector.extract_strided_slice %318 {offsets = [0, 0], sizes = [4, 16], strides = [1, 1]} : vector<8x16xf32> to vector<4x16xf32>
    %c0_139 = arith.constant 0 : index
    %c176 = arith.constant 176 : index
    %320 = vector.load %arg9[%c0_139, %c176] : memref<8x256xf32, #tpu.memory_space<vmem>>, vector<4x16xf32>
    tpu.vector_store %arg9[%c0_139, %c176], %319 {strides = array<i32>} : memref<8x256xf32, #tpu.memory_space<vmem>>, vector<4x16xf32>,
    %321 = vector.extract_strided_slice %318 {offsets = [4, 0], sizes = [4, 16], strides = [1, 1]} : vector<8x16xf32> to vector<4x16xf32>
    %c0_140 = arith.constant 0 : index
    %c176_141 = arith.constant 176 : index
    %322 = vector.load %arg10[%c0_140, %c176_141] : memref<8x256xf32, #tpu.memory_space<vmem>>, vector<4x16xf32>
    tpu.vector_store %arg10[%c0_140, %c176_141], %321 {strides = array<i32>} : memref<8x256xf32, #tpu.memory_space<vmem>>, vector<4x16xf32>,
    %323 = vector.extract_strided_slice %37 {offsets = [13, 0, 0], sizes = [1, 8, 16], strides = [1, 1, 1]} : vector<16x8x16xf32> to vector<1x8x16xf32>
    %324 = vector.shape_cast %323 : vector<1x8x16xf32> to vector<8x16xf32>
    %cst_142 = arith.constant 0.866666674 : f32
    %325 = vector.broadcast %cst_142 : f32 to vector<8x16xf32>
    %326 = arith.mulf %325, %324 : vector<8x16xf32>
    %327 = vector.extract_strided_slice %37 {offsets = [14, 0, 0], sizes = [1, 8, 16], strides = [1, 1, 1]} : vector<16x8x16xf32> to vector<1x8x16xf32>
    %328 = vector.shape_cast %327 : vector<1x8x16xf32> to vector<8x16xf32>
    %cst_143 = arith.constant 0.13333334 : f32
    %329 = vector.broadcast %cst_143 : f32 to vector<8x16xf32>
    %330 = arith.mulf %329, %328 : vector<8x16xf32>
    %331 = arith.addf %326, %330 : vector<8x16xf32>
    %332 = vector.extract_strided_slice %331 {offsets = [0, 0], sizes = [4, 16], strides = [1, 1]} : vector<8x16xf32> to vector<4x16xf32>
    %c4_144 = arith.constant 4 : index
    %c176_145 = arith.constant 176 : index
    %333 = vector.load %arg9[%c4_144, %c176_145] : memref<8x256xf32, #tpu.memory_space<vmem>>, vector<4x16xf32>
    tpu.vector_store %arg9[%c4_144, %c176_145], %332 {strides = array<i32>} : memref<8x256xf32, #tpu.memory_space<vmem>>, vector<4x16xf32>,
    %334 = vector.extract_strided_slice %331 {offsets = [4, 0], sizes = [4, 16], strides = [1, 1]} : vector<8x16xf32> to vector<4x16xf32>
    %c4_146 = arith.constant 4 : index
    %c176_147 = arith.constant 176 : index
    %335 = vector.load %arg10[%c4_146, %c176_147] : memref<8x256xf32, #tpu.memory_space<vmem>>, vector<4x16xf32>
    tpu.vector_store %arg10[%c4_146, %c176_147], %334 {strides = array<i32>} : memref<8x256xf32, #tpu.memory_space<vmem>>, vector<4x16xf32>,
    %336 = vector.extract_strided_slice %37 {offsets = [5, 0, 0], sizes = [1, 8, 16], strides = [1, 1, 1]} : vector<16x8x16xf32> to vector<1x8x16xf32>
    %337 = vector.shape_cast %336 : vector<1x8x16xf32> to vector<8x16xf32>
    %cst_148 = arith.constant 4.000000e-01 : f32
    %338 = vector.broadcast %cst_148 : f32 to vector<8x16xf32>
    %339 = arith.mulf %338, %337 : vector<8x16xf32>
    %340 = vector.extract_strided_slice %37 {offsets = [6, 0, 0], sizes = [1, 8, 16], strides = [1, 1, 1]} : vector<16x8x16xf32> to vector<1x8x16xf32>
    %341 = vector.shape_cast %340 : vector<1x8x16xf32> to vector<8x16xf32>
    %cst_149 = arith.constant 6.000000e-01 : f32
    %342 = vector.broadcast %cst_149 : f32 to vector<8x16xf32>
    %343 = arith.mulf %342, %341 : vector<8x16xf32>
    %344 = arith.addf %339, %343 : vector<8x16xf32>
    %345 = vector.extract_strided_slice %344 {offsets = [0, 0], sizes = [4, 16], strides = [1, 1]} : vector<8x16xf32> to vector<4x16xf32>
    %c0_150 = arith.constant 0 : index
    %c192 = arith.constant 192 : index
    %346 = vector.load %arg9[%c0_150, %c192] : memref<8x256xf32, #tpu.memory_space<vmem>>, vector<4x16xf32>
    tpu.vector_store %arg9[%c0_150, %c192], %345 {strides = array<i32>} : memref<8x256xf32, #tpu.memory_space<vmem>>, vector<4x16xf32>,
    %347 = vector.extract_strided_slice %344 {offsets = [4, 0], sizes = [4, 16], strides = [1, 1]} : vector<8x16xf32> to vector<4x16xf32>
    %c0_151 = arith.constant 0 : index
    %c192_152 = arith.constant 192 : index
    %348 = vector.load %arg10[%c0_151, %c192_152] : memref<8x256xf32, #tpu.memory_space<vmem>>, vector<4x16xf32>
    tpu.vector_store %arg10[%c0_151, %c192_152], %347 {strides = array<i32>} : memref<8x256xf32, #tpu.memory_space<vmem>>, vector<4x16xf32>,
    %349 = vector.extract_strided_slice %37 {offsets = [13, 0, 0], sizes = [1, 8, 16], strides = [1, 1, 1]} : vector<16x8x16xf32> to vector<1x8x16xf32>
    %350 = vector.shape_cast %349 : vector<1x8x16xf32> to vector<8x16xf32>
    %cst_153 = arith.constant 4.000000e-01 : f32
    %351 = vector.broadcast %cst_153 : f32 to vector<8x16xf32>
    %352 = arith.mulf %351, %350 : vector<8x16xf32>
    %353 = vector.extract_strided_slice %37 {offsets = [14, 0, 0], sizes = [1, 8, 16], strides = [1, 1, 1]} : vector<16x8x16xf32> to vector<1x8x16xf32>
    %354 = vector.shape_cast %353 : vector<1x8x16xf32> to vector<8x16xf32>
    %cst_154 = arith.constant 6.000000e-01 : f32
    %355 = vector.broadcast %cst_154 : f32 to vector<8x16xf32>
    %356 = arith.mulf %355, %354 : vector<8x16xf32>
    %357 = arith.addf %352, %356 : vector<8x16xf32>
    %358 = vector.extract_strided_slice %357 {offsets = [0, 0], sizes = [4, 16], strides = [1, 1]} : vector<8x16xf32> to vector<4x16xf32>
    %c4_155 = arith.constant 4 : index
    %c192_156 = arith.constant 192 : index
    %359 = vector.load %arg9[%c4_155, %c192_156] : memref<8x256xf32, #tpu.memory_space<vmem>>, vector<4x16xf32>
    tpu.vector_store %arg9[%c4_155, %c192_156], %358 {strides = array<i32>} : memref<8x256xf32, #tpu.memory_space<vmem>>, vector<4x16xf32>,
    %360 = vector.extract_strided_slice %357 {offsets = [4, 0], sizes = [4, 16], strides = [1, 1]} : vector<8x16xf32> to vector<4x16xf32>
    %c4_157 = arith.constant 4 : index
    %c192_158 = arith.constant 192 : index
    %361 = vector.load %arg10[%c4_157, %c192_158] : memref<8x256xf32, #tpu.memory_space<vmem>>, vector<4x16xf32>
    tpu.vector_store %arg10[%c4_157, %c192_158], %360 {strides = array<i32>} : memref<8x256xf32, #tpu.memory_space<vmem>>, vector<4x16xf32>,
    %362 = vector.extract_strided_slice %37 {offsets = [6, 0, 0], sizes = [1, 8, 16], strides = [1, 1, 1]} : vector<16x8x16xf32> to vector<1x8x16xf32>
    %363 = vector.shape_cast %362 : vector<1x8x16xf32> to vector<8x16xf32>
    %cst_159 = arith.constant 0.933333337 : f32
    %364 = vector.broadcast %cst_159 : f32 to vector<8x16xf32>
    %365 = arith.mulf %364, %363 : vector<8x16xf32>
    %366 = vector.extract_strided_slice %37 {offsets = [7, 0, 0], sizes = [1, 8, 16], strides = [1, 1, 1]} : vector<16x8x16xf32> to vector<1x8x16xf32>
    %367 = vector.shape_cast %366 : vector<1x8x16xf32> to vector<8x16xf32>
    %cst_160 = arith.constant 0.0666666701 : f32
    %368 = vector.broadcast %cst_160 : f32 to vector<8x16xf32>
    %369 = arith.mulf %368, %367 : vector<8x16xf32>
    %370 = arith.addf %365, %369 : vector<8x16xf32>
    %371 = vector.extract_strided_slice %370 {offsets = [0, 0], sizes = [4, 16], strides = [1, 1]} : vector<8x16xf32> to vector<4x16xf32>
    %c0_161 = arith.constant 0 : index
    %c208 = arith.constant 208 : index
    %372 = vector.load %arg9[%c0_161, %c208] : memref<8x256xf32, #tpu.memory_space<vmem>>, vector<4x16xf32>
    tpu.vector_store %arg9[%c0_161, %c208], %371 {strides = array<i32>} : memref<8x256xf32, #tpu.memory_space<vmem>>, vector<4x16xf32>,
    %373 = vector.extract_strided_slice %370 {offsets = [4, 0], sizes = [4, 16], strides = [1, 1]} : vector<8x16xf32> to vector<4x16xf32>
    %c0_162 = arith.constant 0 : index
    %c208_163 = arith.constant 208 : index
    %374 = vector.load %arg10[%c0_162, %c208_163] : memref<8x256xf32, #tpu.memory_space<vmem>>, vector<4x16xf32>
    tpu.vector_store %arg10[%c0_162, %c208_163], %373 {strides = array<i32>} : memref<8x256xf32, #tpu.memory_space<vmem>>, vector<4x16xf32>,
    %375 = vector.extract_strided_slice %37 {offsets = [14, 0, 0], sizes = [1, 8, 16], strides = [1, 1, 1]} : vector<16x8x16xf32> to vector<1x8x16xf32>
    %376 = vector.shape_cast %375 : vector<1x8x16xf32> to vector<8x16xf32>
    %cst_164 = arith.constant 0.933333337 : f32
    %377 = vector.broadcast %cst_164 : f32 to vector<8x16xf32>
    %378 = arith.mulf %377, %376 : vector<8x16xf32>
    %379 = vector.extract_strided_slice %37 {offsets = [15, 0, 0], sizes = [1, 8, 16], strides = [1, 1, 1]} : vector<16x8x16xf32> to vector<1x8x16xf32>
    %380 = vector.shape_cast %379 : vector<1x8x16xf32> to vector<8x16xf32>
    %cst_165 = arith.constant 0.0666666701 : f32
    %381 = vector.broadcast %cst_165 : f32 to vector<8x16xf32>
    %382 = arith.mulf %381, %380 : vector<8x16xf32>
    %383 = arith.addf %378, %382 : vector<8x16xf32>
    %384 = vector.extract_strided_slice %383 {offsets = [0, 0], sizes = [4, 16], strides = [1, 1]} : vector<8x16xf32> to vector<4x16xf32>
    %c4_166 = arith.constant 4 : index
    %c208_167 = arith.constant 208 : index
    %385 = vector.load %arg9[%c4_166, %c208_167] : memref<8x256xf32, #tpu.memory_space<vmem>>, vector<4x16xf32>
    tpu.vector_store %arg9[%c4_166, %c208_167], %384 {strides = array<i32>} : memref<8x256xf32, #tpu.memory_space<vmem>>, vector<4x16xf32>,
    %386 = vector.extract_strided_slice %383 {offsets = [4, 0], sizes = [4, 16], strides = [1, 1]} : vector<8x16xf32> to vector<4x16xf32>
    %c4_168 = arith.constant 4 : index
    %c208_169 = arith.constant 208 : index
    %387 = vector.load %arg10[%c4_168, %c208_169] : memref<8x256xf32, #tpu.memory_space<vmem>>, vector<4x16xf32>
    tpu.vector_store %arg10[%c4_168, %c208_169], %386 {strides = array<i32>} : memref<8x256xf32, #tpu.memory_space<vmem>>, vector<4x16xf32>,
    %388 = vector.extract_strided_slice %37 {offsets = [6, 0, 0], sizes = [1, 8, 16], strides = [1, 1, 1]} : vector<16x8x16xf32> to vector<1x8x16xf32>
    %389 = vector.shape_cast %388 : vector<1x8x16xf32> to vector<8x16xf32>
    %cst_170 = arith.constant 0.466666669 : f32
    %390 = vector.broadcast %cst_170 : f32 to vector<8x16xf32>
    %391 = arith.mulf %390, %389 : vector<8x16xf32>
    %392 = vector.extract_strided_slice %37 {offsets = [7, 0, 0], sizes = [1, 8, 16], strides = [1, 1, 1]} : vector<16x8x16xf32> to vector<1x8x16xf32>
    %393 = vector.shape_cast %392 : vector<1x8x16xf32> to vector<8x16xf32>
    %cst_171 = arith.constant 0.533333361 : f32
    %394 = vector.broadcast %cst_171 : f32 to vector<8x16xf32>
    %395 = arith.mulf %394, %393 : vector<8x16xf32>
    %396 = arith.addf %391, %395 : vector<8x16xf32>
    %397 = vector.extract_strided_slice %396 {offsets = [0, 0], sizes = [4, 16], strides = [1, 1]} : vector<8x16xf32> to vector<4x16xf32>
    %c0_172 = arith.constant 0 : index
    %c224 = arith.constant 224 : index
    %398 = vector.load %arg9[%c0_172, %c224] : memref<8x256xf32, #tpu.memory_space<vmem>>, vector<4x16xf32>
    tpu.vector_store %arg9[%c0_172, %c224], %397 {strides = array<i32>} : memref<8x256xf32, #tpu.memory_space<vmem>>, vector<4x16xf32>,
    %399 = vector.extract_strided_slice %396 {offsets = [4, 0], sizes = [4, 16], strides = [1, 1]} : vector<8x16xf32> to vector<4x16xf32>
    %c0_173 = arith.constant 0 : index
    %c224_174 = arith.constant 224 : index
    %400 = vector.load %arg10[%c0_173, %c224_174] : memref<8x256xf32, #tpu.memory_space<vmem>>, vector<4x16xf32>
    tpu.vector_store %arg10[%c0_173, %c224_174], %399 {strides = array<i32>} : memref<8x256xf32, #tpu.memory_space<vmem>>, vector<4x16xf32>,
    %401 = vector.extract_strided_slice %37 {offsets = [14, 0, 0], sizes = [1, 8, 16], strides = [1, 1, 1]} : vector<16x8x16xf32> to vector<1x8x16xf32>
    %402 = vector.shape_cast %401 : vector<1x8x16xf32> to vector<8x16xf32>
    %cst_175 = arith.constant 0.466666669 : f32
    %403 = vector.broadcast %cst_175 : f32 to vector<8x16xf32>
    %404 = arith.mulf %403, %402 : vector<8x16xf32>
    %405 = vector.extract_strided_slice %37 {offsets = [15, 0, 0], sizes = [1, 8, 16], strides = [1, 1, 1]} : vector<16x8x16xf32> to vector<1x8x16xf32>
    %406 = vector.shape_cast %405 : vector<1x8x16xf32> to vector<8x16xf32>
    %cst_176 = arith.constant 0.533333361 : f32
    %407 = vector.broadcast %cst_176 : f32 to vector<8x16xf32>
    %408 = arith.mulf %407, %406 : vector<8x16xf32>
    %409 = arith.addf %404, %408 : vector<8x16xf32>
    %410 = vector.extract_strided_slice %409 {offsets = [0, 0], sizes = [4, 16], strides = [1, 1]} : vector<8x16xf32> to vector<4x16xf32>
    %c4_177 = arith.constant 4 : index
    %c224_178 = arith.constant 224 : index
    %411 = vector.load %arg9[%c4_177, %c224_178] : memref<8x256xf32, #tpu.memory_space<vmem>>, vector<4x16xf32>
    tpu.vector_store %arg9[%c4_177, %c224_178], %410 {strides = array<i32>} : memref<8x256xf32, #tpu.memory_space<vmem>>, vector<4x16xf32>,
    %412 = vector.extract_strided_slice %409 {offsets = [4, 0], sizes = [4, 16], strides = [1, 1]} : vector<8x16xf32> to vector<4x16xf32>
    %c4_179 = arith.constant 4 : index
    %c224_180 = arith.constant 224 : index
    %413 = vector.load %arg10[%c4_179, %c224_180] : memref<8x256xf32, #tpu.memory_space<vmem>>, vector<4x16xf32>
    tpu.vector_store %arg10[%c4_179, %c224_180], %412 {strides = array<i32>} : memref<8x256xf32, #tpu.memory_space<vmem>>, vector<4x16xf32>,
    %414 = vector.extract_strided_slice %37 {offsets = [6, 0, 0], sizes = [1, 8, 16], strides = [1, 1, 1]} : vector<16x8x16xf32> to vector<1x8x16xf32>
    %415 = vector.shape_cast %414 : vector<1x8x16xf32> to vector<8x16xf32>
    %cst_181 = arith.constant 0.000000e+00 : f32
    %416 = vector.broadcast %cst_181 : f32 to vector<8x16xf32>
    %417 = arith.mulf %416, %415 : vector<8x16xf32>
    %418 = vector.extract_strided_slice %37 {offsets = [7, 0, 0], sizes = [1, 8, 16], strides = [1, 1, 1]} : vector<16x8x16xf32> to vector<1x8x16xf32>
    %419 = vector.shape_cast %418 : vector<1x8x16xf32> to vector<8x16xf32>
    %cst_182 = arith.constant 1.000000e+00 : f32
    %420 = vector.broadcast %cst_182 : f32 to vector<8x16xf32>
    %421 = arith.mulf %420, %419 : vector<8x16xf32>
    %422 = arith.addf %417, %421 : vector<8x16xf32>
    %423 = vector.extract_strided_slice %422 {offsets = [0, 0], sizes = [4, 16], strides = [1, 1]} : vector<8x16xf32> to vector<4x16xf32>
    %c0_183 = arith.constant 0 : index
    %c240 = arith.constant 240 : index
    %424 = vector.load %arg9[%c0_183, %c240] : memref<8x256xf32, #tpu.memory_space<vmem>>, vector<4x16xf32>
    tpu.vector_store %arg9[%c0_183, %c240], %423 {strides = array<i32>} : memref<8x256xf32, #tpu.memory_space<vmem>>, vector<4x16xf32>,
    %425 = vector.extract_strided_slice %422 {offsets = [4, 0], sizes = [4, 16], strides = [1, 1]} : vector<8x16xf32> to vector<4x16xf32>
    %c0_184 = arith.constant 0 : index
    %c240_185 = arith.constant 240 : index
    %426 = vector.load %arg10[%c0_184, %c240_185] : memref<8x256xf32, #tpu.memory_space<vmem>>, vector<4x16xf32>
    tpu.vector_store %arg10[%c0_184, %c240_185], %425 {strides = array<i32>} : memref<8x256xf32, #tpu.memory_space<vmem>>, vector<4x16xf32>,
    %427 = vector.extract_strided_slice %37 {offsets = [14, 0, 0], sizes = [1, 8, 16], strides = [1, 1, 1]} : vector<16x8x16xf32> to vector<1x8x16xf32>
    %428 = vector.shape_cast %427 : vector<1x8x16xf32> to vector<8x16xf32>
    %cst_186 = arith.constant 0.000000e+00 : f32
    %429 = vector.broadcast %cst_186 : f32 to vector<8x16xf32>
    %430 = arith.mulf %429, %428 : vector<8x16xf32>
    %431 = vector.extract_strided_slice %37 {offsets = [15, 0, 0], sizes = [1, 8, 16], strides = [1, 1, 1]} : vector<16x8x16xf32> to vector<1x8x16xf32>
    %432 = vector.shape_cast %431 : vector<1x8x16xf32> to vector<8x16xf32>
    %cst_187 = arith.constant 1.000000e+00 : f32
    %433 = vector.broadcast %cst_187 : f32 to vector<8x16xf32>
    %434 = arith.mulf %433, %432 : vector<8x16xf32>
    %435 = arith.addf %430, %434 : vector<8x16xf32>
    %436 = vector.extract_strided_slice %435 {offsets = [0, 0], sizes = [4, 16], strides = [1, 1]} : vector<8x16xf32> to vector<4x16xf32>
    %c4_188 = arith.constant 4 : index
    %c240_189 = arith.constant 240 : index
    %437 = vector.load %arg9[%c4_188, %c240_189] : memref<8x256xf32, #tpu.memory_space<vmem>>, vector<4x16xf32>
    tpu.vector_store %arg9[%c4_188, %c240_189], %436 {strides = array<i32>} : memref<8x256xf32, #tpu.memory_space<vmem>>, vector<4x16xf32>,
    %438 = vector.extract_strided_slice %435 {offsets = [4, 0], sizes = [4, 16], strides = [1, 1]} : vector<8x16xf32> to vector<4x16xf32>
    %c4_190 = arith.constant 4 : index
    %c240_191 = arith.constant 240 : index
    %439 = vector.load %arg10[%c4_190, %c240_191] : memref<8x256xf32, #tpu.memory_space<vmem>>, vector<4x16xf32>
    tpu.vector_store %arg10[%c4_190, %c240_191], %438 {strides = array<i32>} : memref<8x256xf32, #tpu.memory_space<vmem>>, vector<4x16xf32>,
    %c0_192 = arith.constant 0 : index
    %c0_193 = arith.constant 0 : index
    %440 = vector.load %arg9[%c0_192, %c0_193] : memref<8x256xf32, #tpu.memory_space<vmem>>, vector<8x256xf32>
    %c0_194 = arith.constant 0 : index
    %c0_195 = arith.constant 0 : index
    %441 = vector.load %arg10[%c0_194, %c0_195] : memref<8x256xf32, #tpu.memory_space<vmem>>, vector<8x256xf32>
    %442 = arith.mulf %441, %21 : vector<8x256xf32>
    %443 = arith.addf %440, %442 : vector<8x256xf32>
    %444 = math.tanh %443 : vector<8x256xf32>
    %c0_196 = arith.constant 0 : index
    %c0_197 = arith.constant 0 : index
    %445 = vector.load %arg8[%c0_196, %c0_197] : memref<8x256xf32, #tpu.memory_space<vmem>>, vector<8x256xf32>
    tpu.vector_store %arg8[%c0_196, %c0_197], %444 {strides = array<i32>} : memref<8x256xf32, #tpu.memory_space<vmem>>, vector<8x256xf32>,
    return
  }
  func.func @transform_0(%arg0: i32) -> (i32, i32) {
    %c0_i32 = arith.constant 0 : i32
    %c0_i32_0 = arith.constant 0 : i32
    %c0_i32_1 = arith.constant 0 : i32
    return %c0_i32, %c0_i32_0 : i32, i32
  }
  func.func @transform_1(%arg0: i32) -> (i32, i32) {
    %c0_i32 = arith.constant 0 : i32
    %c0_i32_0 = arith.constant 0 : i32
    %c0_i32_1 = arith.constant 0 : i32
    return %c0_i32, %c0_i32_0 : i32, i32
  }
  func.func @transform_2(%arg0: i32) -> (i32, i32) {
    %c0_i32 = arith.constant 0 : i32
    %c0_i32_0 = arith.constant 0 : i32
    %c0_i32_1 = arith.constant 0 : i32
    return %c0_i32, %c0_i32_0 : i32, i32
  }
  func.func @transform_3(%arg0: i32) -> (i32, i32) {
    %c0_i32 = arith.constant 0 : i32
    %c0_i32_0 = arith.constant 0 : i32
    %c0_i32_1 = arith.constant 0 : i32
    return %c0_i32, %c0_i32_0 : i32, i32
  }
  func.func @transform_4(%arg0: i32) -> (i32, i32) {
    %c0_i32 = arith.constant 0 : i32
    %c0_i32_0 = arith.constant 0 : i32
    %c0_i32_1 = arith.constant 0 : i32
    return %c0_i32, %c0_i32_0 : i32, i32
  }
  func.func @transform_5(%arg0: i32) -> (i32, i32, i32) {
    %c0_i32 = arith.constant 0 : i32
    %c0_i32_0 = arith.constant 0 : i32
    %c0_i32_1 = arith.constant 0 : i32
    %c0_i32_2 = arith.constant 0 : i32
    return %c0_i32, %c0_i32_0, %c0_i32_1 : i32, i32, i32
  }
  func.func @transform_6(%arg0: i32) -> (i32, i32) {
    %c0_i32 = arith.constant 0 : i32
    %c0_i32_0 = arith.constant 0 : i32
    %c0_i32_1 = arith.constant 0 : i32
    return %c0_i32, %c0_i32_0 : i32, i32
  }
  func.func @transform_7(%arg0: i32) -> (i32, i32) {
    %c0_i32 = arith.constant 0 : i32
    %c0_i32_0 = arith.constant 0 : i32
    %c0_i32_1 = arith.constant 0 : i32
    return %c0_i32, %c0_i32_0 : i32, i32
  }
}

</mosaic_0001>

<llo_original>
// kernel: tpu_custom_call.1
$region0: #{tpu_custom_call.1}
  #allocation0 [shape = 'u32[]', space=smem, size = 0x4, offset = 0x4, fixed_abs, tag = 'smem constant byte address 0x4 - core index']
  #allocation1 [shape = 'u32[144,128]{1,0:T(1,128)}', space=vmem, size = 0x12000, scoped, tag = 'internal scratch']
  #allocation2 [shape = 'f32[8,256]{1,0:T(8,128)}', space=vmem, size = 0x2000, scoped, tag = 'scratch operand']
  #allocation3 [shape = 'f32[8,256]{1,0:T(8,128)}', space=vmem, size = 0x2000, scoped, tag = 'scratch operand']
  %s0 = inlined_call_operand.vmem [shape: f32[8,256], index: 0, kind: input, shape index: {}]
  %s1 = inlined_call_operand.vmem [shape: f32[8,256], index: 1, kind: input, shape index: {}]
  %s2 = inlined_call_operand.vmem [shape: f32[8,1], index: 2, kind: input, shape index: {}]
  %s3 = inlined_call_operand.vmem [shape: bf16[8,104], index: 3, kind: input, shape index: {}]
  %s4 = inlined_call_operand.vmem [shape: f32[8,1], index: 4, kind: input, shape index: {}]
  %s5 = inlined_call_operand.vmem [shape: bf16[16,104,8], index: 5, kind: input, shape index: {}]
  %s6 = inlined_call_operand.vmem [shape: bf16[8,16], index: 6, kind: input, shape index: {}]
  %s7 = inlined_call_operand.hbm [shape: f32[8,256], index: 7, kind: output, shape index: {}]
  %s8 = sld [smem:[#allocation0]]
  $region38: #{tpu_custom_call.1} parent=0
    _
  %s10 = ssub.s32 1, %s8
  %s11 = scalar_select 0, %s10, %s8
  $region1: #{tpu_custom_call.1} parent=0
    #allocation4 [shape = 'u8[8192]{0}', space=vmem, size = 0x2000, scoped, tag = 'output window, operand 0, single buffered']
    #allocation5 [shape = 's32[1]{0}', space=sflag, size = 0x4, scoped, tag = 'scoped memory for tpu_custom_call.1']
    %12 = vsyncpa [#allocation5], 0
    // Predicated region
    $region2: #{tpu_custom_call.1} parent=1 // pred_check
      _
    $region3: #{tpu_custom_call.1} parent=1 // pred_check_branch
      %14 = sbr.rel (0) target = $region5
    $region4: #{tpu_custom_call.1} parent=1 // pred_region
      _
    $region5: #{tpu_custom_call.1} parent=1 // pred_fallthru
      _
    // Predicated region
    $region6: #{tpu_custom_call.1} parent=1 // pred_check
      _
    $region7: #{tpu_custom_call.1} parent=1 // pred_check_branch
      %16 = sbr.rel (0) target = $region9
    $region8: #{tpu_custom_call.1} parent=1 // pred_region
      _
    $region9: #{tpu_custom_call.1} parent=1 // pred_fallthru
      _
    // Predicated region
    $region10: #{tpu_custom_call.1} parent=1 // pred_check
      _
    $region11: #{tpu_custom_call.1} parent=1 // pred_check_branch
      %18 = sbr.rel (0) target = $region13
    $region12: #{tpu_custom_call.1} parent=1 // pred_region
      _
    $region13: #{tpu_custom_call.1} parent=1 // pred_fallthru
      _
    // Predicated region
    $region14: #{tpu_custom_call.1} parent=1 // pred_check
      _
    $region15: #{tpu_custom_call.1} parent=1 // pred_check_branch
      %20 = sbr.rel (0) target = $region17
    $region16: #{tpu_custom_call.1} parent=1 // pred_region
      _
    $region17: #{tpu_custom_call.1} parent=1 // pred_fallthru
      _
    // Predicated region
    $region18: #{tpu_custom_call.1} parent=1 // pred_check
      _
    $region19: #{tpu_custom_call.1} parent=1 // pred_check_branch
      %22 = sbr.rel (0) target = $region21
    $region20: #{tpu_custom_call.1} parent=1 // pred_region
      _
    $region21: #{tpu_custom_call.1} parent=1 // pred_fallthru
      _
    // Predicated region
    $region22: #{tpu_custom_call.1} parent=1 // pred_check
      _
    $region23: #{tpu_custom_call.1} parent=1 // pred_check_branch
      %24 = sbr.rel (0) target = $region25
    $region24: #{tpu_custom_call.1} parent=1 // pred_region
      _
    $region25: #{tpu_custom_call.1} parent=1 // pred_fallthru
      _
    // Predicated region
    $region26: #{tpu_custom_call.1} parent=1 // pred_check
      _
    $region27: #{tpu_custom_call.1} parent=1 // pred_check_branch
      %26 = sbr.rel (0) target = $region29
    $region28: #{tpu_custom_call.1} parent=1 // pred_region
      _
    $region29: #{tpu_custom_call.1} parent=1 // pred_fallthru
      _
    %v28 = vld [vmem:[%s0] sm:$0xff]
    %v29 = vld [vmem:[%s0 + $0x8] sm:$0xff]
    %v30 = vld [vmem:[%s2] sm:$0xff]
    %v31 = vld [vmem:[%s1] sm:$0xff]
    %v32 = vld [vmem:[%s1 + $0x8] sm:$0xff]
    %34 = vset.pattern.permute.xlu0 0
    %35 = vperm.xlu0 %34, %v30
    %v36 = vpop.permute.xlu0 %35
    %v38 = vmul.f32 %v36, %v31
    %v39 = vmul.f32 %v36, %v32
    %v40 = vadd.f32 %v28, %v38
    %v41 = vadd.f32 %v29, %v39
    %v42 = vadd.f32 %v40, %v41
    %43 = vadd.xlane.f32.xlu0 %v42
    %v44 = vpop.xlane.xlu0 %43
    %v45 = vrcp.pop 256.0
    %v46 = vmul.f32 %v44, %v45
    %v47 = vsub.f32 %v40, %v46
    %v48 = vsub.f32 %v41, %v46
    %v49 = vmul.f32 %v47, %v47
    %v50 = vmul.f32 %v48, %v48
    %v51 = vadd.f32 %v49, %v50
    %52 = vadd.xlane.f32.xlu0 %v51
    %v53 = vpop.xlane.xlu0 %52
    %v54 = vmul.f32 %v53, %v45
    %v55 = vadd.f32 %v54, 1e-05
    %v56 = vrsqrt.pop %v55
    %v57 = vmul.f32 %v47, %v56
    %v58 = vmul.f32 %v48, %v56
    %v59 = vld [vmem:[%s3] sm:$0xf]
    %v60 = vld [vmem:[%s5] sm:$0xf]
    %v61 = vld [vmem:[%s5 + $0x4] sm:$0xf]
    %v62 = vld [vmem:[%s5 + $0x8] sm:$0xf]
    %v63 = vld [vmem:[%s5 + $0xc] sm:$0xf]
    %v64 = vld [vmem:[%s5 + $0x10] sm:$0xf]
    %v65 = vld [vmem:[%s5 + $0x14] sm:$0xf]
    %v66 = vld [vmem:[%s5 + $0x18] sm:$0xf]
    %v67 = vld [vmem:[%s5 + $0x1c] sm:$0xf]
    %v68 = vld [vmem:[%s5 + $0x20] sm:$0xf]
    %v69 = vld [vmem:[%s5 + $0x24] sm:$0xf]
    %v70 = vld [vmem:[%s5 + $0x28] sm:$0xf]
    %v71 = vld [vmem:[%s5 + $0x2c] sm:$0xf]
    %v72 = vld [vmem:[%s5 + $0x30] sm:$0xf]
    %v73 = vld [vmem:[%s5 + $0x34] sm:$0xf]
    %v74 = vld [vmem:[%s5 + $0x38] sm:$0xf]
    %v75 = vld [vmem:[%s5 + $0x3c] sm:$0xf]
    %v76 = vld [vmem:[%s5 + $0x40] sm:$0xf]
    %v77 = vld [vmem:[%s5 + $0x44] sm:$0xf]
    %v78 = vld [vmem:[%s5 + $0x48] sm:$0xf]
    %v79 = vld [vmem:[%s5 + $0x4c] sm:$0xf]
    %v80 = vld [vmem:[%s5 + $0x50] sm:$0xf]
    %v81 = vld [vmem:[%s5 + $0x54] sm:$0xf]
    %v82 = vld [vmem:[%s5 + $0x58] sm:$0xf]
    %v83 = vld [vmem:[%s5 + $0x5c] sm:$0xf]
    %v84 = vld [vmem:[%s5 + $0x60] sm:$0xf]
    %v85 = vld [vmem:[%s5 + $0x64] sm:$0xf]
    %v86 = vld [vmem:[%s5 + $0x68] sm:$0xf]
    %v87 = vld [vmem:[%s5 + $0x6c] sm:$0xf]
    %v88 = vld [vmem:[%s5 + $0x70] sm:$0xf]
    %v89 = vld [vmem:[%s5 + $0x74] sm:$0xf]
    %v90 = vld [vmem:[%s5 + $0x78] sm:$0xf]
    %v91 = vld [vmem:[%s5 + $0x7c] sm:$0xf]
    %v92 = vld [vmem:[%s5 + $0x80] sm:$0xf]
    %v93 = vld [vmem:[%s5 + $0x84] sm:$0xf]
    %v94 = vld [vmem:[%s5 + $0x88] sm:$0xf]
    %v95 = vld [vmem:[%s5 + $0x8c] sm:$0xf]
    %v96 = vld [vmem:[%s5 + $0x90] sm:$0xf]
    %v97 = vld [vmem:[%s5 + $0x94] sm:$0xf]
    %v98 = vld [vmem:[%s5 + $0x98] sm:$0xf]
    %v99 = vld [vmem:[%s5 + $0x9c] sm:$0xf]
    %v100 = vld [vmem:[%s5 + $0xa0] sm:$0xf]
    %v101 = vld [vmem:[%s5 + $0xa4] sm:$0xf]
    %v102 = vld [vmem:[%s5 + $0xa8] sm:$0xf]
    %v103 = vld [vmem:[%s5 + $0xac] sm:$0xf]
    %v104 = vld [vmem:[%s5 + $0xb0] sm:$0xf]
    %v105 = vld [vmem:[%s5 + $0xb4] sm:$0xf]
    %v106 = vld [vmem:[%s5 + $0xb8] sm:$0xf]
    %v107 = vld [vmem:[%s5 + $0xbc] sm:$0xf]
    %v108 = vld [vmem:[%s5 + $0xc0] sm:$0xf]
    %v109 = vld [vmem:[%s5 + $0xc4] sm:$0xf]
    %v110 = vld [vmem:[%s5 + $0xc8] sm:$0xf]
    %v111 = vld [vmem:[%s5 + $0xcc] sm:$0xf]
    %v112 = vld [vmem:[%s5 + $0xd0] sm:$0xf]
    %v113 = vld [vmem:[%s5 + $0xd4] sm:$0xf]
    %v114 = vld [vmem:[%s5 + $0xd8] sm:$0xf]
    %v115 = vld [vmem:[%s5 + $0xdc] sm:$0xf]
    %v116 = vld [vmem:[%s5 + $0xe0] sm:$0xf]
    %v117 = vld [vmem:[%s5 + $0xe4] sm:$0xf]
    %v118 = vld [vmem:[%s5 + $0xe8] sm:$0xf]
    %v119 = vld [vmem:[%s5 + $0xec] sm:$0xf]
    %v120 = vld [vmem:[%s5 + $0xf0] sm:$0xf]
    %v121 = vld [vmem:[%s5 + $0xf4] sm:$0xf]
    %v122 = vld [vmem:[%s5 + $0xf8] sm:$0xf]
    %v123 = vld [vmem:[%s5 + $0xfc] sm:$0xf]
    %v124 = vld [vmem:[%s5 + $0x100] sm:$0xf]
    %v125 = vld [vmem:[%s5 + $0x104] sm:$0xf]
    %v126 = vld [vmem:[%s5 + $0x108] sm:$0xf]
    %v127 = vld [vmem:[%s5 + $0x10c] sm:$0xf]
    %v128 = vld [vmem:[%s5 + $0x110] sm:$0xf]
    %v129 = vld [vmem:[%s5 + $0x114] sm:$0xf]
    %v130 = vld [vmem:[%s5 + $0x118] sm:$0xf]
    %v131 = vld [vmem:[%s5 + $0x11c] sm:$0xf]
    %v132 = vld [vmem:[%s5 + $0x120] sm:$0xf]
    %v133 = vld [vmem:[%s5 + $0x124] sm:$0xf]
    %v134 = vld [vmem:[%s5 + $0x128] sm:$0xf]
    %v135 = vld [vmem:[%s5 + $0x12c] sm:$0xf]
    %v136 = vld [vmem:[%s5 + $0x130] sm:$0xf]
    %v137 = vld [vmem:[%s5 + $0x134] sm:$0xf]
    %v138 = vld [vmem:[%s5 + $0x138] sm:$0xf]
    %v139 = vld [vmem:[%s5 + $0x13c] sm:$0xf]
    %v140 = vld [vmem:[%s5 + $0x140] sm:$0xf]
    %v141 = vld [vmem:[%s5 + $0x144] sm:$0xf]
    %v142 = vld [vmem:[%s5 + $0x148] sm:$0xf]
    %v143 = vld [vmem:[%s5 + $0x14c] sm:$0xf]
    %v144 = vld [vmem:[%s5 + $0x150] sm:$0xf]
    %v145 = vld [vmem:[%s5 + $0x154] sm:$0xf]
    %v146 = vld [vmem:[%s5 + $0x158] sm:$0xf]
    %v147 = vld [vmem:[%s5 + $0x15c] sm:$0xf]
    %v148 = vld [vmem:[%s5 + $0x160] sm:$0xf]
    %v149 = vld [vmem:[%s5 + $0x164] sm:$0xf]
    %v150 = vld [vmem:[%s5 + $0x168] sm:$0xf]
    %v151 = vld [vmem:[%s5 + $0x16c] sm:$0xf]
    %v152 = vld [vmem:[%s5 + $0x170] sm:$0xf]
    %v153 = vld [vmem:[%s5 + $0x174] sm:$0xf]
    %v154 = vld [vmem:[%s5 + $0x178] sm:$0xf]
    %v155 = vld [vmem:[%s5 + $0x17c] sm:$0xf]
    %v156 = vld [vmem:[%s5 + $0x180] sm:$0xf]
    %v157 = vld [vmem:[%s5 + $0x184] sm:$0xf]
    %v158 = vld [vmem:[%s5 + $0x188] sm:$0xf]
    %v159 = vld [vmem:[%s5 + $0x18c] sm:$0xf]
    %v160 = vld [vmem:[%s5 + $0x190] sm:$0xf]
    %v161 = vld [vmem:[%s5 + $0x194] sm:$0xf]
    %v162 = vld [vmem:[%s5 + $0x198] sm:$0xf]
    %v163 = vld [vmem:[%s5 + $0x19c] sm:$0xf]
    %v164 = vld [vmem:[%s5 + $0x1a0] sm:$0xf]
    %v165 = vld [vmem:[%s5 + $0x1a4] sm:$0xf]
    %v166 = vld [vmem:[%s5 + $0x1a8] sm:$0xf]
    %v167 = vld [vmem:[%s5 + $0x1ac] sm:$0xf]
    %v168 = vld [vmem:[%s5 + $0x1b0] sm:$0xf]
    %v169 = vld [vmem:[%s5 + $0x1b4] sm:$0xf]
    %v170 = vld [vmem:[%s5 + $0x1b8] sm:$0xf]
    %v171 = vld [vmem:[%s5 + $0x1bc] sm:$0xf]
    %v172 = vld [vmem:[%s5 + $0x1c0] sm:$0xf]
    %v173 = vld [vmem:[%s5 + $0x1c4] sm:$0xf]
    %v174 = vld [vmem:[%s5 + $0x1c8] sm:$0xf]
    %v175 = vld [vmem:[%s5 + $0x1cc] sm:$0xf]
    %v176 = vld [vmem:[%s5 + $0x1d0] sm:$0xf]
    %v177 = vld [vmem:[%s5 + $0x1d4] sm:$0xf]
    %v178 = vld [vmem:[%s5 + $0x1d8] sm:$0xf]
    %v179 = vld [vmem:[%s5 + $0x1dc] sm:$0xf]
    %v180 = vld [vmem:[%s5 + $0x1e0] sm:$0xf]
    %v181 = vld [vmem:[%s5 + $0x1e4] sm:$0xf]
    %v182 = vld [vmem:[%s5 + $0x1e8] sm:$0xf]
    %v183 = vld [vmem:[%s5 + $0x1ec] sm:$0xf]
    %v184 = vld [vmem:[%s5 + $0x1f0] sm:$0xf]
    %v185 = vld [vmem:[%s5 + $0x1f4] sm:$0xf]
    %v186 = vld [vmem:[%s5 + $0x1f8] sm:$0xf]
    %v187 = vld [vmem:[%s5 + $0x1fc] sm:$0xf]
    %v188 = vld [vmem:[%s5 + $0x200] sm:$0xf]
    %v189 = vld [vmem:[%s5 + $0x204] sm:$0xf]
    %v190 = vld [vmem:[%s5 + $0x208] sm:$0xf]
    %v191 = vld [vmem:[%s5 + $0x20c] sm:$0xf]
    %v192 = vld [vmem:[%s5 + $0x210] sm:$0xf]
    %v193 = vld [vmem:[%s5 + $0x214] sm:$0xf]
    %v194 = vld [vmem:[%s5 + $0x218] sm:$0xf]
    %v195 = vld [vmem:[%s5 + $0x21c] sm:$0xf]
    %v196 = vld [vmem:[%s5 + $0x220] sm:$0xf]
    %v197 = vld [vmem:[%s5 + $0x224] sm:$0xf]
    %v198 = vld [vmem:[%s5 + $0x228] sm:$0xf]
    %v199 = vld [vmem:[%s5 + $0x22c] sm:$0xf]
    %v200 = vld [vmem:[%s5 + $0x230] sm:$0xf]
    %v201 = vld [vmem:[%s5 + $0x234] sm:$0xf]
    %v202 = vld [vmem:[%s5 + $0x238] sm:$0xf]
    %v203 = vld [vmem:[%s5 + $0x23c] sm:$0xf]
    %v204 = vld [vmem:[%s5 + $0x240] sm:$0xf]
    %v205 = vld [vmem:[%s5 + $0x244] sm:$0xf]
    %v206 = vld [vmem:[%s5 + $0x248] sm:$0xf]
    %v207 = vld [vmem:[%s5 + $0x24c] sm:$0xf]
    %v208 = vld [vmem:[%s5 + $0x250] sm:$0xf]
    %v209 = vld [vmem:[%s5 + $0x254] sm:$0xf]
    %v210 = vld [vmem:[%s5 + $0x258] sm:$0xf]
    %v211 = vld [vmem:[%s5 + $0x25c] sm:$0xf]
    %v212 = vld [vmem:[%s5 + $0x260] sm:$0xf]
    %v213 = vld [vmem:[%s5 + $0x264] sm:$0xf]
    %v214 = vld [vmem:[%s5 + $0x268] sm:$0xf]
    %v215 = vld [vmem:[%s5 + $0x26c] sm:$0xf]
    %v216 = vld [vmem:[%s5 + $0x270] sm:$0xf]
    %v217 = vld [vmem:[%s5 + $0x274] sm:$0xf]
    %v218 = vld [vmem:[%s5 + $0x278] sm:$0xf]
    %v219 = vld [vmem:[%s5 + $0x27c] sm:$0xf]
    %v220 = vld [vmem:[%s5 + $0x280] sm:$0xf]
    %v221 = vld [vmem:[%s5 + $0x284] sm:$0xf]
    %v222 = vld [vmem:[%s5 + $0x288] sm:$0xf]
    %v223 = vld [vmem:[%s5 + $0x28c] sm:$0xf]
    %v224 = vld [vmem:[%s5 + $0x290] sm:$0xf]
    %v225 = vld [vmem:[%s5 + $0x294] sm:$0xf]
    %v226 = vld [vmem:[%s5 + $0x298] sm:$0xf]
    %v227 = vld [vmem:[%s5 + $0x29c] sm:$0xf]
    %v228 = vld [vmem:[%s5 + $0x2a0] sm:$0xf]
    %v229 = vld [vmem:[%s5 + $0x2a4] sm:$0xf]
    %v230 = vld [vmem:[%s5 + $0x2a8] sm:$0xf]
    %v231 = vld [vmem:[%s5 + $0x2ac] sm:$0xf]
    %v232 = vld [vmem:[%s5 + $0x2b0] sm:$0xf]
    %v233 = vld [vmem:[%s5 + $0x2b4] sm:$0xf]
    %v234 = vld [vmem:[%s5 + $0x2b8] sm:$0xf]
    %v235 = vld [vmem:[%s5 + $0x2bc] sm:$0xf]
    %v236 = vld [vmem:[%s5 + $0x2c0] sm:$0xf]
    %v237 = vld [vmem:[%s5 + $0x2c4] sm:$0xf]
    %v238 = vld [vmem:[%s5 + $0x2c8] sm:$0xf]
    %v239 = vld [vmem:[%s5 + $0x2cc] sm:$0xf]
    %v240 = vld [vmem:[%s5 + $0x2d0] sm:$0xf]
    %v241 = vld [vmem:[%s5 + $0x2d4] sm:$0xf]
    %v242 = vld [vmem:[%s5 + $0x2d8] sm:$0xf]
    %v243 = vld [vmem:[%s5 + $0x2dc] sm:$0xf]
    %v244 = vld [vmem:[%s5 + $0x2e0] sm:$0xf]
    %v245 = vld [vmem:[%s5 + $0x2e4] sm:$0xf]
    %v246 = vld [vmem:[%s5 + $0x2e8] sm:$0xf]
    %v247 = vld [vmem:[%s5 + $0x2ec] sm:$0xf]
    %v248 = vld [vmem:[%s5 + $0x2f0] sm:$0xf]
    %v249 = vld [vmem:[%s5 + $0x2f4] sm:$0xf]
    %v250 = vld [vmem:[%s5 + $0x2f8] sm:$0xf]
    %v251 = vld [vmem:[%s5 + $0x2fc] sm:$0xf]
    %v252 = vld [vmem:[%s5 + $0x300] sm:$0xf]
    %v253 = vld [vmem:[%s5 + $0x304] sm:$0xf]
    %v254 = vld [vmem:[%s5 + $0x308] sm:$0xf]
    %v255 = vld [vmem:[%s5 + $0x30c] sm:$0xf]
    %v256 = vld [vmem:[%s5 + $0x310] sm:$0xf]
    %v257 = vld [vmem:[%s5 + $0x314] sm:$0xf]
    %v258 = vld [vmem:[%s5 + $0x318] sm:$0xf]
    %v259 = vld [vmem:[%s5 + $0x31c] sm:$0xf]
    %v260 = vld [vmem:[%s5 + $0x320] sm:$0xf]
    %v261 = vld [vmem:[%s5 + $0x324] sm:$0xf]
    %v262 = vld [vmem:[%s5 + $0x328] sm:$0xf]
    %v263 = vld [vmem:[%s5 + $0x32c] sm:$0xf]
    %v264 = vld [vmem:[%s5 + $0x330] sm:$0xf]
    %v265 = vld [vmem:[%s5 + $0x334] sm:$0xf]
    %v266 = vld [vmem:[%s5 + $0x338] sm:$0xf]
    %v267 = vld [vmem:[%s5 + $0x33c] sm:$0xf]
    %v268 = vld [vmem:[%s4] sm:$0xff]
    %270 = vset.pattern.permute.xlu0 0
    %271 = vperm.xlu0 %270, %v268
    %v272 = vpop.permute.xlu0 %271
    %v287 = vunpack.c.l.b16 %v60
    %v288 = vunpack.c.l.b16 %v61
    %v289 = vunpack.c.l.b16 %v62
    %v290 = vunpack.c.l.b16 %v63
    %v291 = vunpack.c.l.b16 %v64
    %v292 = vunpack.c.l.b16 %v65
    %v293 = vunpack.c.l.b16 %v66
    %v294 = vunpack.c.l.b16 %v67
    %v295 = vunpack.c.l.b16 %v68
    %v296 = vunpack.c.l.b16 %v69
    %v297 = vunpack.c.l.b16 %v70
    %v298 = vunpack.c.l.b16 %v71
    %v299 = vunpack.c.l.b16 %v72
    %v300 = vpack.c.b16 %v288, %v287
    %v301 = vpack.c.b16 %v290, %v289
    %v302 = vpack.c.b16 %v292, %v291
    %v303 = vpack.c.b16 %v294, %v293
    %v304 = vpack.c.b16 %v296, %v295
    %v305 = vpack.c.b16 %v298, %v297
    %v306 = vpack.c.b16 %v299, %v299
    %vm313 = vcmask 850944
    %v315 = vsel %vm313, %v59, 0
    %vm317 = vcmask 1043456
    %v319 = vsel %vm317, %v306, 0
    %321 = vmatprep.subr.bf16.mxu0 0
    %322 = vmatpush1.bf16.msra.mxu0 %v300
    %323 = vmatprep.subr.bf16.mxu0 0
    %324 = vmatpush1.bf16.msra.mxu0 %v301
    %325 = vmatprep.subr.bf16.mxu0 0
    %326 = vmatpush1.bf16.msra.mxu0 %v302
    %327 = vmatprep.subr.bf16.mxu0 0
    %328 = vmatpush1.bf16.msra.mxu0 %v303
    %329 = vmatprep.subr.bf16.mxu0 0
    %330 = vmatpush1.bf16.msra.mxu0 %v304
    %331 = vmatprep.subr.bf16.mxu0 0
    %332 = vmatpush1.bf16.msra.mxu0 %v305
    %333 = vmatprep.subr.bf16.mxu0 0
    %334 = vmatpush1.bf16.msra.mxu0 %v319
    %335 = vmatprep.subr.bf16.mxu0 0
    %336 = vmatpush1.bf16.msra.mxu0 0
    %337 = vmatprep.subr.bf16.mxu0 0
    %338 = vmatpush1.bf16.msra.mxu0 0
    %339 = vmatprep.subr.bf16.mxu0 0
    %340 = vmatpush1.bf16.msra.mxu0 0
    %341 = vmatprep.subr.bf16.mxu0 0
    %342 = vmatpush1.bf16.msra.mxu0 0
    %343 = vmatprep.subr.bf16.mxu0 0
    %344 = vmatpush1.bf16.msra.mxu0 0
    %345 = vmatprep.subr.bf16.mxu0 0
    %346 = vmatpush1.bf16.msra.mxu0 0
    %347 = vmatprep.subr.bf16.mxu0 0
    %348 = vmatpush1.bf16.msra.mxu0 0
    %349 = vmatprep.subr.bf16.mxu0 0
    %350 = vmatpush1.bf16.msra.mxu0 0
    %351 = vmatprep.subr.bf16.mxu0 0
    %352 = vmatpush1.bf16.msra.mxu0 0
    %353 = vmatprep.mubr.bf16.mxu0 0
    %354 = vmatmul.mubr.bf16.gmra.mrb[0].mxu0 %v315
    %v355 = vpop.f32.mrb[0].mxu0
    %v356 = vadd.f32 %v272, %v355
    %v357 = vpop.f32.mrb[0].mxu0
    %v358 = vpop.f32.mrb[0].mxu0
    %v359 = vpop.f32.mrb[0].mxu0
    %360 = vdwg.mxu0
    %v374 = vunpack.c.l.b16 %v73
    %v375 = vunpack.c.l.b16 %v74
    %v376 = vunpack.c.l.b16 %v75
    %v377 = vunpack.c.l.b16 %v76
    %v378 = vunpack.c.l.b16 %v77
    %v379 = vunpack.c.l.b16 %v78
    %v380 = vunpack.c.l.b16 %v79
    %v381 = vunpack.c.l.b16 %v80
    %v382 = vunpack.c.l.b16 %v81
    %v383 = vunpack.c.l.b16 %v82
    %v384 = vunpack.c.l.b16 %v83
    %v385 = vunpack.c.l.b16 %v84
    %v386 = vunpack.c.l.b16 %v85
    %v387 = vpack.c.b16 %v375, %v374
    %v388 = vpack.c.b16 %v377, %v376
    %v389 = vpack.c.b16 %v379, %v378
    %v390 = vpack.c.b16 %v381, %v380
    %v391 = vpack.c.b16 %v383, %v382
    %v392 = vpack.c.b16 %v385, %v384
    %v393 = vpack.c.b16 %v386, %v386
    %v401 = vsel %vm317, %v393, 0
    %403 = vmatprep.subr.bf16.mxu0 0
    %404 = vmatpush1.bf16.msra.mxu0 %v387
    %405 = vmatprep.subr.bf16.mxu0 0
    %406 = vmatpush1.bf16.msra.mxu0 %v388
    %407 = vmatprep.subr.bf16.mxu0 0
    %408 = vmatpush1.bf16.msra.mxu0 %v389
    %409 = vmatprep.subr.bf16.mxu0 0
    %410 = vmatpush1.bf16.msra.mxu0 %v390
    %411 = vmatprep.subr.bf16.mxu0 0
    %412 = vmatpush1.bf16.msra.mxu0 %v391
    %413 = vmatprep.subr.bf16.mxu0 0
    %414 = vmatpush1.bf16.msra.mxu0 %v392
    %415 = vmatprep.subr.bf16.mxu0 0
    %416 = vmatpush1.bf16.msra.mxu0 %v401
    %417 = vmatprep.subr.bf16.mxu0 0
    %418 = vmatpush1.bf16.msra.mxu0 0
    %419 = vmatprep.subr.bf16.mxu0 0
    %420 = vmatpush1.bf16.msra.mxu0 0
    %421 = vmatprep.subr.bf16.mxu0 0
    %422 = vmatpush1.bf16.msra.mxu0 0
    %423 = vmatprep.subr.bf16.mxu0 0
    %424 = vmatpush1.bf16.msra.mxu0 0
    %425 = vmatprep.subr.bf16.mxu0 0
    %426 = vmatpush1.bf16.msra.mxu0 0
    %427 = vmatprep.subr.bf16.mxu0 0
    %428 = vmatpush1.bf16.msra.mxu0 0
    %429 = vmatprep.subr.bf16.mxu0 0
    %430 = vmatpush1.bf16.msra.mxu0 0
    %431 = vmatprep.subr.bf16.mxu0 0
    %432 = vmatpush1.bf16.msra.mxu0 0
    %433 = vmatprep.subr.bf16.mxu0 0
    %434 = vmatpush1.bf16.msra.mxu0 0
    %435 = vmatprep.mubr.bf16.mxu0 0
    %436 = vmatmul.mubr.bf16.gmra.mrb[0].mxu0 %v315
    %v437 = vpop.f32.mrb[0].mxu0
    %v438 = vadd.f32 %v272, %v437
    %v439 = vpop.f32.mrb[0].mxu0
    %v440 = vpop.f32.mrb[0].mxu0
    %v441 = vpop.f32.mrb[0].mxu0
    %442 = vdwg.mxu0
    %v456 = vunpack.c.l.b16 %v86
    %v457 = vunpack.c.l.b16 %v87
    %v458 = vunpack.c.l.b16 %v88
    %v459 = vunpack.c.l.b16 %v89
    %v460 = vunpack.c.l.b16 %v90
    %v461 = vunpack.c.l.b16 %v91
    %v462 = vunpack.c.l.b16 %v92
    %v463 = vunpack.c.l.b16 %v93
    %v464 = vunpack.c.l.b16 %v94
    %v465 = vunpack.c.l.b16 %v95
    %v466 = vunpack.c.l.b16 %v96
    %v467 = vunpack.c.l.b16 %v97
    %v468 = vunpack.c.l.b16 %v98
    %v469 = vpack.c.b16 %v457, %v456
    %v470 = vpack.c.b16 %v459, %v458
    %v471 = vpack.c.b16 %v461, %v460
    %v472 = vpack.c.b16 %v463, %v462
    %v473 = vpack.c.b16 %v465, %v464
    %v474 = vpack.c.b16 %v467, %v466
    %v475 = vpack.c.b16 %v468, %v468
    %v483 = vsel %vm317, %v475, 0
    %485 = vmatprep.subr.bf16.mxu0 0
    %486 = vmatpush1.bf16.msra.mxu0 %v469
    %487 = vmatprep.subr.bf16.mxu0 0
    %488 = vmatpush1.bf16.msra.mxu0 %v470
    %489 = vmatprep.subr.bf16.mxu0 0
    %490 = vmatpush1.bf16.msra.mxu0 %v471
    %491 = vmatprep.subr.bf16.mxu0 0
    %492 = vmatpush1.bf16.msra.mxu0 %v472
    %493 = vmatprep.subr.bf16.mxu0 0
    %494 = vmatpush1.bf16.msra.mxu0 %v473
    %495 = vmatprep.subr.bf16.mxu0 0
    %496 = vmatpush1.bf16.msra.mxu0 %v474
    %497 = vmatprep.subr.bf16.mxu0 0
    %498 = vmatpush1.bf16.msra.mxu0 %v483
    %499 = vmatprep.subr.bf16.mxu0 0
    %500 = vmatpush1.bf16.msra.mxu0 0
    %501 = vmatprep.subr.bf16.mxu0 0
    %502 = vmatpush1.bf16.msra.mxu0 0
    %503 = vmatprep.subr.bf16.mxu0 0
    %504 = vmatpush1.bf16.msra.mxu0 0
    %505 = vmatprep.subr.bf16.mxu0 0
    %506 = vmatpush1.bf16.msra.mxu0 0
    %507 = vmatprep.subr.bf16.mxu0 0
    %508 = vmatpush1.bf16.msra.mxu0 0
    %509 = vmatprep.subr.bf16.mxu0 0
    %510 = vmatpush1.bf16.msra.mxu0 0
    %511 = vmatprep.subr.bf16.mxu0 0
    %512 = vmatpush1.bf16.msra.mxu0 0
    %513 = vmatprep.subr.bf16.mxu0 0
    %514 = vmatpush1.bf16.msra.mxu0 0
    %515 = vmatprep.subr.bf16.mxu0 0
    %516 = vmatpush1.bf16.msra.mxu0 0
    %517 = vmatprep.mubr.bf16.mxu0 0
    %518 = vmatmul.mubr.bf16.gmra.mrb[0].mxu0 %v315
    %v519 = vpop.f32.mrb[0].mxu0
    %v520 = vadd.f32 %v272, %v519
    %v521 = vpop.f32.mrb[0].mxu0
    %v522 = vpop.f32.mrb[0].mxu0
    %v523 = vpop.f32.mrb[0].mxu0
    %524 = vdwg.mxu0
    %v538 = vunpack.c.l.b16 %v99
    %v539 = vunpack.c.l.b16 %v100
    %v540 = vunpack.c.l.b16 %v101
    %v541 = vunpack.c.l.b16 %v102
    %v542 = vunpack.c.l.b16 %v103
    %v543 = vunpack.c.l.b16 %v104
    %v544 = vunpack.c.l.b16 %v105
    %v545 = vunpack.c.l.b16 %v106
    %v546 = vunpack.c.l.b16 %v107
    %v547 = vunpack.c.l.b16 %v108
    %v548 = vunpack.c.l.b16 %v109
    %v549 = vunpack.c.l.b16 %v110
    %v550 = vunpack.c.l.b16 %v111
    %v551 = vpack.c.b16 %v539, %v538
    %v552 = vpack.c.b16 %v541, %v540
    %v553 = vpack.c.b16 %v543, %v542
    %v554 = vpack.c.b16 %v545, %v544
    %v555 = vpack.c.b16 %v547, %v546
    %v556 = vpack.c.b16 %v549, %v548
    %v557 = vpack.c.b16 %v550, %v550
    %v565 = vsel %vm317, %v557, 0
    %567 = vmatprep.subr.bf16.mxu0 0
    %568 = vmatpush1.bf16.msra.mxu0 %v551
    %569 = vmatprep.subr.bf16.mxu0 0
    %570 = vmatpush1.bf16.msra.mxu0 %v552
    %571 = vmatprep.subr.bf16.mxu0 0
    %572 = vmatpush1.bf16.msra.mxu0 %v553
    %573 = vmatprep.subr.bf16.mxu0 0
    %574 = vmatpush1.bf16.msra.mxu0 %v554
    %575 = vmatprep.subr.bf16.mxu0 0
    %576 = vmatpush1.bf16.msra.mxu0 %v555
    %577 = vmatprep.subr.bf16.mxu0 0
    %578 = vmatpush1.bf16.msra.mxu0 %v556
    %579 = vmatprep.subr.bf16.mxu0 0
    %580 = vmatpush1.bf16.msra.mxu0 %v565
    %581 = vmatprep.subr.bf16.mxu0 0
    %582 = vmatpush1.bf16.msra.mxu0 0
    %583 = vmatprep.subr.bf16.mxu0 0
    %584 = vmatpush1.bf16.msra.mxu0 0
    %585 = vmatprep.subr.bf16.mxu0 0
    %586 = vmatpush1.bf16.msra.mxu0 0
    %587 = vmatprep.subr.bf16.mxu0 0
    %588 = vmatpush1.bf16.msra.mxu0 0
    %589 = vmatprep.subr.bf16.mxu0 0
    %590 = vmatpush1.bf16.msra.mxu0 0
    %591 = vmatprep.subr.bf16.mxu0 0
    %592 = vmatpush1.bf16.msra.mxu0 0
    %593 = vmatprep.subr.bf16.mxu0 0
    %594 = vmatpush1.bf16.msra.mxu0 0
    %595 = vmatprep.subr.bf16.mxu0 0
    %596 = vmatpush1.bf16.msra.mxu0 0
    %597 = vmatprep.subr.bf16.mxu0 0
    %598 = vmatpush1.bf16.msra.mxu0 0
    %599 = vmatprep.mubr.bf16.mxu0 0
    %600 = vmatmul.mubr.bf16.gmra.mrb[0].mxu0 %v315
    %v601 = vpop.f32.mrb[0].mxu0
    %v602 = vadd.f32 %v272, %v601
    %v603 = vpop.f32.mrb[0].mxu0
    %v604 = vpop.f32.mrb[0].mxu0
    %v605 = vpop.f32.mrb[0].mxu0
    %606 = vdwg.mxu0
    %v620 = vunpack.c.l.b16 %v112
    %v621 = vunpack.c.l.b16 %v113
    %v622 = vunpack.c.l.b16 %v114
    %v623 = vunpack.c.l.b16 %v115
    %v624 = vunpack.c.l.b16 %v116
    %v625 = vunpack.c.l.b16 %v117
    %v626 = vunpack.c.l.b16 %v118
    %v627 = vunpack.c.l.b16 %v119
    %v628 = vunpack.c.l.b16 %v120
    %v629 = vunpack.c.l.b16 %v121
    %v630 = vunpack.c.l.b16 %v122
    %v631 = vunpack.c.l.b16 %v123
    %v632 = vunpack.c.l.b16 %v124
    %v633 = vpack.c.b16 %v621, %v620
    %v634 = vpack.c.b16 %v623, %v622
    %v635 = vpack.c.b16 %v625, %v624
    %v636 = vpack.c.b16 %v627, %v626
    %v637 = vpack.c.b16 %v629, %v628
    %v638 = vpack.c.b16 %v631, %v630
    %v639 = vpack.c.b16 %v632, %v632
    %v647 = vsel %vm317, %v639, 0
    %649 = vmatprep.subr.bf16.mxu0 0
    %650 = vmatpush1.bf16.msra.mxu0 %v633
    %651 = vmatprep.subr.bf16.mxu0 0
    %652 = vmatpush1.bf16.msra.mxu0 %v634
    %653 = vmatprep.subr.bf16.mxu0 0
    %654 = vmatpush1.bf16.msra.mxu0 %v635
    %655 = vmatprep.subr.bf16.mxu0 0
    %656 = vmatpush1.bf16.msra.mxu0 %v636
    %657 = vmatprep.subr.bf16.mxu0 0
    %658 = vmatpush1.bf16.msra.mxu0 %v637
    %659 = vmatprep.subr.bf16.mxu0 0
    %660 = vmatpush1.bf16.msra.mxu0 %v638
    %661 = vmatprep.subr.bf16.mxu0 0
    %662 = vmatpush1.bf16.msra.mxu0 %v647
    %663 = vmatprep.subr.bf16.mxu0 0
    %664 = vmatpush1.bf16.msra.mxu0 0
    %665 = vmatprep.subr.bf16.mxu0 0
    %666 = vmatpush1.bf16.msra.mxu0 0
    %667 = vmatprep.subr.bf16.mxu0 0
    %668 = vmatpush1.bf16.msra.mxu0 0
    %669 = vmatprep.subr.bf16.mxu0 0
    %670 = vmatpush1.bf16.msra.mxu0 0
    %671 = vmatprep.subr.bf16.mxu0 0
    %672 = vmatpush1.bf16.msra.mxu0 0
    %673 = vmatprep.subr.bf16.mxu0 0
    %674 = vmatpush1.bf16.msra.mxu0 0
    %675 = vmatprep.subr.bf16.mxu0 0
    %676 = vmatpush1.bf16.msra.mxu0 0
    %677 = vmatprep.subr.bf16.mxu0 0
    %678 = vmatpush1.bf16.msra.mxu0 0
    %679 = vmatprep.subr.bf16.mxu0 0
    %680 = vmatpush1.bf16.msra.mxu0 0
    %681 = vmatprep.mubr.bf16.mxu0 0
    %682 = vmatmul.mubr.bf16.gmra.mrb[0].mxu0 %v315
    %v683 = vpop.f32.mrb[0].mxu0
    %v684 = vadd.f32 %v272, %v683
    %v685 = vpop.f32.mrb[0].mxu0
    %v686 = vpop.f32.mrb[0].mxu0
    %v687 = vpop.f32.mrb[0].mxu0
    %688 = vdwg.mxu0
    %v702 = vunpack.c.l.b16 %v125
    %v703 = vunpack.c.l.b16 %v126
    %v704 = vunpack.c.l.b16 %v127
    %v705 = vunpack.c.l.b16 %v128
    %v706 = vunpack.c.l.b16 %v129
    %v707 = vunpack.c.l.b16 %v130
    %v708 = vunpack.c.l.b16 %v131
    %v709 = vunpack.c.l.b16 %v132
    %v710 = vunpack.c.l.b16 %v133
    %v711 = vunpack.c.l.b16 %v134
    %v712 = vunpack.c.l.b16 %v135
    %v713 = vunpack.c.l.b16 %v136
    %v714 = vunpack.c.l.b16 %v137
    %v715 = vpack.c.b16 %v703, %v702
    %v716 = vpack.c.b16 %v705, %v704
    %v717 = vpack.c.b16 %v707, %v706
    %v718 = vpack.c.b16 %v709, %v708
    %v719 = vpack.c.b16 %v711, %v710
    %v720 = vpack.c.b16 %v713, %v712
    %v721 = vpack.c.b16 %v714, %v714
    %v729 = vsel %vm317, %v721, 0
    %731 = vmatprep.subr.bf16.mxu0 0
    %732 = vmatpush1.bf16.msra.mxu0 %v715
    %733 = vmatprep.subr.bf16.mxu0 0
    %734 = vmatpush1.bf16.msra.mxu0 %v716
    %735 = vmatprep.subr.bf16.mxu0 0
    %736 = vmatpush1.bf16.msra.mxu0 %v717
    %737 = vmatprep.subr.bf16.mxu0 0
    %738 = vmatpush1.bf16.msra.mxu0 %v718
    %739 = vmatprep.subr.bf16.mxu0 0
    %740 = vmatpush1.bf16.msra.mxu0 %v719
    %741 = vmatprep.subr.bf16.mxu0 0
    %742 = vmatpush1.bf16.msra.mxu0 %v720
    %743 = vmatprep.subr.bf16.mxu0 0
    %744 = vmatpush1.bf16.msra.mxu0 %v729
    %745 = vmatprep.subr.bf16.mxu0 0
    %746 = vmatpush1.bf16.msra.mxu0 0
    %747 = vmatprep.subr.bf16.mxu0 0
    %748 = vmatpush1.bf16.msra.mxu0 0
    %749 = vmatprep.subr.bf16.mxu0 0
    %750 = vmatpush1.bf16.msra.mxu0 0
    %751 = vmatprep.subr.bf16.mxu0 0
    %752 = vmatpush1.bf16.msra.mxu0 0
    %753 = vmatprep.subr.bf16.mxu0 0
    %754 = vmatpush1.bf16.msra.mxu0 0
    %755 = vmatprep.subr.bf16.mxu0 0
    %756 = vmatpush1.bf16.msra.mxu0 0
    %757 = vmatprep.subr.bf16.mxu0 0
    %758 = vmatpush1.bf16.msra.mxu0 0
    %759 = vmatprep.subr.bf16.mxu0 0
    %760 = vmatpush1.bf16.msra.mxu0 0
    %761 = vmatprep.subr.bf16.mxu0 0
    %762 = vmatpush1.bf16.msra.mxu0 0
    %763 = vmatprep.mubr.bf16.mxu0 0
    %764 = vmatmul.mubr.bf16.gmra.mrb[0].mxu0 %v315
    %v765 = vpop.f32.mrb[0].mxu0
    %v766 = vadd.f32 %v272, %v765
    %v767 = vpop.f32.mrb[0].mxu0
    %v768 = vpop.f32.mrb[0].mxu0
    %v769 = vpop.f32.mrb[0].mxu0
    %770 = vdwg.mxu0
    %v784 = vunpack.c.l.b16 %v138
    %v785 = vunpack.c.l.b16 %v139
    %v786 = vunpack.c.l.b16 %v140
    %v787 = vunpack.c.l.b16 %v141
    %v788 = vunpack.c.l.b16 %v142
    %v789 = vunpack.c.l.b16 %v143
    %v790 = vunpack.c.l.b16 %v144
    %v791 = vunpack.c.l.b16 %v145
    %v792 = vunpack.c.l.b16 %v146
    %v793 = vunpack.c.l.b16 %v147
    %v794 = vunpack.c.l.b16 %v148
    %v795 = vunpack.c.l.b16 %v149
    %v796 = vunpack.c.l.b16 %v150
    %v797 = vpack.c.b16 %v785, %v784
    %v798 = vpack.c.b16 %v787, %v786
    %v799 = vpack.c.b16 %v789, %v788
    %v800 = vpack.c.b16 %v791, %v790
    %v801 = vpack.c.b16 %v793, %v792
    %v802 = vpack.c.b16 %v795, %v794
    %v803 = vpack.c.b16 %v796, %v796
    %v811 = vsel %vm317, %v803, 0
    %813 = vmatprep.subr.bf16.mxu0 0
    %814 = vmatpush1.bf16.msra.mxu0 %v797
    %815 = vmatprep.subr.bf16.mxu0 0
    %816 = vmatpush1.bf16.msra.mxu0 %v798
    %817 = vmatprep.subr.bf16.mxu0 0
    %818 = vmatpush1.bf16.msra.mxu0 %v799
    %819 = vmatprep.subr.bf16.mxu0 0
    %820 = vmatpush1.bf16.msra.mxu0 %v800
    %821 = vmatprep.subr.bf16.mxu0 0
    %822 = vmatpush1.bf16.msra.mxu0 %v801
    %823 = vmatprep.subr.bf16.mxu0 0
    %824 = vmatpush1.bf16.msra.mxu0 %v802
    %825 = vmatprep.subr.bf16.mxu0 0
    %826 = vmatpush1.bf16.msra.mxu0 %v811
    %827 = vmatprep.subr.bf16.mxu0 0
    %828 = vmatpush1.bf16.msra.mxu0 0
    %829 = vmatprep.subr.bf16.mxu0 0
    %830 = vmatpush1.bf16.msra.mxu0 0
    %831 = vmatprep.subr.bf16.mxu0 0
    %832 = vmatpush1.bf16.msra.mxu0 0
    %833 = vmatprep.subr.bf16.mxu0 0
    %834 = vmatpush1.bf16.msra.mxu0 0
    %835 = vmatprep.subr.bf16.mxu0 0
    %836 = vmatpush1.bf16.msra.mxu0 0
    %837 = vmatprep.subr.bf16.mxu0 0
    %838 = vmatpush1.bf16.msra.mxu0 0
    %839 = vmatprep.subr.bf16.mxu0 0
    %840 = vmatpush1.bf16.msra.mxu0 0
    %841 = vmatprep.subr.bf16.mxu0 0
    %842 = vmatpush1.bf16.msra.mxu0 0
    %843 = vmatprep.subr.bf16.mxu0 0
    %844 = vmatpush1.bf16.msra.mxu0 0
    %845 = vmatprep.mubr.bf16.mxu0 0
    %846 = vmatmul.mubr.bf16.gmra.mrb[0].mxu0 %v315
    %v847 = vpop.f32.mrb[0].mxu0
    %v848 = vadd.f32 %v272, %v847
    %v849 = vpop.f32.mrb[0].mxu0
    %v850 = vpop.f32.mrb[0].mxu0
    %v851 = vpop.f32.mrb[0].mxu0
    %852 = vdwg.mxu0
    %v866 = vunpack.c.l.b16 %v151
    %v867 = vunpack.c.l.b16 %v152
    %v868 = vunpack.c.l.b16 %v153
    %v869 = vunpack.c.l.b16 %v154
    %v870 = vunpack.c.l.b16 %v155
    %v871 = vunpack.c.l.b16 %v156
    %v872 = vunpack.c.l.b16 %v157
    %v873 = vunpack.c.l.b16 %v158
    %v874 = vunpack.c.l.b16 %v159
    %v875 = vunpack.c.l.b16 %v160
    %v876 = vunpack.c.l.b16 %v161
    %v877 = vunpack.c.l.b16 %v162
    %v878 = vunpack.c.l.b16 %v163
    %v879 = vpack.c.b16 %v867, %v866
    %v880 = vpack.c.b16 %v869, %v868
    %v881 = vpack.c.b16 %v871, %v870
    %v882 = vpack.c.b16 %v873, %v872
    %v883 = vpack.c.b16 %v875, %v874
    %v884 = vpack.c.b16 %v877, %v876
    %v885 = vpack.c.b16 %v878, %v878
    %v893 = vsel %vm317, %v885, 0
    %895 = vmatprep.subr.bf16.mxu0 0
    %896 = vmatpush1.bf16.msra.mxu0 %v879
    %897 = vmatprep.subr.bf16.mxu0 0
    %898 = vmatpush1.bf16.msra.mxu0 %v880
    %899 = vmatprep.subr.bf16.mxu0 0
    %900 = vmatpush1.bf16.msra.mxu0 %v881
    %901 = vmatprep.subr.bf16.mxu0 0
    %902 = vmatpush1.bf16.msra.mxu0 %v882
    %903 = vmatprep.subr.bf16.mxu0 0
    %904 = vmatpush1.bf16.msra.mxu0 %v883
    %905 = vmatprep.subr.bf16.mxu0 0
    %906 = vmatpush1.bf16.msra.mxu0 %v884
    %907 = vmatprep.subr.bf16.mxu0 0
    %908 = vmatpush1.bf16.msra.mxu0 %v893
    %909 = vmatprep.subr.bf16.mxu0 0
    %910 = vmatpush1.bf16.msra.mxu0 0
    %911 = vmatprep.subr.bf16.mxu0 0
    %912 = vmatpush1.bf16.msra.mxu0 0
    %913 = vmatprep.subr.bf16.mxu0 0
    %914 = vmatpush1.bf16.msra.mxu0 0
    %915 = vmatprep.subr.bf16.mxu0 0
    %916 = vmatpush1.bf16.msra.mxu0 0
    %917 = vmatprep.subr.bf16.mxu0 0
    %918 = vmatpush1.bf16.msra.mxu0 0
    %919 = vmatprep.subr.bf16.mxu0 0
    %920 = vmatpush1.bf16.msra.mxu0 0
    %921 = vmatprep.subr.bf16.mxu0 0
    %922 = vmatpush1.bf16.msra.mxu0 0
    %923 = vmatprep.subr.bf16.mxu0 0
    %924 = vmatpush1.bf16.msra.mxu0 0
    %925 = vmatprep.subr.bf16.mxu0 0
    %926 = vmatpush1.bf16.msra.mxu0 0
    %927 = vmatprep.mubr.bf16.mxu0 0
    %928 = vmatmul.mubr.bf16.gmra.mrb[0].mxu0 %v315
    %v929 = vpop.f32.mrb[0].mxu0
    %v930 = vadd.f32 %v272, %v929
    %v931 = vpop.f32.mrb[0].mxu0
    %v932 = vpop.f32.mrb[0].mxu0
    %v933 = vpop.f32.mrb[0].mxu0
    %934 = vdwg.mxu0
    %v948 = vunpack.c.l.b16 %v164
    %v949 = vunpack.c.l.b16 %v165
    %v950 = vunpack.c.l.b16 %v166
    %v951 = vunpack.c.l.b16 %v167
    %v952 = vunpack.c.l.b16 %v168
    %v953 = vunpack.c.l.b16 %v169
    %v954 = vunpack.c.l.b16 %v170
    %v955 = vunpack.c.l.b16 %v171
    %v956 = vunpack.c.l.b16 %v172
    %v957 = vunpack.c.l.b16 %v173
    %v958 = vunpack.c.l.b16 %v174
    %v959 = vunpack.c.l.b16 %v175
    %v960 = vunpack.c.l.b16 %v176
    %v961 = vpack.c.b16 %v949, %v948
    %v962 = vpack.c.b16 %v951, %v950
    %v963 = vpack.c.b16 %v953, %v952
    %v964 = vpack.c.b16 %v955, %v954
    %v965 = vpack.c.b16 %v957, %v956
    %v966 = vpack.c.b16 %v959, %v958
    %v967 = vpack.c.b16 %v960, %v960
    %v975 = vsel %vm317, %v967, 0
    %977 = vmatprep.subr.bf16.mxu0 0
    %978 = vmatpush1.bf16.msra.mxu0 %v961
    %979 = vmatprep.subr.bf16.mxu0 0
    %980 = vmatpush1.bf16.msra.mxu0 %v962
    %981 = vmatprep.subr.bf16.mxu0 0
    %982 = vmatpush1.bf16.msra.mxu0 %v963
    %983 = vmatprep.subr.bf16.mxu0 0
    %984 = vmatpush1.bf16.msra.mxu0 %v964
    %985 = vmatprep.subr.bf16.mxu0 0
    %986 = vmatpush1.bf16.msra.mxu0 %v965
    %987 = vmatprep.subr.bf16.mxu0 0
    %988 = vmatpush1.bf16.msra.mxu0 %v966
    %989 = vmatprep.subr.bf16.mxu0 0
    %990 = vmatpush1.bf16.msra.mxu0 %v975
    %991 = vmatprep.subr.bf16.mxu0 0
    %992 = vmatpush1.bf16.msra.mxu0 0
    %993 = vmatprep.subr.bf16.mxu0 0
    %994 = vmatpush1.bf16.msra.mxu0 0
    %995 = vmatprep.subr.bf16.mxu0 0
    %996 = vmatpush1.bf16.msra.mxu0 0
    %997 = vmatprep.subr.bf16.mxu0 0
    %998 = vmatpush1.bf16.msra.mxu0 0
    %999 = vmatprep.subr.bf16.mxu0 0
    %1000 = vmatpush1.bf16.msra.mxu0 0
    %1001 = vmatprep.subr.bf16.mxu0 0
    %1002 = vmatpush1.bf16.msra.mxu0 0
    %1003 = vmatprep.subr.bf16.mxu0 0
    %1004 = vmatpush1.bf16.msra.mxu0 0
    %1005 = vmatprep.subr.bf16.mxu0 0
    %1006 = vmatpush1.bf16.msra.mxu0 0
    %1007 = vmatprep.subr.bf16.mxu0 0
    %1008 = vmatpush1.bf16.msra.mxu0 0
    %1009 = vmatprep.mubr.bf16.mxu0 0
    %1010 = vmatmul.mubr.bf16.gmra.mrb[0].mxu0 %v315
    %v1011 = vpop.f32.mrb[0].mxu0
    %v1012 = vadd.f32 %v272, %v1011
    %v1013 = vpop.f32.mrb[0].mxu0
    %v1014 = vpop.f32.mrb[0].mxu0
    %v1015 = vpop.f32.mrb[0].mxu0
    %1016 = vdwg.mxu0
    %v1030 = vunpack.c.l.b16 %v177
    %v1031 = vunpack.c.l.b16 %v178
    %v1032 = vunpack.c.l.b16 %v179
    %v1033 = vunpack.c.l.b16 %v180
    %v1034 = vunpack.c.l.b16 %v181
    %v1035 = vunpack.c.l.b16 %v182
    %v1036 = vunpack.c.l.b16 %v183
    %v1037 = vunpack.c.l.b16 %v184
    %v1038 = vunpack.c.l.b16 %v185
    %v1039 = vunpack.c.l.b16 %v186
    %v1040 = vunpack.c.l.b16 %v187
    %v1041 = vunpack.c.l.b16 %v188
    %v1042 = vunpack.c.l.b16 %v189
    %v1043 = vpack.c.b16 %v1031, %v1030
    %v1044 = vpack.c.b16 %v1033, %v1032
    %v1045 = vpack.c.b16 %v1035, %v1034
    %v1046 = vpack.c.b16 %v1037, %v1036
    %v1047 = vpack.c.b16 %v1039, %v1038
    %v1048 = vpack.c.b16 %v1041, %v1040
    %v1049 = vpack.c.b16 %v1042, %v1042
    %v1057 = vsel %vm317, %v1049, 0
    %1059 = vmatprep.subr.bf16.mxu0 0
    %1060 = vmatpush1.bf16.msra.mxu0 %v1043
    %1061 = vmatprep.subr.bf16.mxu0 0
    %1062 = vmatpush1.bf16.msra.mxu0 %v1044
    %1063 = vmatprep.subr.bf16.mxu0 0
    %1064 = vmatpush1.bf16.msra.mxu0 %v1045
    %1065 = vmatprep.subr.bf16.mxu0 0
    %1066 = vmatpush1.bf16.msra.mxu0 %v1046
    %1067 = vmatprep.subr.bf16.mxu0 0
    %1068 = vmatpush1.bf16.msra.mxu0 %v1047
    %1069 = vmatprep.subr.bf16.mxu0 0
    %1070 = vmatpush1.bf16.msra.mxu0 %v1048
    %1071 = vmatprep.subr.bf16.mxu0 0
    %1072 = vmatpush1.bf16.msra.mxu0 %v1057
    %1073 = vmatprep.subr.bf16.mxu0 0
    %1074 = vmatpush1.bf16.msra.mxu0 0
    %1075 = vmatprep.subr.bf16.mxu0 0
    %1076 = vmatpush1.bf16.msra.mxu0 0
    %1077 = vmatprep.subr.bf16.mxu0 0
    %1078 = vmatpush1.bf16.msra.mxu0 0
    %1079 = vmatprep.subr.bf16.mxu0 0
    %1080 = vmatpush1.bf16.msra.mxu0 0
    %1081 = vmatprep.subr.bf16.mxu0 0
    %1082 = vmatpush1.bf16.msra.mxu0 0
    %1083 = vmatprep.subr.bf16.mxu0 0
    %1084 = vmatpush1.bf16.msra.mxu0 0
    %1085 = vmatprep.subr.bf16.mxu0 0
    %1086 = vmatpush1.bf16.msra.mxu0 0
    %1087 = vmatprep.subr.bf16.mxu0 0
    %1088 = vmatpush1.bf16.msra.mxu0 0
    %1089 = vmatprep.subr.bf16.mxu0 0
    %1090 = vmatpush1.bf16.msra.mxu0 0
    %1091 = vmatprep.mubr.bf16.mxu0 0
    %1092 = vmatmul.mubr.bf16.gmra.mrb[0].mxu0 %v315
    %v1093 = vpop.f32.mrb[0].mxu0
    %v1094 = vadd.f32 %v272, %v1093
    %v1095 = vpop.f32.mrb[0].mxu0
    %v1096 = vpop.f32.mrb[0].mxu0
    %v1097 = vpop.f32.mrb[0].mxu0
    %1098 = vdwg.mxu0
    %v1112 = vunpack.c.l.b16 %v190
    %v1113 = vunpack.c.l.b16 %v191
    %v1114 = vunpack.c.l.b16 %v192
    %v1115 = vunpack.c.l.b16 %v193
    %v1116 = vunpack.c.l.b16 %v194
    %v1117 = vunpack.c.l.b16 %v195
    %v1118 = vunpack.c.l.b16 %v196
    %v1119 = vunpack.c.l.b16 %v197
    %v1120 = vunpack.c.l.b16 %v198
    %v1121 = vunpack.c.l.b16 %v199
    %v1122 = vunpack.c.l.b16 %v200
    %v1123 = vunpack.c.l.b16 %v201
    %v1124 = vunpack.c.l.b16 %v202
    %v1125 = vpack.c.b16 %v1113, %v1112
    %v1126 = vpack.c.b16 %v1115, %v1114
    %v1127 = vpack.c.b16 %v1117, %v1116
    %v1128 = vpack.c.b16 %v1119, %v1118
    %v1129 = vpack.c.b16 %v1121, %v1120
    %v1130 = vpack.c.b16 %v1123, %v1122
    %v1131 = vpack.c.b16 %v1124, %v1124
    %v1139 = vsel %vm317, %v1131, 0
    %1141 = vmatprep.subr.bf16.mxu0 0
    %1142 = vmatpush1.bf16.msra.mxu0 %v1125
    %1143 = vmatprep.subr.bf16.mxu0 0
    %1144 = vmatpush1.bf16.msra.mxu0 %v1126
    %1145 = vmatprep.subr.bf16.mxu0 0
    %1146 = vmatpush1.bf16.msra.mxu0 %v1127
    %1147 = vmatprep.subr.bf16.mxu0 0
    %1148 = vmatpush1.bf16.msra.mxu0 %v1128
    %1149 = vmatprep.subr.bf16.mxu0 0
    %1150 = vmatpush1.bf16.msra.mxu0 %v1129
    %1151 = vmatprep.subr.bf16.mxu0 0
    %1152 = vmatpush1.bf16.msra.mxu0 %v1130
    %1153 = vmatprep.subr.bf16.mxu0 0
    %1154 = vmatpush1.bf16.msra.mxu0 %v1139
    %1155 = vmatprep.subr.bf16.mxu0 0
    %1156 = vmatpush1.bf16.msra.mxu0 0
    %1157 = vmatprep.subr.bf16.mxu0 0
    %1158 = vmatpush1.bf16.msra.mxu0 0
    %1159 = vmatprep.subr.bf16.mxu0 0
    %1160 = vmatpush1.bf16.msra.mxu0 0
    %1161 = vmatprep.subr.bf16.mxu0 0
    %1162 = vmatpush1.bf16.msra.mxu0 0
    %1163 = vmatprep.subr.bf16.mxu0 0
    %1164 = vmatpush1.bf16.msra.mxu0 0
    %1165 = vmatprep.subr.bf16.mxu0 0
    %1166 = vmatpush1.bf16.msra.mxu0 0
    %1167 = vmatprep.subr.bf16.mxu0 0
    %1168 = vmatpush1.bf16.msra.mxu0 0
    %1169 = vmatprep.subr.bf16.mxu0 0
    %1170 = vmatpush1.bf16.msra.mxu0 0
    %1171 = vmatprep.subr.bf16.mxu0 0
    %1172 = vmatpush1.bf16.msra.mxu0 0
    %1173 = vmatprep.mubr.bf16.mxu0 0
    %1174 = vmatmul.mubr.bf16.gmra.mrb[0].mxu0 %v315
    %v1175 = vpop.f32.mrb[0].mxu0
    %v1176 = vadd.f32 %v272, %v1175
    %v1177 = vpop.f32.mrb[0].mxu0
    %v1178 = vpop.f32.mrb[0].mxu0
    %v1179 = vpop.f32.mrb[0].mxu0
    %1180 = vdwg.mxu0
    %v1194 = vunpack.c.l.b16 %v203
    %v1195 = vunpack.c.l.b16 %v204
    %v1196 = vunpack.c.l.b16 %v205
    %v1197 = vunpack.c.l.b16 %v206
    %v1198 = vunpack.c.l.b16 %v207
    %v1199 = vunpack.c.l.b16 %v208
    %v1200 = vunpack.c.l.b16 %v209
    %v1201 = vunpack.c.l.b16 %v210
    %v1202 = vunpack.c.l.b16 %v211
    %v1203 = vunpack.c.l.b16 %v212
    %v1204 = vunpack.c.l.b16 %v213
    %v1205 = vunpack.c.l.b16 %v214
    %v1206 = vunpack.c.l.b16 %v215
    %v1207 = vpack.c.b16 %v1195, %v1194
    %v1208 = vpack.c.b16 %v1197, %v1196
    %v1209 = vpack.c.b16 %v1199, %v1198
    %v1210 = vpack.c.b16 %v1201, %v1200
    %v1211 = vpack.c.b16 %v1203, %v1202
    %v1212 = vpack.c.b16 %v1205, %v1204
    %v1213 = vpack.c.b16 %v1206, %v1206
    %v1221 = vsel %vm317, %v1213, 0
    %1223 = vmatprep.subr.bf16.mxu0 0
    %1224 = vmatpush1.bf16.msra.mxu0 %v1207
    %1225 = vmatprep.subr.bf16.mxu0 0
    %1226 = vmatpush1.bf16.msra.mxu0 %v1208
    %1227 = vmatprep.subr.bf16.mxu0 0
    %1228 = vmatpush1.bf16.msra.mxu0 %v1209
    %1229 = vmatprep.subr.bf16.mxu0 0
    %1230 = vmatpush1.bf16.msra.mxu0 %v1210
    %1231 = vmatprep.subr.bf16.mxu0 0
    %1232 = vmatpush1.bf16.msra.mxu0 %v1211
    %1233 = vmatprep.subr.bf16.mxu0 0
    %1234 = vmatpush1.bf16.msra.mxu0 %v1212
    %1235 = vmatprep.subr.bf16.mxu0 0
    %1236 = vmatpush1.bf16.msra.mxu0 %v1221
    %1237 = vmatprep.subr.bf16.mxu0 0
    %1238 = vmatpush1.bf16.msra.mxu0 0
    %1239 = vmatprep.subr.bf16.mxu0 0
    %1240 = vmatpush1.bf16.msra.mxu0 0
    %1241 = vmatprep.subr.bf16.mxu0 0
    %1242 = vmatpush1.bf16.msra.mxu0 0
    %1243 = vmatprep.subr.bf16.mxu0 0
    %1244 = vmatpush1.bf16.msra.mxu0 0
    %1245 = vmatprep.subr.bf16.mxu0 0
    %1246 = vmatpush1.bf16.msra.mxu0 0
    %1247 = vmatprep.subr.bf16.mxu0 0
    %1248 = vmatpush1.bf16.msra.mxu0 0
    %1249 = vmatprep.subr.bf16.mxu0 0
    %1250 = vmatpush1.bf16.msra.mxu0 0
    %1251 = vmatprep.subr.bf16.mxu0 0
    %1252 = vmatpush1.bf16.msra.mxu0 0
    %1253 = vmatprep.subr.bf16.mxu0 0
    %1254 = vmatpush1.bf16.msra.mxu0 0
    %1255 = vmatprep.mubr.bf16.mxu0 0
    %1256 = vmatmul.mubr.bf16.gmra.mrb[0].mxu0 %v315
    %v1257 = vpop.f32.mrb[0].mxu0
    %v1258 = vadd.f32 %v272, %v1257
    %v1259 = vpop.f32.mrb[0].mxu0
    %v1260 = vpop.f32.mrb[0].mxu0
    %v1261 = vpop.f32.mrb[0].mxu0
    %1262 = vdwg.mxu0
    %v1276 = vunpack.c.l.b16 %v216
    %v1277 = vunpack.c.l.b16 %v217
    %v1278 = vunpack.c.l.b16 %v218
    %v1279 = vunpack.c.l.b16 %v219
    %v1280 = vunpack.c.l.b16 %v220
    %v1281 = vunpack.c.l.b16 %v221
    %v1282 = vunpack.c.l.b16 %v222
    %v1283 = vunpack.c.l.b16 %v223
    %v1284 = vunpack.c.l.b16 %v224
    %v1285 = vunpack.c.l.b16 %v225
    %v1286 = vunpack.c.l.b16 %v226
    %v1287 = vunpack.c.l.b16 %v227
    %v1288 = vunpack.c.l.b16 %v228
    %v1289 = vpack.c.b16 %v1277, %v1276
    %v1290 = vpack.c.b16 %v1279, %v1278
    %v1291 = vpack.c.b16 %v1281, %v1280
    %v1292 = vpack.c.b16 %v1283, %v1282
    %v1293 = vpack.c.b16 %v1285, %v1284
    %v1294 = vpack.c.b16 %v1287, %v1286
    %v1295 = vpack.c.b16 %v1288, %v1288
    %v1303 = vsel %vm317, %v1295, 0
    %1305 = vmatprep.subr.bf16.mxu0 0
    %1306 = vmatpush1.bf16.msra.mxu0 %v1289
    %1307 = vmatprep.subr.bf16.mxu0 0
    %1308 = vmatpush1.bf16.msra.mxu0 %v1290
    %1309 = vmatprep.subr.bf16.mxu0 0
    %1310 = vmatpush1.bf16.msra.mxu0 %v1291
    %1311 = vmatprep.subr.bf16.mxu0 0
    %1312 = vmatpush1.bf16.msra.mxu0 %v1292
    %1313 = vmatprep.subr.bf16.mxu0 0
    %1314 = vmatpush1.bf16.msra.mxu0 %v1293
    %1315 = vmatprep.subr.bf16.mxu0 0
    %1316 = vmatpush1.bf16.msra.mxu0 %v1294
    %1317 = vmatprep.subr.bf16.mxu0 0
    %1318 = vmatpush1.bf16.msra.mxu0 %v1303
    %1319 = vmatprep.subr.bf16.mxu0 0
    %1320 = vmatpush1.bf16.msra.mxu0 0
    %1321 = vmatprep.subr.bf16.mxu0 0
    %1322 = vmatpush1.bf16.msra.mxu0 0
    %1323 = vmatprep.subr.bf16.mxu0 0
    %1324 = vmatpush1.bf16.msra.mxu0 0
    %1325 = vmatprep.subr.bf16.mxu0 0
    %1326 = vmatpush1.bf16.msra.mxu0 0
    %1327 = vmatprep.subr.bf16.mxu0 0
    %1328 = vmatpush1.bf16.msra.mxu0 0
    %1329 = vmatprep.subr.bf16.mxu0 0
    %1330 = vmatpush1.bf16.msra.mxu0 0
    %1331 = vmatprep.subr.bf16.mxu0 0
    %1332 = vmatpush1.bf16.msra.mxu0 0
    %1333 = vmatprep.subr.bf16.mxu0 0
    %1334 = vmatpush1.bf16.msra.mxu0 0
    %1335 = vmatprep.subr.bf16.mxu0 0
    %1336 = vmatpush1.bf16.msra.mxu0 0
    %1337 = vmatprep.mubr.bf16.mxu0 0
    %1338 = vmatmul.mubr.bf16.gmra.mrb[0].mxu0 %v315
    %v1339 = vpop.f32.mrb[0].mxu0
    %v1340 = vadd.f32 %v272, %v1339
    %v1341 = vpop.f32.mrb[0].mxu0
    %v1342 = vpop.f32.mrb[0].mxu0
    %v1343 = vpop.f32.mrb[0].mxu0
    %1344 = vdwg.mxu0
    %v1358 = vunpack.c.l.b16 %v229
    %v1359 = vunpack.c.l.b16 %v230
    %v1360 = vunpack.c.l.b16 %v231
    %v1361 = vunpack.c.l.b16 %v232
    %v1362 = vunpack.c.l.b16 %v233
    %v1363 = vunpack.c.l.b16 %v234
    %v1364 = vunpack.c.l.b16 %v235
    %v1365 = vunpack.c.l.b16 %v236
    %v1366 = vunpack.c.l.b16 %v237
    %v1367 = vunpack.c.l.b16 %v238
    %v1368 = vunpack.c.l.b16 %v239
    %v1369 = vunpack.c.l.b16 %v240
    %v1370 = vunpack.c.l.b16 %v241
    %v1371 = vpack.c.b16 %v1359, %v1358
    %v1372 = vpack.c.b16 %v1361, %v1360
    %v1373 = vpack.c.b16 %v1363, %v1362
    %v1374 = vpack.c.b16 %v1365, %v1364
    %v1375 = vpack.c.b16 %v1367, %v1366
    %v1376 = vpack.c.b16 %v1369, %v1368
    %v1377 = vpack.c.b16 %v1370, %v1370
    %v1385 = vsel %vm317, %v1377, 0
    %1387 = vmatprep.subr.bf16.mxu0 0
    %1388 = vmatpush1.bf16.msra.mxu0 %v1371
    %1389 = vmatprep.subr.bf16.mxu0 0
    %1390 = vmatpush1.bf16.msra.mxu0 %v1372
    %1391 = vmatprep.subr.bf16.mxu0 0
    %1392 = vmatpush1.bf16.msra.mxu0 %v1373
    %1393 = vmatprep.subr.bf16.mxu0 0
    %1394 = vmatpush1.bf16.msra.mxu0 %v1374
    %1395 = vmatprep.subr.bf16.mxu0 0
    %1396 = vmatpush1.bf16.msra.mxu0 %v1375
    %1397 = vmatprep.subr.bf16.mxu0 0
    %1398 = vmatpush1.bf16.msra.mxu0 %v1376
    %1399 = vmatprep.subr.bf16.mxu0 0
    %1400 = vmatpush1.bf16.msra.mxu0 %v1385
    %1401 = vmatprep.subr.bf16.mxu0 0
    %1402 = vmatpush1.bf16.msra.mxu0 0
    %1403 = vmatprep.subr.bf16.mxu0 0
    %1404 = vmatpush1.bf16.msra.mxu0 0
    %1405 = vmatprep.subr.bf16.mxu0 0
    %1406 = vmatpush1.bf16.msra.mxu0 0
    %1407 = vmatprep.subr.bf16.mxu0 0
    %1408 = vmatpush1.bf16.msra.mxu0 0
    %1409 = vmatprep.subr.bf16.mxu0 0
    %1410 = vmatpush1.bf16.msra.mxu0 0
    %1411 = vmatprep.subr.bf16.mxu0 0
    %1412 = vmatpush1.bf16.msra.mxu0 0
    %1413 = vmatprep.subr.bf16.mxu0 0
    %1414 = vmatpush1.bf16.msra.mxu0 0
    %1415 = vmatprep.subr.bf16.mxu0 0
    %1416 = vmatpush1.bf16.msra.mxu0 0
    %1417 = vmatprep.subr.bf16.mxu0 0
    %1418 = vmatpush1.bf16.msra.mxu0 0
    %1419 = vmatprep.mubr.bf16.mxu0 0
    %1420 = vmatmul.mubr.bf16.gmra.mrb[0].mxu0 %v315
    %v1421 = vpop.f32.mrb[0].mxu0
    %v1422 = vadd.f32 %v272, %v1421
    %v1423 = vpop.f32.mrb[0].mxu0
    %v1424 = vpop.f32.mrb[0].mxu0
    %v1425 = vpop.f32.mrb[0].mxu0
    %1426 = vdwg.mxu0
    %v1440 = vunpack.c.l.b16 %v242
    %v1441 = vunpack.c.l.b16 %v243
    %v1442 = vunpack.c.l.b16 %v244
    %v1443 = vunpack.c.l.b16 %v245
    %v1444 = vunpack.c.l.b16 %v246
    %v1445 = vunpack.c.l.b16 %v247
    %v1446 = vunpack.c.l.b16 %v248
    %v1447 = vunpack.c.l.b16 %v249
    %v1448 = vunpack.c.l.b16 %v250
    %v1449 = vunpack.c.l.b16 %v251
    %v1450 = vunpack.c.l.b16 %v252
    %v1451 = vunpack.c.l.b16 %v253
    %v1452 = vunpack.c.l.b16 %v254
    %v1453 = vpack.c.b16 %v1441, %v1440
    %v1454 = vpack.c.b16 %v1443, %v1442
    %v1455 = vpack.c.b16 %v1445, %v1444
    %v1456 = vpack.c.b16 %v1447, %v1446
    %v1457 = vpack.c.b16 %v1449, %v1448
    %v1458 = vpack.c.b16 %v1451, %v1450
    %v1459 = vpack.c.b16 %v1452, %v1452
    %v1467 = vsel %vm317, %v1459, 0
    %1469 = vmatprep.subr.bf16.mxu0 0
    %1470 = vmatpush1.bf16.msra.mxu0 %v1453
    %1471 = vmatprep.subr.bf16.mxu0 0
    %1472 = vmatpush1.bf16.msra.mxu0 %v1454
    %1473 = vmatprep.subr.bf16.mxu0 0
    %1474 = vmatpush1.bf16.msra.mxu0 %v1455
    %1475 = vmatprep.subr.bf16.mxu0 0
    %1476 = vmatpush1.bf16.msra.mxu0 %v1456
    %1477 = vmatprep.subr.bf16.mxu0 0
    %1478 = vmatpush1.bf16.msra.mxu0 %v1457
    %1479 = vmatprep.subr.bf16.mxu0 0
    %1480 = vmatpush1.bf16.msra.mxu0 %v1458
    %1481 = vmatprep.subr.bf16.mxu0 0
    %1482 = vmatpush1.bf16.msra.mxu0 %v1467
    %1483 = vmatprep.subr.bf16.mxu0 0
    %1484 = vmatpush1.bf16.msra.mxu0 0
    %1485 = vmatprep.subr.bf16.mxu0 0
    %1486 = vmatpush1.bf16.msra.mxu0 0
    %1487 = vmatprep.subr.bf16.mxu0 0
    %1488 = vmatpush1.bf16.msra.mxu0 0
    %1489 = vmatprep.subr.bf16.mxu0 0
    %1490 = vmatpush1.bf16.msra.mxu0 0
    %1491 = vmatprep.subr.bf16.mxu0 0
    %1492 = vmatpush1.bf16.msra.mxu0 0
    %1493 = vmatprep.subr.bf16.mxu0 0
    %1494 = vmatpush1.bf16.msra.mxu0 0
    %1495 = vmatprep.subr.bf16.mxu0 0
    %1496 = vmatpush1.bf16.msra.mxu0 0
    %1497 = vmatprep.subr.bf16.mxu0 0
    %1498 = vmatpush1.bf16.msra.mxu0 0
    %1499 = vmatprep.subr.bf16.mxu0 0
    %1500 = vmatpush1.bf16.msra.mxu0 0
    %1501 = vmatprep.mubr.bf16.mxu0 0
    %1502 = vmatmul.mubr.bf16.gmra.mrb[0].mxu0 %v315
    %v1503 = vpop.f32.mrb[0].mxu0
    %v1504 = vadd.f32 %v272, %v1503
    %v1505 = vpop.f32.mrb[0].mxu0
    %v1506 = vpop.f32.mrb[0].mxu0
    %v1507 = vpop.f32.mrb[0].mxu0
    %1508 = vdwg.mxu0
    %v1522 = vunpack.c.l.b16 %v255
    %v1523 = vunpack.c.l.b16 %v256
    %v1524 = vunpack.c.l.b16 %v257
    %v1525 = vunpack.c.l.b16 %v258
    %v1526 = vunpack.c.l.b16 %v259
    %v1527 = vunpack.c.l.b16 %v260
    %v1528 = vunpack.c.l.b16 %v261
    %v1529 = vunpack.c.l.b16 %v262
    %v1530 = vunpack.c.l.b16 %v263
    %v1531 = vunpack.c.l.b16 %v264
    %v1532 = vunpack.c.l.b16 %v265
    %v1533 = vunpack.c.l.b16 %v266
    %v1534 = vunpack.c.l.b16 %v267
    %v1535 = vpack.c.b16 %v1523, %v1522
    %v1536 = vpack.c.b16 %v1525, %v1524
    %v1537 = vpack.c.b16 %v1527, %v1526
    %v1538 = vpack.c.b16 %v1529, %v1528
    %v1539 = vpack.c.b16 %v1531, %v1530
    %v1540 = vpack.c.b16 %v1533, %v1532
    %v1541 = vpack.c.b16 %v1534, %v1534
    %v1549 = vsel %vm317, %v1541, 0
    %1551 = vmatprep.subr.bf16.mxu0 0
    %1552 = vmatpush1.bf16.msra.mxu0 %v1535
    %1553 = vmatprep.subr.bf16.mxu0 0
    %1554 = vmatpush1.bf16.msra.mxu0 %v1536
    %1555 = vmatprep.subr.bf16.mxu0 0
    %1556 = vmatpush1.bf16.msra.mxu0 %v1537
    %1557 = vmatprep.subr.bf16.mxu0 0
    %1558 = vmatpush1.bf16.msra.mxu0 %v1538
    %1559 = vmatprep.subr.bf16.mxu0 0
    %1560 = vmatpush1.bf16.msra.mxu0 %v1539
    %1561 = vmatprep.subr.bf16.mxu0 0
    %1562 = vmatpush1.bf16.msra.mxu0 %v1540
    %1563 = vmatprep.subr.bf16.mxu0 0
    %1564 = vmatpush1.bf16.msra.mxu0 %v1549
    %1565 = vmatprep.subr.bf16.mxu0 0
    %1566 = vmatpush1.bf16.msra.mxu0 0
    %1567 = vmatprep.subr.bf16.mxu0 0
    %1568 = vmatpush1.bf16.msra.mxu0 0
    %1569 = vmatprep.subr.bf16.mxu0 0
    %1570 = vmatpush1.bf16.msra.mxu0 0
    %1571 = vmatprep.subr.bf16.mxu0 0
    %1572 = vmatpush1.bf16.msra.mxu0 0
    %1573 = vmatprep.subr.bf16.mxu0 0
    %1574 = vmatpush1.bf16.msra.mxu0 0
    %1575 = vmatprep.subr.bf16.mxu0 0
    %1576 = vmatpush1.bf16.msra.mxu0 0
    %1577 = vmatprep.subr.bf16.mxu0 0
    %1578 = vmatpush1.bf16.msra.mxu0 0
    %1579 = vmatprep.subr.bf16.mxu0 0
    %1580 = vmatpush1.bf16.msra.mxu0 0
    %1581 = vmatprep.subr.bf16.mxu0 0
    %1582 = vmatpush1.bf16.msra.mxu0 0
    %1583 = vmatprep.mubr.bf16.mxu0 0
    %1584 = vmatmul.mubr.bf16.gmra.mrb[0].mxu0 %v315
    %v1585 = vpop.f32.mrb[0].mxu0
    %v1586 = vadd.f32 %v272, %v1585
    %v1587 = vpop.f32.mrb[0].mxu0
    %v1588 = vpop.f32.mrb[0].mxu0
    %v1589 = vpop.f32.mrb[0].mxu0
    %1590 = vdwg.mxu0
    %v1591 = vld [vmem:[%s6] sm:$0xf]
    %v1592 = vpack.c.bf16 %v356, %v356
    %v1593 = vpack.c.bf16 %v438, %v438
    %v1594 = vpack.c.bf16 %v520, %v520
    %v1595 = vpack.c.bf16 %v602, %v602
    %v1596 = vpack.c.bf16 %v684, %v684
    %v1597 = vpack.c.bf16 %v766, %v766
    %v1598 = vpack.c.bf16 %v848, %v848
    %v1599 = vpack.c.bf16 %v930, %v930
    %v1600 = vpack.c.bf16 %v1012, %v1012
    %v1601 = vpack.c.bf16 %v1094, %v1094
    %v1602 = vpack.c.bf16 %v1176, %v1176
    %v1603 = vpack.c.bf16 %v1258, %v1258
    %v1604 = vpack.c.bf16 %v1340, %v1340
    %v1605 = vpack.c.bf16 %v1422, %v1422
    %v1606 = vpack.c.bf16 %v1504, %v1504
    %v1607 = vpack.c.bf16 %v1586, %v1586
    %vm1608 = vcmask 64512
    %v1610 = vsel %vm1608, %v1592, 0
    %v1613 = vsel %vm317, %v1591, 0
    %1615 = vmatprep.subr.bf16.mxu0 0
    %1616 = vmatpush1.bf16.msra.mxu0 %v1613
    %1617 = vmatprep.subr.bf16.mxu0 0
    %1618 = vmatpush1.bf16.msra.mxu0 0
    %1619 = vmatprep.subr.bf16.mxu0 0
    %1620 = vmatpush1.bf16.msra.mxu0 0
    %1621 = vmatprep.subr.bf16.mxu0 0
    %1622 = vmatpush1.bf16.msra.mxu0 0
    %1623 = vmatprep.subr.bf16.mxu0 0
    %1624 = vmatpush1.bf16.msra.mxu0 0
    %1625 = vmatprep.subr.bf16.mxu0 0
    %1626 = vmatpush1.bf16.msra.mxu0 0
    %1627 = vmatprep.subr.bf16.mxu0 0
    %1628 = vmatpush1.bf16.msra.mxu0 0
    %1629 = vmatprep.subr.bf16.mxu0 0
    %1630 = vmatpush1.bf16.msra.mxu0 0
    %1631 = vmatprep.subr.bf16.mxu0 0
    %1632 = vmatpush1.bf16.msra.mxu0 0
    %1633 = vmatprep.subr.bf16.mxu0 0
    %1634 = vmatpush1.bf16.msra.mxu0 0
    %1635 = vmatprep.subr.bf16.mxu0 0
    %1636 = vmatpush1.bf16.msra.mxu0 0
    %1637 = vmatprep.subr.bf16.mxu0 0
    %1638 = vmatpush1.bf16.msra.mxu0 0
    %1639 = vmatprep.subr.bf16.mxu0 0
    %1640 = vmatpush1.bf16.msra.mxu0 0
    %1641 = vmatprep.subr.bf16.mxu0 0
    %1642 = vmatpush1.bf16.msra.mxu0 0
    %1643 = vmatprep.subr.bf16.mxu0 0
    %1644 = vmatpush1.bf16.msra.mxu0 0
    %1645 = vmatprep.subr.bf16.mxu0 0
    %1646 = vmatpush1.bf16.msra.mxu0 0
    %1647 = vmatprep.mubr.bf16.mxu0 0
    %1648 = vmatmul.mubr.bf16.gmra.mrb[0].mxu0 %v1610
    %v1649 = vpop.f32.mrb[0].mxu0
    %v1650 = vadd.f32 0.0, %v1649
    %v1651 = vpop.f32.mrb[0].mxu0
    %v1652 = vpop.f32.mrb[0].mxu0
    %v1653 = vpop.f32.mrb[0].mxu0
    %1654 = vdwg.mxu0
    %v1656 = vsel %vm1608, %v1593, 0
    %1658 = vmatprep.subr.bf16.mxu0 0
    %1659 = vmatpush1.bf16.msra.mxu0 %v1613
    %1660 = vmatprep.subr.bf16.mxu0 0
    %1661 = vmatpush1.bf16.msra.mxu0 0
    %1662 = vmatprep.subr.bf16.mxu0 0
    %1663 = vmatpush1.bf16.msra.mxu0 0
    %1664 = vmatprep.subr.bf16.mxu0 0
    %1665 = vmatpush1.bf16.msra.mxu0 0
    %1666 = vmatprep.subr.bf16.mxu0 0
    %1667 = vmatpush1.bf16.msra.mxu0 0
    %1668 = vmatprep.subr.bf16.mxu0 0
    %1669 = vmatpush1.bf16.msra.mxu0 0
    %1670 = vmatprep.subr.bf16.mxu0 0
    %1671 = vmatpush1.bf16.msra.mxu0 0
    %1672 = vmatprep.subr.bf16.mxu0 0
    %1673 = vmatpush1.bf16.msra.mxu0 0
    %1674 = vmatprep.subr.bf16.mxu0 0
    %1675 = vmatpush1.bf16.msra.mxu0 0
    %1676 = vmatprep.subr.bf16.mxu0 0
    %1677 = vmatpush1.bf16.msra.mxu0 0
    %1678 = vmatprep.subr.bf16.mxu0 0
    %1679 = vmatpush1.bf16.msra.mxu0 0
    %1680 = vmatprep.subr.bf16.mxu0 0
    %1681 = vmatpush1.bf16.msra.mxu0 0
    %1682 = vmatprep.subr.bf16.mxu0 0
    %1683 = vmatpush1.bf16.msra.mxu0 0
    %1684 = vmatprep.subr.bf16.mxu0 0
    %1685 = vmatpush1.bf16.msra.mxu0 0
    %1686 = vmatprep.subr.bf16.mxu0 0
    %1687 = vmatpush1.bf16.msra.mxu0 0
    %1688 = vmatprep.subr.bf16.mxu0 0
    %1689 = vmatpush1.bf16.msra.mxu0 0
    %1690 = vmatprep.mubr.bf16.mxu0 0
    %1691 = vmatmul.mubr.bf16.gmra.mrb[0].mxu0 %v1656
    %v1692 = vpop.f32.mrb[0].mxu0
    %v1693 = vadd.f32 0.0, %v1692
    %v1694 = vpop.f32.mrb[0].mxu0
    %v1695 = vpop.f32.mrb[0].mxu0
    %v1696 = vpop.f32.mrb[0].mxu0
    %1697 = vdwg.mxu0
    %v1699 = vsel %vm1608, %v1594, 0
    %1701 = vmatprep.subr.bf16.mxu0 0
    %1702 = vmatpush1.bf16.msra.mxu0 %v1613
    %1703 = vmatprep.subr.bf16.mxu0 0
    %1704 = vmatpush1.bf16.msra.mxu0 0
    %1705 = vmatprep.subr.bf16.mxu0 0
    %1706 = vmatpush1.bf16.msra.mxu0 0
    %1707 = vmatprep.subr.bf16.mxu0 0
    %1708 = vmatpush1.bf16.msra.mxu0 0
    %1709 = vmatprep.subr.bf16.mxu0 0
    %1710 = vmatpush1.bf16.msra.mxu0 0
    %1711 = vmatprep.subr.bf16.mxu0 0
    %1712 = vmatpush1.bf16.msra.mxu0 0
    %1713 = vmatprep.subr.bf16.mxu0 0
    %1714 = vmatpush1.bf16.msra.mxu0 0
    %1715 = vmatprep.subr.bf16.mxu0 0
    %1716 = vmatpush1.bf16.msra.mxu0 0
    %1717 = vmatprep.subr.bf16.mxu0 0
    %1718 = vmatpush1.bf16.msra.mxu0 0
    %1719 = vmatprep.subr.bf16.mxu0 0
    %1720 = vmatpush1.bf16.msra.mxu0 0
    %1721 = vmatprep.subr.bf16.mxu0 0
    %1722 = vmatpush1.bf16.msra.mxu0 0
    %1723 = vmatprep.subr.bf16.mxu0 0
    %1724 = vmatpush1.bf16.msra.mxu0 0
    %1725 = vmatprep.subr.bf16.mxu0 0
    %1726 = vmatpush1.bf16.msra.mxu0 0
    %1727 = vmatprep.subr.bf16.mxu0 0
    %1728 = vmatpush1.bf16.msra.mxu0 0
    %1729 = vmatprep.subr.bf16.mxu0 0
    %1730 = vmatpush1.bf16.msra.mxu0 0
    %1731 = vmatprep.subr.bf16.mxu0 0
    %1732 = vmatpush1.bf16.msra.mxu0 0
    %1733 = vmatprep.mubr.bf16.mxu0 0
    %1734 = vmatmul.mubr.bf16.gmra.mrb[0].mxu0 %v1699
    %v1735 = vpop.f32.mrb[0].mxu0
    %v1736 = vadd.f32 0.0, %v1735
    %v1737 = vpop.f32.mrb[0].mxu0
    %v1738 = vpop.f32.mrb[0].mxu0
    %v1739 = vpop.f32.mrb[0].mxu0
    %1740 = vdwg.mxu0
    %v1742 = vsel %vm1608, %v1595, 0
    %1744 = vmatprep.subr.bf16.mxu0 0
    %1745 = vmatpush1.bf16.msra.mxu0 %v1613
    %1746 = vmatprep.subr.bf16.mxu0 0
    %1747 = vmatpush1.bf16.msra.mxu0 0
    %1748 = vmatprep.subr.bf16.mxu0 0
    %1749 = vmatpush1.bf16.msra.mxu0 0
    %1750 = vmatprep.subr.bf16.mxu0 0
    %1751 = vmatpush1.bf16.msra.mxu0 0
    %1752 = vmatprep.subr.bf16.mxu0 0
    %1753 = vmatpush1.bf16.msra.mxu0 0
    %1754 = vmatprep.subr.bf16.mxu0 0
    %1755 = vmatpush1.bf16.msra.mxu0 0
    %1756 = vmatprep.subr.bf16.mxu0 0
    %1757 = vmatpush1.bf16.msra.mxu0 0
    %1758 = vmatprep.subr.bf16.mxu0 0
    %1759 = vmatpush1.bf16.msra.mxu0 0
    %1760 = vmatprep.subr.bf16.mxu0 0
    %1761 = vmatpush1.bf16.msra.mxu0 0
    %1762 = vmatprep.subr.bf16.mxu0 0
    %1763 = vmatpush1.bf16.msra.mxu0 0
    %1764 = vmatprep.subr.bf16.mxu0 0
    %1765 = vmatpush1.bf16.msra.mxu0 0
    %1766 = vmatprep.subr.bf16.mxu0 0
    %1767 = vmatpush1.bf16.msra.mxu0 0
    %1768 = vmatprep.subr.bf16.mxu0 0
    %1769 = vmatpush1.bf16.msra.mxu0 0
    %1770 = vmatprep.subr.bf16.mxu0 0
    %1771 = vmatpush1.bf16.msra.mxu0 0
    %1772 = vmatprep.subr.bf16.mxu0 0
    %1773 = vmatpush1.bf16.msra.mxu0 0
    %1774 = vmatprep.subr.bf16.mxu0 0
    %1775 = vmatpush1.bf16.msra.mxu0 0
    %1776 = vmatprep.mubr.bf16.mxu0 0
    %1777 = vmatmul.mubr.bf16.gmra.mrb[0].mxu0 %v1742
    %v1778 = vpop.f32.mrb[0].mxu0
    %v1779 = vadd.f32 0.0, %v1778
    %v1780 = vpop.f32.mrb[0].mxu0
    %v1781 = vpop.f32.mrb[0].mxu0
    %v1782 = vpop.f32.mrb[0].mxu0
    %1783 = vdwg.mxu0
    %v1785 = vsel %vm1608, %v1596, 0
    %1787 = vmatprep.subr.bf16.mxu0 0
    %1788 = vmatpush1.bf16.msra.mxu0 %v1613
    %1789 = vmatprep.subr.bf16.mxu0 0
    %1790 = vmatpush1.bf16.msra.mxu0 0
    %1791 = vmatprep.subr.bf16.mxu0 0
    %1792 = vmatpush1.bf16.msra.mxu0 0
    %1793 = vmatprep.subr.bf16.mxu0 0
    %1794 = vmatpush1.bf16.msra.mxu0 0
    %1795 = vmatprep.subr.bf16.mxu0 0
    %1796 = vmatpush1.bf16.msra.mxu0 0
    %1797 = vmatprep.subr.bf16.mxu0 0
    %1798 = vmatpush1.bf16.msra.mxu0 0
    %1799 = vmatprep.subr.bf16.mxu0 0
    %1800 = vmatpush1.bf16.msra.mxu0 0
    %1801 = vmatprep.subr.bf16.mxu0 0
    %1802 = vmatpush1.bf16.msra.mxu0 0
    %1803 = vmatprep.subr.bf16.mxu0 0
    %1804 = vmatpush1.bf16.msra.mxu0 0
    %1805 = vmatprep.subr.bf16.mxu0 0
    %1806 = vmatpush1.bf16.msra.mxu0 0
    %1807 = vmatprep.subr.bf16.mxu0 0
    %1808 = vmatpush1.bf16.msra.mxu0 0
    %1809 = vmatprep.subr.bf16.mxu0 0
    %1810 = vmatpush1.bf16.msra.mxu0 0
    %1811 = vmatprep.subr.bf16.mxu0 0
    %1812 = vmatpush1.bf16.msra.mxu0 0
    %1813 = vmatprep.subr.bf16.mxu0 0
    %1814 = vmatpush1.bf16.msra.mxu0 0
    %1815 = vmatprep.subr.bf16.mxu0 0
    %1816 = vmatpush1.bf16.msra.mxu0 0
    %1817 = vmatprep.subr.bf16.mxu0 0
    %1818 = vmatpush1.bf16.msra.mxu0 0
    %1819 = vmatprep.mubr.bf16.mxu0 0
    %1820 = vmatmul.mubr.bf16.gmra.mrb[0].mxu0 %v1785
    %v1821 = vpop.f32.mrb[0].mxu0
    %v1822 = vadd.f32 0.0, %v1821
    %v1823 = vpop.f32.mrb[0].mxu0
    %v1824 = vpop.f32.mrb[0].mxu0
    %v1825 = vpop.f32.mrb[0].mxu0
    %1826 = vdwg.mxu0
    %v1828 = vsel %vm1608, %v1597, 0
    %1830 = vmatprep.subr.bf16.mxu0 0
    %1831 = vmatpush1.bf16.msra.mxu0 %v1613
    %1832 = vmatprep.subr.bf16.mxu0 0
    %1833 = vmatpush1.bf16.msra.mxu0 0
    %1834 = vmatprep.subr.bf16.mxu0 0
    %1835 = vmatpush1.bf16.msra.mxu0 0
    %1836 = vmatprep.subr.bf16.mxu0 0
    %1837 = vmatpush1.bf16.msra.mxu0 0
    %1838 = vmatprep.subr.bf16.mxu0 0
    %1839 = vmatpush1.bf16.msra.mxu0 0
    %1840 = vmatprep.subr.bf16.mxu0 0
    %1841 = vmatpush1.bf16.msra.mxu0 0
    %1842 = vmatprep.subr.bf16.mxu0 0
    %1843 = vmatpush1.bf16.msra.mxu0 0
    %1844 = vmatprep.subr.bf16.mxu0 0
    %1845 = vmatpush1.bf16.msra.mxu0 0
    %1846 = vmatprep.subr.bf16.mxu0 0
    %1847 = vmatpush1.bf16.msra.mxu0 0
    %1848 = vmatprep.subr.bf16.mxu0 0
    %1849 = vmatpush1.bf16.msra.mxu0 0
    %1850 = vmatprep.subr.bf16.mxu0 0
    %1851 = vmatpush1.bf16.msra.mxu0 0
    %1852 = vmatprep.subr.bf16.mxu0 0
    %1853 = vmatpush1.bf16.msra.mxu0 0
    %1854 = vmatprep.subr.bf16.mxu0 0
    %1855 = vmatpush1.bf16.msra.mxu0 0
    %1856 = vmatprep.subr.bf16.mxu0 0
    %1857 = vmatpush1.bf16.msra.mxu0 0
    %1858 = vmatprep.subr.bf16.mxu0 0
    %1859 = vmatpush1.bf16.msra.mxu0 0
    %1860 = vmatprep.subr.bf16.mxu0 0
    %1861 = vmatpush1.bf16.msra.mxu0 0
    %1862 = vmatprep.mubr.bf16.mxu0 0
    %1863 = vmatmul.mubr.bf16.gmra.mrb[0].mxu0 %v1828
    %v1864 = vpop.f32.mrb[0].mxu0
    %v1865 = vadd.f32 0.0, %v1864
    %v1866 = vpop.f32.mrb[0].mxu0
    %v1867 = vpop.f32.mrb[0].mxu0
    %v1868 = vpop.f32.mrb[0].mxu0
    %1869 = vdwg.mxu0
    %v1871 = vsel %vm1608, %v1598, 0
    %1873 = vmatprep.subr.bf16.mxu0 0
    %1874 = vmatpush1.bf16.msra.mxu0 %v1613
    %1875 = vmatprep.subr.bf16.mxu0 0
    %1876 = vmatpush1.bf16.msra.mxu0 0
    %1877 = vmatprep.subr.bf16.mxu0 0
    %1878 = vmatpush1.bf16.msra.mxu0 0
    %1879 = vmatprep.subr.bf16.mxu0 0
    %1880 = vmatpush1.bf16.msra.mxu0 0
    %1881 = vmatprep.subr.bf16.mxu0 0
    %1882 = vmatpush1.bf16.msra.mxu0 0
    %1883 = vmatprep.subr.bf16.mxu0 0
    %1884 = vmatpush1.bf16.msra.mxu0 0
    %1885 = vmatprep.subr.bf16.mxu0 0
    %1886 = vmatpush1.bf16.msra.mxu0 0
    %1887 = vmatprep.subr.bf16.mxu0 0
    %1888 = vmatpush1.bf16.msra.mxu0 0
    %1889 = vmatprep.subr.bf16.mxu0 0
    %1890 = vmatpush1.bf16.msra.mxu0 0
    %1891 = vmatprep.subr.bf16.mxu0 0
    %1892 = vmatpush1.bf16.msra.mxu0 0
    %1893 = vmatprep.subr.bf16.mxu0 0
    %1894 = vmatpush1.bf16.msra.mxu0 0
    %1895 = vmatprep.subr.bf16.mxu0 0
    %1896 = vmatpush1.bf16.msra.mxu0 0
    %1897 = vmatprep.subr.bf16.mxu0 0
    %1898 = vmatpush1.bf16.msra.mxu0 0
    %1899 = vmatprep.subr.bf16.mxu0 0
    %1900 = vmatpush1.bf16.msra.mxu0 0
    %1901 = vmatprep.subr.bf16.mxu0 0
    %1902 = vmatpush1.bf16.msra.mxu0 0
    %1903 = vmatprep.subr.bf16.mxu0 0
    %1904 = vmatpush1.bf16.msra.mxu0 0
    %1905 = vmatprep.mubr.bf16.mxu0 0
    %1906 = vmatmul.mubr.bf16.gmra.mrb[0].mxu0 %v1871
    %v1907 = vpop.f32.mrb[0].mxu0
    %v1908 = vadd.f32 0.0, %v1907
    %v1909 = vpop.f32.mrb[0].mxu0
    %v1910 = vpop.f32.mrb[0].mxu0
    %v1911 = vpop.f32.mrb[0].mxu0
    %1912 = vdwg.mxu0
    %v1914 = vsel %vm1608, %v1599, 0
    %1916 = vmatprep.subr.bf16.mxu0 0
    %1917 = vmatpush1.bf16.msra.mxu0 %v1613
    %1918 = vmatprep.subr.bf16.mxu0 0
    %1919 = vmatpush1.bf16.msra.mxu0 0
    %1920 = vmatprep.subr.bf16.mxu0 0
    %1921 = vmatpush1.bf16.msra.mxu0 0
    %1922 = vmatprep.subr.bf16.mxu0 0
    %1923 = vmatpush1.bf16.msra.mxu0 0
    %1924 = vmatprep.subr.bf16.mxu0 0
    %1925 = vmatpush1.bf16.msra.mxu0 0
    %1926 = vmatprep.subr.bf16.mxu0 0
    %1927 = vmatpush1.bf16.msra.mxu0 0
    %1928 = vmatprep.subr.bf16.mxu0 0
    %1929 = vmatpush1.bf16.msra.mxu0 0
    %1930 = vmatprep.subr.bf16.mxu0 0
    %1931 = vmatpush1.bf16.msra.mxu0 0
    %1932 = vmatprep.subr.bf16.mxu0 0
    %1933 = vmatpush1.bf16.msra.mxu0 0
    %1934 = vmatprep.subr.bf16.mxu0 0
    %1935 = vmatpush1.bf16.msra.mxu0 0
    %1936 = vmatprep.subr.bf16.mxu0 0
    %1937 = vmatpush1.bf16.msra.mxu0 0
    %1938 = vmatprep.subr.bf16.mxu0 0
    %1939 = vmatpush1.bf16.msra.mxu0 0
    %1940 = vmatprep.subr.bf16.mxu0 0
    %1941 = vmatpush1.bf16.msra.mxu0 0
    %1942 = vmatprep.subr.bf16.mxu0 0
    %1943 = vmatpush1.bf16.msra.mxu0 0
    %1944 = vmatprep.subr.bf16.mxu0 0
    %1945 = vmatpush1.bf16.msra.mxu0 0
    %1946 = vmatprep.subr.bf16.mxu0 0
    %1947 = vmatpush1.bf16.msra.mxu0 0
    %1948 = vmatprep.mubr.bf16.mxu0 0
    %1949 = vmatmul.mubr.bf16.gmra.mrb[0].mxu0 %v1914
    %v1950 = vpop.f32.mrb[0].mxu0
    %v1951 = vadd.f32 0.0, %v1950
    %v1952 = vpop.f32.mrb[0].mxu0
    %v1953 = vpop.f32.mrb[0].mxu0
    %v1954 = vpop.f32.mrb[0].mxu0
    %1955 = vdwg.mxu0
    %v1957 = vsel %vm1608, %v1600, 0
    %1959 = vmatprep.subr.bf16.mxu0 0
    %1960 = vmatpush1.bf16.msra.mxu0 %v1613
    %1961 = vmatprep.subr.bf16.mxu0 0
    %1962 = vmatpush1.bf16.msra.mxu0 0
    %1963 = vmatprep.subr.bf16.mxu0 0
    %1964 = vmatpush1.bf16.msra.mxu0 0
    %1965 = vmatprep.subr.bf16.mxu0 0
    %1966 = vmatpush1.bf16.msra.mxu0 0
    %1967 = vmatprep.subr.bf16.mxu0 0
    %1968 = vmatpush1.bf16.msra.mxu0 0
    %1969 = vmatprep.subr.bf16.mxu0 0
    %1970 = vmatpush1.bf16.msra.mxu0 0
    %1971 = vmatprep.subr.bf16.mxu0 0
    %1972 = vmatpush1.bf16.msra.mxu0 0
    %1973 = vmatprep.subr.bf16.mxu0 0
    %1974 = vmatpush1.bf16.msra.mxu0 0
    %1975 = vmatprep.subr.bf16.mxu0 0
    %1976 = vmatpush1.bf16.msra.mxu0 0
    %1977 = vmatprep.subr.bf16.mxu0 0
    %1978 = vmatpush1.bf16.msra.mxu0 0
    %1979 = vmatprep.subr.bf16.mxu0 0
    %1980 = vmatpush1.bf16.msra.mxu0 0
    %1981 = vmatprep.subr.bf16.mxu0 0
    %1982 = vmatpush1.bf16.msra.mxu0 0
    %1983 = vmatprep.subr.bf16.mxu0 0
    %1984 = vmatpush1.bf16.msra.mxu0 0
    %1985 = vmatprep.subr.bf16.mxu0 0
    %1986 = vmatpush1.bf16.msra.mxu0 0
    %1987 = vmatprep.subr.bf16.mxu0 0
    %1988 = vmatpush1.bf16.msra.mxu0 0
    %1989 = vmatprep.subr.bf16.mxu0 0
    %1990 = vmatpush1.bf16.msra.mxu0 0
    %1991 = vmatprep.mubr.bf16.mxu0 0
    %1992 = vmatmul.mubr.bf16.gmra.mrb[0].mxu0 %v1957
    %v1993 = vpop.f32.mrb[0].mxu0
    %v1994 = vadd.f32 0.0, %v1993
    %v1995 = vpop.f32.mrb[0].mxu0
    %v1996 = vpop.f32.mrb[0].mxu0
    %v1997 = vpop.f32.mrb[0].mxu0
    %1998 = vdwg.mxu0
    %v2000 = vsel %vm1608, %v1601, 0
    %2002 = vmatprep.subr.bf16.mxu0 0
    %2003 = vmatpush1.bf16.msra.mxu0 %v1613
    %2004 = vmatprep.subr.bf16.mxu0 0
    %2005 = vmatpush1.bf16.msra.mxu0 0
    %2006 = vmatprep.subr.bf16.mxu0 0
    %2007 = vmatpush1.bf16.msra.mxu0 0
    %2008 = vmatprep.subr.bf16.mxu0 0
    %2009 = vmatpush1.bf16.msra.mxu0 0
    %2010 = vmatprep.subr.bf16.mxu0 0
    %2011 = vmatpush1.bf16.msra.mxu0 0
    %2012 = vmatprep.subr.bf16.mxu0 0
    %2013 = vmatpush1.bf16.msra.mxu0 0
    %2014 = vmatprep.subr.bf16.mxu0 0
    %2015 = vmatpush1.bf16.msra.mxu0 0
    %2016 = vmatprep.subr.bf16.mxu0 0
    %2017 = vmatpush1.bf16.msra.mxu0 0
    %2018 = vmatprep.subr.bf16.mxu0 0
    %2019 = vmatpush1.bf16.msra.mxu0 0
    %2020 = vmatprep.subr.bf16.mxu0 0
    %2021 = vmatpush1.bf16.msra.mxu0 0
    %2022 = vmatprep.subr.bf16.mxu0 0
    %2023 = vmatpush1.bf16.msra.mxu0 0
    %2024 = vmatprep.subr.bf16.mxu0 0
    %2025 = vmatpush1.bf16.msra.mxu0 0
    %2026 = vmatprep.subr.bf16.mxu0 0
    %2027 = vmatpush1.bf16.msra.mxu0 0
    %2028 = vmatprep.subr.bf16.mxu0 0
    %2029 = vmatpush1.bf16.msra.mxu0 0
    %2030 = vmatprep.subr.bf16.mxu0 0
    %2031 = vmatpush1.bf16.msra.mxu0 0
    %2032 = vmatprep.subr.bf16.mxu0 0
    %2033 = vmatpush1.bf16.msra.mxu0 0
    %2034 = vmatprep.mubr.bf16.mxu0 0
    %2035 = vmatmul.mubr.bf16.gmra.mrb[0].mxu0 %v2000
    %v2036 = vpop.f32.mrb[0].mxu0
    %v2037 = vadd.f32 0.0, %v2036
    %v2038 = vpop.f32.mrb[0].mxu0
    %v2039 = vpop.f32.mrb[0].mxu0
    %v2040 = vpop.f32.mrb[0].mxu0
    %2041 = vdwg.mxu0
    %v2043 = vsel %vm1608, %v1602, 0
    %2045 = vmatprep.subr.bf16.mxu0 0
    %2046 = vmatpush1.bf16.msra.mxu0 %v1613
    %2047 = vmatprep.subr.bf16.mxu0 0
    %2048 = vmatpush1.bf16.msra.mxu0 0
    %2049 = vmatprep.subr.bf16.mxu0 0
    %2050 = vmatpush1.bf16.msra.mxu0 0
    %2051 = vmatprep.subr.bf16.mxu0 0
    %2052 = vmatpush1.bf16.msra.mxu0 0
    %2053 = vmatprep.subr.bf16.mxu0 0
    %2054 = vmatpush1.bf16.msra.mxu0 0
    %2055 = vmatprep.subr.bf16.mxu0 0
    %2056 = vmatpush1.bf16.msra.mxu0 0
    %2057 = vmatprep.subr.bf16.mxu0 0
    %2058 = vmatpush1.bf16.msra.mxu0 0
    %2059 = vmatprep.subr.bf16.mxu0 0
    %2060 = vmatpush1.bf16.msra.mxu0 0
    %2061 = vmatprep.subr.bf16.mxu0 0
    %2062 = vmatpush1.bf16.msra.mxu0 0
    %2063 = vmatprep.subr.bf16.mxu0 0
    %2064 = vmatpush1.bf16.msra.mxu0 0
    %2065 = vmatprep.subr.bf16.mxu0 0
    %2066 = vmatpush1.bf16.msra.mxu0 0
    %2067 = vmatprep.subr.bf16.mxu0 0
    %2068 = vmatpush1.bf16.msra.mxu0 0
    %2069 = vmatprep.subr.bf16.mxu0 0
    %2070 = vmatpush1.bf16.msra.mxu0 0
    %2071 = vmatprep.subr.bf16.mxu0 0
    %2072 = vmatpush1.bf16.msra.mxu0 0
    %2073 = vmatprep.subr.bf16.mxu0 0
    %2074 = vmatpush1.bf16.msra.mxu0 0
    %2075 = vmatprep.subr.bf16.mxu0 0
    %2076 = vmatpush1.bf16.msra.mxu0 0
    %2077 = vmatprep.mubr.bf16.mxu0 0
    %2078 = vmatmul.mubr.bf16.gmra.mrb[0].mxu0 %v2043
    %v2079 = vpop.f32.mrb[0].mxu0
    %v2080 = vadd.f32 0.0, %v2079
    %v2081 = vpop.f32.mrb[0].mxu0
    %v2082 = vpop.f32.mrb[0].mxu0
    %v2083 = vpop.f32.mrb[0].mxu0
    %2084 = vdwg.mxu0
    %v2086 = vsel %vm1608, %v1603, 0
    %2088 = vmatprep.subr.bf16.mxu0 0
    %2089 = vmatpush1.bf16.msra.mxu0 %v1613
    %2090 = vmatprep.subr.bf16.mxu0 0
    %2091 = vmatpush1.bf16.msra.mxu0 0
    %2092 = vmatprep.subr.bf16.mxu0 0
    %2093 = vmatpush1.bf16.msra.mxu0 0
    %2094 = vmatprep.subr.bf16.mxu0 0
    %2095 = vmatpush1.bf16.msra.mxu0 0
    %2096 = vmatprep.subr.bf16.mxu0 0
    %2097 = vmatpush1.bf16.msra.mxu0 0
    %2098 = vmatprep.subr.bf16.mxu0 0
    %2099 = vmatpush1.bf16.msra.mxu0 0
    %2100 = vmatprep.subr.bf16.mxu0 0
    %2101 = vmatpush1.bf16.msra.mxu0 0
    %2102 = vmatprep.subr.bf16.mxu0 0
    %2103 = vmatpush1.bf16.msra.mxu0 0
    %2104 = vmatprep.subr.bf16.mxu0 0
    %2105 = vmatpush1.bf16.msra.mxu0 0
    %2106 = vmatprep.subr.bf16.mxu0 0
    %2107 = vmatpush1.bf16.msra.mxu0 0
    %2108 = vmatprep.subr.bf16.mxu0 0
    %2109 = vmatpush1.bf16.msra.mxu0 0
    %2110 = vmatprep.subr.bf16.mxu0 0
    %2111 = vmatpush1.bf16.msra.mxu0 0
    %2112 = vmatprep.subr.bf16.mxu0 0
    %2113 = vmatpush1.bf16.msra.mxu0 0
    %2114 = vmatprep.subr.bf16.mxu0 0
    %2115 = vmatpush1.bf16.msra.mxu0 0
    %2116 = vmatprep.subr.bf16.mxu0 0
    %2117 = vmatpush1.bf16.msra.mxu0 0
    %2118 = vmatprep.subr.bf16.mxu0 0
    %2119 = vmatpush1.bf16.msra.mxu0 0
    %2120 = vmatprep.mubr.bf16.mxu0 0
    %2121 = vmatmul.mubr.bf16.gmra.mrb[0].mxu0 %v2086
    %v2122 = vpop.f32.mrb[0].mxu0
    %v2123 = vadd.f32 0.0, %v2122
    %v2124 = vpop.f32.mrb[0].mxu0
    %v2125 = vpop.f32.mrb[0].mxu0
    %v2126 = vpop.f32.mrb[0].mxu0
    %2127 = vdwg.mxu0
    %v2129 = vsel %vm1608, %v1604, 0
    %2131 = vmatprep.subr.bf16.mxu0 0
    %2132 = vmatpush1.bf16.msra.mxu0 %v1613
    %2133 = vmatprep.subr.bf16.mxu0 0
    %2134 = vmatpush1.bf16.msra.mxu0 0
    %2135 = vmatprep.subr.bf16.mxu0 0
    %2136 = vmatpush1.bf16.msra.mxu0 0
    %2137 = vmatprep.subr.bf16.mxu0 0
    %2138 = vmatpush1.bf16.msra.mxu0 0
    %2139 = vmatprep.subr.bf16.mxu0 0
    %2140 = vmatpush1.bf16.msra.mxu0 0
    %2141 = vmatprep.subr.bf16.mxu0 0
    %2142 = vmatpush1.bf16.msra.mxu0 0
    %2143 = vmatprep.subr.bf16.mxu0 0
    %2144 = vmatpush1.bf16.msra.mxu0 0
    %2145 = vmatprep.subr.bf16.mxu0 0
    %2146 = vmatpush1.bf16.msra.mxu0 0
    %2147 = vmatprep.subr.bf16.mxu0 0
    %2148 = vmatpush1.bf16.msra.mxu0 0
    %2149 = vmatprep.subr.bf16.mxu0 0
    %2150 = vmatpush1.bf16.msra.mxu0 0
    %2151 = vmatprep.subr.bf16.mxu0 0
    %2152 = vmatpush1.bf16.msra.mxu0 0
    %2153 = vmatprep.subr.bf16.mxu0 0
    %2154 = vmatpush1.bf16.msra.mxu0 0
    %2155 = vmatprep.subr.bf16.mxu0 0
    %2156 = vmatpush1.bf16.msra.mxu0 0
    %2157 = vmatprep.subr.bf16.mxu0 0
    %2158 = vmatpush1.bf16.msra.mxu0 0
    %2159 = vmatprep.subr.bf16.mxu0 0
    %2160 = vmatpush1.bf16.msra.mxu0 0
    %2161 = vmatprep.subr.bf16.mxu0 0
    %2162 = vmatpush1.bf16.msra.mxu0 0
    %2163 = vmatprep.mubr.bf16.mxu0 0
    %2164 = vmatmul.mubr.bf16.gmra.mrb[0].mxu0 %v2129
    %v2165 = vpop.f32.mrb[0].mxu0
    %v2166 = vadd.f32 0.0, %v2165
    %v2167 = vpop.f32.mrb[0].mxu0
    %v2168 = vpop.f32.mrb[0].mxu0
    %v2169 = vpop.f32.mrb[0].mxu0
    %2170 = vdwg.mxu0
    %v2172 = vsel %vm1608, %v1605, 0
    %2174 = vmatprep.subr.bf16.mxu0 0
    %2175 = vmatpush1.bf16.msra.mxu0 %v1613
    %2176 = vmatprep.subr.bf16.mxu0 0
    %2177 = vmatpush1.bf16.msra.mxu0 0
    %2178 = vmatprep.subr.bf16.mxu0 0
    %2179 = vmatpush1.bf16.msra.mxu0 0
    %2180 = vmatprep.subr.bf16.mxu0 0
    %2181 = vmatpush1.bf16.msra.mxu0 0
    %2182 = vmatprep.subr.bf16.mxu0 0
    %2183 = vmatpush1.bf16.msra.mxu0 0
    %2184 = vmatprep.subr.bf16.mxu0 0
    %2185 = vmatpush1.bf16.msra.mxu0 0
    %2186 = vmatprep.subr.bf16.mxu0 0
    %2187 = vmatpush1.bf16.msra.mxu0 0
    %2188 = vmatprep.subr.bf16.mxu0 0
    %2189 = vmatpush1.bf16.msra.mxu0 0
    %2190 = vmatprep.subr.bf16.mxu0 0
    %2191 = vmatpush1.bf16.msra.mxu0 0
    %2192 = vmatprep.subr.bf16.mxu0 0
    %2193 = vmatpush1.bf16.msra.mxu0 0
    %2194 = vmatprep.subr.bf16.mxu0 0
    %2195 = vmatpush1.bf16.msra.mxu0 0
    %2196 = vmatprep.subr.bf16.mxu0 0
    %2197 = vmatpush1.bf16.msra.mxu0 0
    %2198 = vmatprep.subr.bf16.mxu0 0
    %2199 = vmatpush1.bf16.msra.mxu0 0
    %2200 = vmatprep.subr.bf16.mxu0 0
    %2201 = vmatpush1.bf16.msra.mxu0 0
    %2202 = vmatprep.subr.bf16.mxu0 0
    %2203 = vmatpush1.bf16.msra.mxu0 0
    %2204 = vmatprep.subr.bf16.mxu0 0
    %2205 = vmatpush1.bf16.msra.mxu0 0
    %2206 = vmatprep.mubr.bf16.mxu0 0
    %2207 = vmatmul.mubr.bf16.gmra.mrb[0].mxu0 %v2172
    %v2208 = vpop.f32.mrb[0].mxu0
    %v2209 = vadd.f32 0.0, %v2208
    %v2210 = vpop.f32.mrb[0].mxu0
    %v2211 = vpop.f32.mrb[0].mxu0
    %v2212 = vpop.f32.mrb[0].mxu0
    %2213 = vdwg.mxu0
    %v2215 = vsel %vm1608, %v1606, 0
    %2217 = vmatprep.subr.bf16.mxu0 0
    %2218 = vmatpush1.bf16.msra.mxu0 %v1613
    %2219 = vmatprep.subr.bf16.mxu0 0
    %2220 = vmatpush1.bf16.msra.mxu0 0
    %2221 = vmatprep.subr.bf16.mxu0 0
    %2222 = vmatpush1.bf16.msra.mxu0 0
    %2223 = vmatprep.subr.bf16.mxu0 0
    %2224 = vmatpush1.bf16.msra.mxu0 0
    %2225 = vmatprep.subr.bf16.mxu0 0
    %2226 = vmatpush1.bf16.msra.mxu0 0
    %2227 = vmatprep.subr.bf16.mxu0 0
    %2228 = vmatpush1.bf16.msra.mxu0 0
    %2229 = vmatprep.subr.bf16.mxu0 0
    %2230 = vmatpush1.bf16.msra.mxu0 0
    %2231 = vmatprep.subr.bf16.mxu0 0
    %2232 = vmatpush1.bf16.msra.mxu0 0
    %2233 = vmatprep.subr.bf16.mxu0 0
    %2234 = vmatpush1.bf16.msra.mxu0 0
    %2235 = vmatprep.subr.bf16.mxu0 0
    %2236 = vmatpush1.bf16.msra.mxu0 0
    %2237 = vmatprep.subr.bf16.mxu0 0
    %2238 = vmatpush1.bf16.msra.mxu0 0
    %2239 = vmatprep.subr.bf16.mxu0 0
    %2240 = vmatpush1.bf16.msra.mxu0 0
    %2241 = vmatprep.subr.bf16.mxu0 0
    %2242 = vmatpush1.bf16.msra.mxu0 0
    %2243 = vmatprep.subr.bf16.mxu0 0
    %2244 = vmatpush1.bf16.msra.mxu0 0
    %2245 = vmatprep.subr.bf16.mxu0 0
    %2246 = vmatpush1.bf16.msra.mxu0 0
    %2247 = vmatprep.subr.bf16.mxu0 0
    %2248 = vmatpush1.bf16.msra.mxu0 0
    %2249 = vmatprep.mubr.bf16.mxu0 0
    %2250 = vmatmul.mubr.bf16.gmra.mrb[0].mxu0 %v2215
    %v2251 = vpop.f32.mrb[0].mxu0
    %v2252 = vadd.f32 0.0, %v2251
    %v2253 = vpop.f32.mrb[0].mxu0
    %v2254 = vpop.f32.mrb[0].mxu0
    %v2255 = vpop.f32.mrb[0].mxu0
    %2256 = vdwg.mxu0
    %v2258 = vsel %vm1608, %v1607, 0
    %2260 = vmatprep.subr.bf16.mxu0 0
    %2261 = vmatpush1.bf16.msra.mxu0 %v1613
    %2262 = vmatprep.subr.bf16.mxu0 0
    %2263 = vmatpush1.bf16.msra.mxu0 0
    %2264 = vmatprep.subr.bf16.mxu0 0
    %2265 = vmatpush1.bf16.msra.mxu0 0
    %2266 = vmatprep.subr.bf16.mxu0 0
    %2267 = vmatpush1.bf16.msra.mxu0 0
    %2268 = vmatprep.subr.bf16.mxu0 0
    %2269 = vmatpush1.bf16.msra.mxu0 0
    %2270 = vmatprep.subr.bf16.mxu0 0
    %2271 = vmatpush1.bf16.msra.mxu0 0
    %2272 = vmatprep.subr.bf16.mxu0 0
    %2273 = vmatpush1.bf16.msra.mxu0 0
    %2274 = vmatprep.subr.bf16.mxu0 0
    %2275 = vmatpush1.bf16.msra.mxu0 0
    %2276 = vmatprep.subr.bf16.mxu0 0
    %2277 = vmatpush1.bf16.msra.mxu0 0
    %2278 = vmatprep.subr.bf16.mxu0 0
    %2279 = vmatpush1.bf16.msra.mxu0 0
    %2280 = vmatprep.subr.bf16.mxu0 0
    %2281 = vmatpush1.bf16.msra.mxu0 0
    %2282 = vmatprep.subr.bf16.mxu0 0
    %2283 = vmatpush1.bf16.msra.mxu0 0
    %2284 = vmatprep.subr.bf16.mxu0 0
    %2285 = vmatpush1.bf16.msra.mxu0 0
    %2286 = vmatprep.subr.bf16.mxu0 0
    %2287 = vmatpush1.bf16.msra.mxu0 0
    %2288 = vmatprep.subr.bf16.mxu0 0
    %2289 = vmatpush1.bf16.msra.mxu0 0
    %2290 = vmatprep.subr.bf16.mxu0 0
    %2291 = vmatpush1.bf16.msra.mxu0 0
    %2292 = vmatprep.mubr.bf16.mxu0 0
    %2293 = vmatmul.mubr.bf16.gmra.mrb[0].mxu0 %v2258
    %v2294 = vpop.f32.mrb[0].mxu0
    %v2295 = vadd.f32 0.0, %v2294
    %v2296 = vpop.f32.mrb[0].mxu0
    %v2297 = vpop.f32.mrb[0].mxu0
    %v2298 = vpop.f32.mrb[0].mxu0
    %2299 = vdwg.mxu0
    %vm2300 = vcmask 125952
    %2301 = vst.msk [vmem:[#allocation2] sm:$0xf] %vm2300, %v1650
    %v2303 = vrot.slane %v1650, 4
    %2305 = vst.msk [vmem:[#allocation3] sm:$0xf] %vm2300, %v2303
    %v2307 = vrot.slane %v1994, 4
    %vm2309 = vcmask 130052
    %2310 = vst.msk [vmem:[#allocation2] sm:$0xf0] %vm2309, %v2307
    %2311 = vst.msk [vmem:[#allocation3] sm:$0xf0] %vm2309, %v1994
    %v2312 = vmul.f32 %v1650, 0.53333336
    %v2313 = vmul.f32 %v1693, 0.46666667
    %v2314 = vadd.f32 %v2312, %v2313
    %2316 = vrot.lane.b32.xlu0 %v2314, 16
    %v2317 = vpop.permute.xlu0 %2316
    %vm2319 = vcmask 257152
    %2320 = vst.msk [vmem:[#allocation2] sm:$0xf] %vm2319, %v2317
    %v2321 = vrot.slane %v2314, 4
    %2322 = vrot.lane.b32.xlu0 %v2321, 16
    %v2323 = vpop.permute.xlu0 %2322
    %2325 = vst.msk [vmem:[#allocation3] sm:$0xf] %vm2319, %v2323
    %v2326 = vmul.f32 %v1994, 0.53333336
    %v2327 = vmul.f32 %v2037, 0.46666667
    %v2328 = vadd.f32 %v2326, %v2327
    %v2330 = vrot.slane %v2328, 4
    %2331 = vrot.lane.b32.xlu0 %v2330, 16
    %v2332 = vpop.permute.xlu0 %2331
    %vm2334 = vcmask 261252
    %2335 = vst.msk [vmem:[#allocation2] sm:$0xf0] %vm2334, %v2332
    %2336 = vrot.lane.b32.xlu0 %v2328, 16
    %v2337 = vpop.permute.xlu0 %2336
    %2339 = vst.msk [vmem:[#allocation3] sm:$0xf0] %vm2334, %v2337
    %v2340 = vmul.f32 %v1650, 0.06666667
    %v2341 = vmul.f32 %v1693, 0.93333334
    %v2342 = vadd.f32 %v2340, %v2341
    %2344 = vrot.lane.b32.xlu0 %v2342, 32
    %v2345 = vpop.permute.xlu0 %2344
    %vm2347 = vcmask 388352
    %2348 = vst.msk [vmem:[#allocation2] sm:$0xf] %vm2347, %v2345
    %v2349 = vrot.slane %v2342, 4
    %2350 = vrot.lane.b32.xlu0 %v2349, 32
    %v2351 = vpop.permute.xlu0 %2350
    %2353 = vst.msk [vmem:[#allocation3] sm:$0xf] %vm2347, %v2351
    %v2354 = vmul.f32 %v1994, 0.06666667
    %v2355 = vmul.f32 %v2037, 0.93333334
    %v2356 = vadd.f32 %v2354, %v2355
    %v2358 = vrot.slane %v2356, 4
    %2359 = vrot.lane.b32.xlu0 %v2358, 32
    %v2360 = vpop.permute.xlu0 %2359
    %vm2362 = vcmask 392452
    %2363 = vst.msk [vmem:[#allocation2] sm:$0xf0] %vm2362, %v2360
    %2364 = vrot.lane.b32.xlu0 %v2356, 32
    %v2365 = vpop.permute.xlu0 %2364
    %2367 = vst.msk [vmem:[#allocation3] sm:$0xf0] %vm2362, %v2365
    %v2368 = vmul.f32 %v1693, 0.6
    %v2369 = vmul.f32 %v1736, 0.4
    %v2370 = vadd.f32 %v2368, %v2369
    %2372 = vrot.lane.b32.xlu0 %v2370, 48
    %v2373 = vpop.permute.xlu0 %2372
    %vm2375 = vcmask 519552
    %2376 = vst.msk [vmem:[#allocation2] sm:$0xf] %vm2375, %v2373
    %v2377 = vrot.slane %v2370, 4
    %2378 = vrot.lane.b32.xlu0 %v2377, 48
    %v2379 = vpop.permute.xlu0 %2378
    %2381 = vst.msk [vmem:[#allocation3] sm:$0xf] %vm2375, %v2379
    %v2382 = vmul.f32 %v2037, 0.6
    %v2383 = vmul.f32 %v2080, 0.4
    %v2384 = vadd.f32 %v2382, %v2383
    %v2386 = vrot.slane %v2384, 4
    %2387 = vrot.lane.b32.xlu0 %v2386, 48
    %v2388 = vpop.permute.xlu0 %2387
    %vm2390 = vcmask 523652
    %2391 = vst.msk [vmem:[#allocation2] sm:$0xf0] %vm2390, %v2388
    %2392 = vrot.lane.b32.xlu0 %v2384, 48
    %v2393 = vpop.permute.xlu0 %2392
    %2395 = vst.msk [vmem:[#allocation3] sm:$0xf0] %vm2390, %v2393
    %v2396 = vmul.f32 %v1693, 0.13333334
    %v2397 = vmul.f32 %v1736, 0.8666667
    %v2398 = vadd.f32 %v2396, %v2397
    %2400 = vrot.lane.b32.xlu0 %v2398, 64
    %v2401 = vpop.permute.xlu0 %2400
    %vm2403 = vcmask 650752
    %2404 = vst.msk [vmem:[#allocation2] sm:$0xf] %vm2403, %v2401
    %v2405 = vrot.slane %v2398, 4
    %2406 = vrot.lane.b32.xlu0 %v2405, 64
    %v2407 = vpop.permute.xlu0 %2406
    %2409 = vst.msk [vmem:[#allocation3] sm:$0xf] %vm2403, %v2407
    %v2410 = vmul.f32 %v2037, 0.13333334
    %v2411 = vmul.f32 %v2080, 0.8666667
    %v2412 = vadd.f32 %v2410, %v2411
    %v2414 = vrot.slane %v2412, 4
    %2415 = vrot.lane.b32.xlu0 %v2414, 64
    %v2416 = vpop.permute.xlu0 %2415
    %vm2418 = vcmask 654852
    %2419 = vst.msk [vmem:[#allocation2] sm:$0xf0] %vm2418, %v2416
    %2420 = vrot.lane.b32.xlu0 %v2412, 64
    %v2421 = vpop.permute.xlu0 %2420
    %2423 = vst.msk [vmem:[#allocation3] sm:$0xf0] %vm2418, %v2421
    %v2424 = vmul.f32 %v1736, 0.6666667
    %v2425 = vmul.f32 %v1779, 0.33333334
    %v2426 = vadd.f32 %v2424, %v2425
    %2428 = vrot.lane.b32.xlu0 %v2426, 80
    %v2429 = vpop.permute.xlu0 %2428
    %vm2431 = vcmask 781952
    %2432 = vst.msk [vmem:[#allocation2] sm:$0xf] %vm2431, %v2429
    %v2433 = vrot.slane %v2426, 4
    %2434 = vrot.lane.b32.xlu0 %v2433, 80
    %v2435 = vpop.permute.xlu0 %2434
    %2437 = vst.msk [vmem:[#allocation3] sm:$0xf] %vm2431, %v2435
    %v2438 = vmul.f32 %v2080, 0.6666667
    %v2439 = vmul.f32 %v2123, 0.33333334
    %v2440 = vadd.f32 %v2438, %v2439
    %v2442 = vrot.slane %v2440, 4
    %2443 = vrot.lane.b32.xlu0 %v2442, 80
    %v2444 = vpop.permute.xlu0 %2443
    %vm2446 = vcmask 786052
    %2447 = vst.msk [vmem:[#allocation2] sm:$0xf0] %vm2446, %v2444
    %2448 = vrot.lane.b32.xlu0 %v2440, 80
    %v2449 = vpop.permute.xlu0 %2448
    %2451 = vst.msk [vmem:[#allocation3] sm:$0xf0] %vm2446, %v2449
    %v2452 = vmul.f32 %v1736, 0.2
    %v2453 = vmul.f32 %v1779, 0.8
    %v2454 = vadd.f32 %v2452, %v2453
    %2456 = vrot.lane.b32.xlu0 %v2454, 96
    %v2457 = vpop.permute.xlu0 %2456
    %vm2459 = vcmask 913152
    %2460 = vst.msk [vmem:[#allocation2] sm:$0xf] %vm2459, %v2457
    %v2461 = vrot.slane %v2454, 4
    %2462 = vrot.lane.b32.xlu0 %v2461, 96
    %v2463 = vpop.permute.xlu0 %2462
    %2465 = vst.msk [vmem:[#allocation3] sm:$0xf] %vm2459, %v2463
    %v2466 = vmul.f32 %v2080, 0.2
    %v2467 = vmul.f32 %v2123, 0.8
    %v2468 = vadd.f32 %v2466, %v2467
    %v2470 = vrot.slane %v2468, 4
    %2471 = vrot.lane.b32.xlu0 %v2470, 96
    %v2472 = vpop.permute.xlu0 %2471
    %vm2474 = vcmask 917252
    %2475 = vst.msk [vmem:[#allocation2] sm:$0xf0] %vm2474, %v2472
    %2476 = vrot.lane.b32.xlu0 %v2468, 96
    %v2477 = vpop.permute.xlu0 %2476
    %2479 = vst.msk [vmem:[#allocation3] sm:$0xf0] %vm2474, %v2477
    %v2480 = vmul.f32 %v1779, 0.73333335
    %v2481 = vmul.f32 %v1822, 0.26666668
    %v2482 = vadd.f32 %v2480, %v2481
    %2484 = vrot.lane.b32.xlu0 %v2482, 112
    %v2485 = vpop.permute.xlu0 %2484
    %vm2487 = vcmask 1044352
    %2488 = vst.msk [vmem:[#allocation2] sm:$0xf] %vm2487, %v2485
    %v2489 = vrot.slane %v2482, 4
    %2490 = vrot.lane.b32.xlu0 %v2489, 112
    %v2491 = vpop.permute.xlu0 %2490
    %2493 = vst.msk [vmem:[#allocation3] sm:$0xf] %vm2487, %v2491
    %v2494 = vmul.f32 %v2123, 0.73333335
    %v2495 = vmul.f32 %v2166, 0.26666668
    %v2496 = vadd.f32 %v2494, %v2495
    %v2498 = vrot.slane %v2496, 4
    %2499 = vrot.lane.b32.xlu0 %v2498, 112
    %v2500 = vpop.permute.xlu0 %2499
    %vm2502 = vcmask 1048452
    %2503 = vst.msk [vmem:[#allocation2] sm:$0xf0] %vm2502, %v2500
    %2504 = vrot.lane.b32.xlu0 %v2496, 112
    %v2505 = vpop.permute.xlu0 %2504
    %2507 = vst.msk [vmem:[#allocation3] sm:$0xf0] %vm2502, %v2505
    %v2508 = vmul.f32 %v1779, 0.26666668
    %v2509 = vmul.f32 %v1822, 0.73333335
    %v2510 = vadd.f32 %v2508, %v2509
    %2511 = vst.msk [vmem:[#allocation2 + $0x8] sm:$0xf] %vm2300, %v2510
    %v2513 = vrot.slane %v2510, 4
    %2515 = vst.msk [vmem:[#allocation3 + $0x8] sm:$0xf] %vm2300, %v2513
    %v2516 = vmul.f32 %v2123, 0.26666668
    %v2517 = vmul.f32 %v2166, 0.73333335
    %v2518 = vadd.f32 %v2516, %v2517
    %v2520 = vrot.slane %v2518, 4
    %2522 = vst.msk [vmem:[#allocation2 + $0x8] sm:$0xf0] %vm2309, %v2520
    %2523 = vst.msk [vmem:[#allocation3 + $0x8] sm:$0xf0] %vm2309, %v2518
    %v2524 = vmul.f32 %v1822, 0.8
    %v2525 = vmul.f32 %v1865, 0.2
    %v2526 = vadd.f32 %v2524, %v2525
    %2528 = vrot.lane.b32.xlu0 %v2526, 16
    %v2529 = vpop.permute.xlu0 %2528
    %2531 = vst.msk [vmem:[#allocation2 + $0x8] sm:$0xf] %vm2319, %v2529
    %v2532 = vrot.slane %v2526, 4
    %2533 = vrot.lane.b32.xlu0 %v2532, 16
    %v2534 = vpop.permute.xlu0 %2533
    %2536 = vst.msk [vmem:[#allocation3 + $0x8] sm:$0xf] %vm2319, %v2534
    %v2537 = vmul.f32 %v2166, 0.8
    %v2538 = vmul.f32 %v2209, 0.2
    %v2539 = vadd.f32 %v2537, %v2538
    %v2541 = vrot.slane %v2539, 4
    %2542 = vrot.lane.b32.xlu0 %v2541, 16
    %v2543 = vpop.permute.xlu0 %2542
    %2545 = vst.msk [vmem:[#allocation2 + $0x8] sm:$0xf0] %vm2334, %v2543
    %2546 = vrot.lane.b32.xlu0 %v2539, 16
    %v2547 = vpop.permute.xlu0 %2546
    %2549 = vst.msk [vmem:[#allocation3 + $0x8] sm:$0xf0] %vm2334, %v2547
    %v2550 = vmul.f32 %v1822, 0.33333334
    %v2551 = vmul.f32 %v1865, 0.6666667
    %v2552 = vadd.f32 %v2550, %v2551
    %2554 = vrot.lane.b32.xlu0 %v2552, 32
    %v2555 = vpop.permute.xlu0 %2554
    %2557 = vst.msk [vmem:[#allocation2 + $0x8] sm:$0xf] %vm2347, %v2555
    %v2558 = vrot.slane %v2552, 4
    %2559 = vrot.lane.b32.xlu0 %v2558, 32
    %v2560 = vpop.permute.xlu0 %2559
    %2562 = vst.msk [vmem:[#allocation3 + $0x8] sm:$0xf] %vm2347, %v2560
    %v2563 = vmul.f32 %v2166, 0.33333334
    %v2564 = vmul.f32 %v2209, 0.6666667
    %v2565 = vadd.f32 %v2563, %v2564
    %v2567 = vrot.slane %v2565, 4
    %2568 = vrot.lane.b32.xlu0 %v2567, 32
    %v2569 = vpop.permute.xlu0 %2568
    %2571 = vst.msk [vmem:[#allocation2 + $0x8] sm:$0xf0] %vm2362, %v2569
    %2572 = vrot.lane.b32.xlu0 %v2565, 32
    %v2573 = vpop.permute.xlu0 %2572
    %2575 = vst.msk [vmem:[#allocation3 + $0x8] sm:$0xf0] %vm2362, %v2573
    %v2576 = vmul.f32 %v1865, 0.8666667
    %v2577 = vmul.f32 %v1908, 0.13333334
    %v2578 = vadd.f32 %v2576, %v2577
    %2580 = vrot.lane.b32.xlu0 %v2578, 48
    %v2581 = vpop.permute.xlu0 %2580
    %2583 = vst.msk [vmem:[#allocation2 + $0x8] sm:$0xf] %vm2375, %v2581
    %v2584 = vrot.slane %v2578, 4
    %2585 = vrot.lane.b32.xlu0 %v2584, 48
    %v2586 = vpop.permute.xlu0 %2585
    %2588 = vst.msk [vmem:[#allocation3 + $0x8] sm:$0xf] %vm2375, %v2586
    %v2589 = vmul.f32 %v2209, 0.8666667
    %v2590 = vmul.f32 %v2252, 0.13333334
    %v2591 = vadd.f32 %v2589, %v2590
    %v2593 = vrot.slane %v2591, 4
    %2594 = vrot.lane.b32.xlu0 %v2593, 48
    %v2595 = vpop.permute.xlu0 %2594
    %2597 = vst.msk [vmem:[#allocation2 + $0x8] sm:$0xf0] %vm2390, %v2595
    %2598 = vrot.lane.b32.xlu0 %v2591, 48
    %v2599 = vpop.permute.xlu0 %2598
    %2601 = vst.msk [vmem:[#allocation3 + $0x8] sm:$0xf0] %vm2390, %v2599
    %v2602 = vmul.f32 %v1865, 0.4
    %v2603 = vmul.f32 %v1908, 0.6
    %v2604 = vadd.f32 %v2602, %v2603
    %2606 = vrot.lane.b32.xlu0 %v2604, 64
    %v2607 = vpop.permute.xlu0 %2606
    %2609 = vst.msk [vmem:[#allocation2 + $0x8] sm:$0xf] %vm2403, %v2607
    %v2610 = vrot.slane %v2604, 4
    %2611 = vrot.lane.b32.xlu0 %v2610, 64
    %v2612 = vpop.permute.xlu0 %2611
    %2614 = vst.msk [vmem:[#allocation3 + $0x8] sm:$0xf] %vm2403, %v2612
    %v2615 = vmul.f32 %v2209, 0.4
    %v2616 = vmul.f32 %v2252, 0.6
    %v2617 = vadd.f32 %v2615, %v2616
    %v2619 = vrot.slane %v2617, 4
    %2620 = vrot.lane.b32.xlu0 %v2619, 64
    %v2621 = vpop.permute.xlu0 %2620
    %2623 = vst.msk [vmem:[#allocation2 + $0x8] sm:$0xf0] %vm2418, %v2621
    %2624 = vrot.lane.b32.xlu0 %v2617, 64
    %v2625 = vpop.permute.xlu0 %2624
    %2627 = vst.msk [vmem:[#allocation3 + $0x8] sm:$0xf0] %vm2418, %v2625
    %v2628 = vmul.f32 %v1908, 0.93333334
    %v2629 = vmul.f32 %v1951, 0.06666667
    %v2630 = vadd.f32 %v2628, %v2629
    %2632 = vrot.lane.b32.xlu0 %v2630, 80
    %v2633 = vpop.permute.xlu0 %2632
    %2635 = vst.msk [vmem:[#allocation2 + $0x8] sm:$0xf] %vm2431, %v2633
    %v2636 = vrot.slane %v2630, 4
    %2637 = vrot.lane.b32.xlu0 %v2636, 80
    %v2638 = vpop.permute.xlu0 %2637
    %2640 = vst.msk [vmem:[#allocation3 + $0x8] sm:$0xf] %vm2431, %v2638
    %v2641 = vmul.f32 %v2252, 0.93333334
    %v2642 = vmul.f32 %v2295, 0.06666667
    %v2643 = vadd.f32 %v2641, %v2642
    %v2645 = vrot.slane %v2643, 4
    %2646 = vrot.lane.b32.xlu0 %v2645, 80
    %v2647 = vpop.permute.xlu0 %2646
    %2649 = vst.msk [vmem:[#allocation2 + $0x8] sm:$0xf0] %vm2446, %v2647
    %2650 = vrot.lane.b32.xlu0 %v2643, 80
    %v2651 = vpop.permute.xlu0 %2650
    %2653 = vst.msk [vmem:[#allocation3 + $0x8] sm:$0xf0] %vm2446, %v2651
    %v2654 = vmul.f32 %v1908, 0.46666667
    %v2655 = vmul.f32 %v1951, 0.53333336
    %v2656 = vadd.f32 %v2654, %v2655
    %2658 = vrot.lane.b32.xlu0 %v2656, 96
    %v2659 = vpop.permute.xlu0 %2658
    %2661 = vst.msk [vmem:[#allocation2 + $0x8] sm:$0xf] %vm2459, %v2659
    %v2662 = vrot.slane %v2656, 4
    %2663 = vrot.lane.b32.xlu0 %v2662, 96
    %v2664 = vpop.permute.xlu0 %2663
    %2666 = vst.msk [vmem:[#allocation3 + $0x8] sm:$0xf] %vm2459, %v2664
    %v2667 = vmul.f32 %v2252, 0.46666667
    %v2668 = vmul.f32 %v2295, 0.53333336
    %v2669 = vadd.f32 %v2667, %v2668
    %v2671 = vrot.slane %v2669, 4
    %2672 = vrot.lane.b32.xlu0 %v2671, 96
    %v2673 = vpop.permute.xlu0 %2672
    %2675 = vst.msk [vmem:[#allocation2 + $0x8] sm:$0xf0] %vm2474, %v2673
    %2676 = vrot.lane.b32.xlu0 %v2669, 96
    %v2677 = vpop.permute.xlu0 %2676
    %2679 = vst.msk [vmem:[#allocation3 + $0x8] sm:$0xf0] %vm2474, %v2677
    %v2680 = vmul.f32 %v1908, 0.0
    %v2681 = vadd.f32 %v2680, %v1951
    %2683 = vrot.lane.b32.xlu0 %v2681, 112
    %v2684 = vpop.permute.xlu0 %2683
    %2686 = vst.msk [vmem:[#allocation2 + $0x8] sm:$0xf] %vm2487, %v2684
    %v2687 = vrot.slane %v2681, 4
    %2688 = vrot.lane.b32.xlu0 %v2687, 112
    %v2689 = vpop.permute.xlu0 %2688
    %2691 = vst.msk [vmem:[#allocation3 + $0x8] sm:$0xf] %vm2487, %v2689
    %v2692 = vmul.f32 %v2252, 0.0
    %v2693 = vadd.f32 %v2692, %v2295
    %v2695 = vrot.slane %v2693, 4
    %2696 = vrot.lane.b32.xlu0 %v2695, 112
    %v2697 = vpop.permute.xlu0 %2696
    %2699 = vst.msk [vmem:[#allocation2 + $0x8] sm:$0xf0] %vm2502, %v2697
    %2700 = vrot.lane.b32.xlu0 %v2693, 112
    %v2701 = vpop.permute.xlu0 %2700
    %2703 = vst.msk [vmem:[#allocation3 + $0x8] sm:$0xf0] %vm2502, %v2701
    %v2704 = vld [vmem:[#allocation2] sm:$0xff]
    %v2705 = vld [vmem:[#allocation2 + $0x8] sm:$0xff]
    %v2706 = vld [vmem:[#allocation3] sm:$0xff]
    %v2707 = vld [vmem:[#allocation3 + $0x8] sm:$0xff]
    %v2708 = vmul.f32 %v2706, %v57
    %v2709 = vmul.f32 %v2707, %v58
    %v2710 = vadd.f32 %v2704, %v2708
    %v2711 = vadd.f32 %v2705, %v2709
    %v2712 = vtanh.pop %v2710
    %v2713 = vtanh.pop %v2711
    %2714 = vst [vmem:[#allocation4] sm:$0xff] %v2712
    %2715 = vst [vmem:[#allocation4 + $0x8] sm:$0xff] %v2713
    // Predicated region
    $region30: #{tpu_custom_call.1} parent=1 // pred_check
      _
    $region31: #{tpu_custom_call.1} parent=1 // pred_check_branch
      %2717 = sbr.rel (0) target = $region33
    $region32: #{tpu_custom_call.1} parent=1 // pred_region
      %s2719 = ssub.s32 256, 256
      %2720 = vsyncadd [#allocation5], %s2719
      %s2722 = sshll.u32 [#allocation4], 4
      %s2723 = int_to_ptr.vmem [resolvable:$true] %s2722
      %2725 = dma.vmem_to_hbm [thread:$0]  %s2723, 256, %s7, [#allocation5]
    $region33: #{tpu_custom_call.1} parent=1 // pred_fallthru
      _
    // Predicated region
    $region34: #{tpu_custom_call.1} parent=1 // pred_check
      _
    $region35: #{tpu_custom_call.1} parent=1 // pred_check_branch
      %2727 = sbr.rel (0) target = $region37
    $region36: #{tpu_custom_call.1} parent=1 // pred_region
      %2728 = dma.done [#allocation5], 256
    $region37: #{tpu_custom_call.1} parent=1 // pred_fallthru
      _
    %2729 = vsyncpa [#allocation5], 1

</llo_original>
